<compile_context>
chip_gen: v6e
topology: v6e:2x2x1
jax: 0.10.0
libtpu: 0.0.40
codegen_flags: <defaults>
</compile_context>

<pallas_src>
import jax
import jax.numpy as jnp
from jax import lax
from jax.experimental import pallas as pl
from jax.experimental.pallas import tpu as pltpu


# ----------------------------------------------------------------------------
# layout plumbing used by the pure-JAX reference
# ----------------------------------------------------------------------------
def patch_split_jax(x, bin_size):
    """b c (bh rh) (bw rw) -> b (bh bw) rh rw c"""
    B, C, H, W = x.shape
    bh, bw = bin_size
    rH, rW = H // bh, W // bw
    out = x.reshape(B, C, bh, rH, bw, rW)
    out = jnp.transpose(out, (0, 2, 4, 3, 5, 1))
    return out.reshape(B, bh * bw, rH, rW, C)


def patch_recover_jax(x, bin_size):
    """b (bh bw) rh rw c -> b c (bh rh) (bw rw)"""
    B, N, rH, rW, C = x.shape
    bh, bw = bin_size
    out = x.reshape(B, bh, bw, rH, rW, C)
    out = jnp.transpose(out, (0, 5, 1, 3, 2, 4))
    return out.reshape(B, C, bh * rH, bw * rW)


# ----------------------------------------------------------------------------
# Pallas kernel: full CAAM forward for a block of images in channel-major
# patch layout:  x  (Bt, NBIN, C, S)  ->  out (Bt, NBIN, C, S), cls (Bt, K, NBIN)
# ----------------------------------------------------------------------------
def _caam_kernel(
    x_ref,        # (Bt, NBIN, C, S)
    wxp_ref,      # (K+Ci, C)   [conv_cam ; proj_query] stacked
    bxp_ref,      # (K+Ci, 1)   [b_cam ; b_q]
    wg1k_ref,     # (NK, NK)    kron(w_gcn1, I_K) + I   (GCN conv1 + residual)
    wfk_ref,      # (K, NK)     kron(w_fuse, I_K)
    wg2_ref,      # (C, C)      GCN Linear, pre-transposed to (in, out)
    wkv_ref,      # (2, C, Ci)  proj_key / proj_value, pre-transposed to (in, out)
    bkv_ref,      # (2, Ci)
    wobn_ref,     # (C, Ci)     conv_out weight with BN(eval) scale folded in
    bnb_ref,      # (C, 1)      BN(eval) shift
    bf_ref,       # (1, 1) SMEM fuse bias
    out_ref,      # (Bt, NBIN, C, S)
    cls_ref,      # (Bt, K, NBIN)
    loc_ref,      # VMEM scratch (NK, C) : stacked class-wise local features
):
    Bt, NBIN, C, S = x_ref.shape
    K = cls_ref.shape[1]
    NK = NBIN * K
    f32 = jnp.float32

    # tiny constant operands: load once, reuse across images / bins
    wxp = wxp_ref[...]
    bxp = bxp_ref[...]
    wg1k = wg1k_ref[...]
    wfk = wfk_ref[...]
    wg2 = wg2_ref[...]
    wk_t = wkv_ref[0]
    wv_t = wkv_ref[1]
    bk = bkv_ref[0:1, :]
    bv = bkv_ref[1:2, :]
    wobn = wobn_ref[...]
    bnb = bnb_ref[...]
    bf = bf_ref[0, 0]

    for b in range(Bt):
        # ---- pass 1: per-bin CAM (transposed layout), cls score, local features
        q_list = []
        for n in range(NBIN):
            x_n = x_ref[b, n, :, :].astype(f32)                              # (C, S)
            # fused conv_cam + proj_query: one (K+Ci, C) @ (C, S) matmul
            camq = jnp.dot(wxp, x_n, preferred_element_type=f32) + bxp       # (K+Ci, S)
            cam_t = camq[:K, :]                                              # (K, S)
            q_list.append(camq[K:, :])                                       # (Ci, S)

            # cls score for this bin: mean over the bin's S pixels (lane reduce)
            cls_n = jax.nn.sigmoid(jnp.mean(cam_t, axis=1, keepdims=True))   # (K, 1)
            cls_ref[b, :, n:n + 1] = cls_n.astype(cls_ref.dtype)

            # pixel softmax over S (lane axis) with EUP approx reciprocal
            mx = jnp.max(cam_t, axis=1, keepdims=True)
            ex = jnp.exp(cam_t - mx)
            den = jnp.sum(ex, axis=1, keepdims=True)
            pc = ex * pl.reciprocal(den, approx=True)
            pc = pc * cls_n                                                  # fold bin confidence
            # local[k, c] = sum_s pc[k, s] * x[c, s]
            lf = lax.dot_general(pc, x_n, (((1,), (1,)), ((), ())),
                                 preferred_element_type=f32)                 # (K, C)
            loc_ref[n * K:(n + 1) * K, :] = lf

        local_stack = loc_ref[...]                                           # (NK, C)

        # ---- GCN conv1 (+residual, folded into wg1k) and bin-fuse: lane-dense matmuls
        t_stack = jnp.maximum(
            jnp.dot(wg1k, local_stack, preferred_element_type=f32), 0.0)     # (NK, C)
        g_pre = jnp.dot(wfk, t_stack, preferred_element_type=f32)            # (K, C)

        # ---- shared GCN Linear (wg2), batched over all bins, then key/value projections
        local2 = jnp.dot(t_stack, wg2, preferred_element_type=f32)           # (NK, C)
        g = jnp.maximum(jnp.dot(g_pre, wg2, preferred_element_type=f32) + bf, 0.0)  # (K, C)

        key_stack = jnp.dot(local2, wk_t, preferred_element_type=f32) + bk   # (NK, Ci)
        v = jnp.dot(g, wv_t, preferred_element_type=f32) + bv                # (K, Ci)

        # ---- pass 2: per-bin attention + conv_out + BN(eval) + relu + residual
        for n in range(NBIN):
            x_n = x_ref[b, n, :, :].astype(f32)                              # (C, S) re-slice
            q_t = q_list[n]                                                  # (Ci, S)
            key_n = key_stack[n * K:(n + 1) * K, :]                          # (K, Ci)

            aff_t = jnp.dot(key_n, q_t, preferred_element_type=f32)          # (K, S)
            amx = jnp.max(aff_t, axis=0, keepdims=True)
            aex = jnp.exp(aff_t - amx)
            aden = jnp.sum(aex, axis=0, keepdims=True)
            aff_t = aex * pl.reciprocal(aden, approx=True)                   # softmax over K

            # attn[i, s] = sum_k v[k, i] * aff[k, s]
            attn_t = lax.dot_general(v, aff_t, (((0,), (0,)), ((), ())),
                                     preferred_element_type=f32)             # (Ci, S)
            co_t = jnp.dot(wobn, attn_t, preferred_element_type=f32) + bnb   # (C, S)
            out_ref[b, n, :, :] = (x_n + jnp.maximum(co_t, 0.0)).astype(out_ref.dtype)


# ----------------------------------------------------------------------------
# wrapper (pure layout plumbing + algebraic weight folding)
# ----------------------------------------------------------------------------
def caam_forward(x, params, bin_size, y=None, images_per_step=None):
    """x: (B, C, H, W) f32.  Returns (out (B,C,H,W), cls_score (B,K,bh,bw))."""
    del y  # unused by the original module's forward
    B, C, H, W = x.shape
    bh, bw = bin_size
    assert H % bh == 0 and W % bw == 0, "spatial dims must divide bin_size"
    NBIN = bh * bw
    rH, rW = H // bh, W // bw
    S = rH * rW
    K = params["w_cam"].shape[0]
    Ci = params["w_q"].shape[0]
    NK = NBIN * K
    f32 = jnp.float32

    # Images per grid step: batching amortizes per-step overhead (v5e/v6e serial grid)
    # while keeping the parallel grid extent even for v7x's two TensorCores.
    if images_per_step is None:
        Bt = 2 if (B % 2 == 0 and B > 2) else 1
    else:
        Bt = int(images_per_step)
    assert B % Bt == 0

    # channel-major patch layout: (B, NBIN, C, S), bins ordered (bh, bw), pixels (rH, rW)
    x_cp = x.reshape(B, C, bh, rH, bw, rW)
    x_cp = jnp.transpose(x_cp, (0, 2, 4, 1, 3, 5)).reshape(B, NBIN, C, S).astype(f32)
    # TODO(synk): on v6e/v7x, bf16 storage for x_cp / out halves HBM+VMEM traffic; kept f32
    # here so the numerical check against the f32 reference stays tight.

    # weight prep: pure layout / algebraic folding, all matmul work stays in the kernel
    wxp = jnp.concatenate([params["w_cam"], params["w_q"]], axis=0).astype(f32)      # (K+Ci, C)
    bxp = jnp.concatenate([params["b_cam"], params["b_q"]]).reshape(K + Ci, 1).astype(f32)
    eye_k = jnp.eye(K, dtype=f32)
    wg1k = jnp.kron(params["w_gcn1"].astype(f32), eye_k) + jnp.eye(NK, dtype=f32)     # (NK, NK)
    wfk = jnp.kron(params["w_fuse"].reshape(1, NBIN).astype(f32), eye_k)              # (K, NK)
    wg2_t = params["w_gcn2"].astype(f32).T                                            # (C, C)
    wkv_t = jnp.stack([params["w_k"].T, params["w_v"].T]).astype(f32)                 # (2, C, Ci)
    bkv = jnp.stack([params["b_k"], params["b_v"]]).astype(f32)                       # (2, Ci)
    wobn = (params["w_out"] * params["bn_scale"][:, None]).astype(f32)                # (C, Ci)
    bnb = params["bn_shift"].reshape(C, 1).astype(f32)
    bf = params["b_fuse"].reshape(1, 1).astype(f32)                                   # SMEM scalar

    def const_spec(shape):
        nd = len(shape)
        return pl.BlockSpec(shape, lambda i, _nd=nd: (0,) * _nd)

    grid_spec = pltpu.PrefetchScalarGridSpec(
        num_scalar_prefetch=0,
        grid=(B // Bt,),
        in_specs=[
            pl.BlockSpec((Bt, NBIN, C, S), lambda i: (i, 0, 0, 0)),
            const_spec((K + Ci, C)), const_spec((K + Ci, 1)),
            const_spec((NK, NK)), const_spec((K, NK)),
            const_spec((C, C)),
            const_spec((2, C, Ci)), const_spec((2, Ci)),
            const_spec((C, Ci)), const_spec((C, 1)),
            pl.BlockSpec(memory_space=pltpu.MemorySpace.SMEM),
        ],
        out_specs=(
            pl.BlockSpec((Bt, NBIN, C, S), lambda i: (i, 0, 0, 0)),
            pl.BlockSpec((Bt, K, NBIN), lambda i: (i, 0, 0)),
        ),
        scratch_shapes=[pltpu.VMEM((NK, C), jnp.float32)],
    )

    out_cp, cls_bn = pl.pallas_call(
        _caam_kernel,
        out_shape=(jax.ShapeDtypeStruct((B, NBIN, C, S), f32),
                   jax.ShapeDtypeStruct((B, K, NBIN), f32)),
        grid_spec=grid_spec,
        compiler_params=pltpu.CompilerParams(
            dimension_semantics=("parallel",),   # v7x: both TensorCores take image blocks
            # NOTE(v7x): at production feature sizes, re-derive VMEM use (64 MiB physical /
            # 32 MiB scoped) and raise vmem_limit_bytes or add a pixel-chunk grid axis.
        ),
    )(x_cp, wxp, bxp, wg1k, wfk, wg2_t, wkv_t, bkv, wobn, bnb, bf)

    # recover (B, C, H, W) from channel-major patch layout (pure plumbing)
    out = out_cp.reshape(B, bh, bw, C, rH, rW)
    out = jnp.transpose(out, (0, 3, 1, 4, 2, 5)).reshape(B, C, H, W)
    cls_score = cls_bn.reshape(B, K, bh, bw)
    return out, cls_score


# ----------------------------------------------------------------------------
# pure-JAX reference mirroring the PyTorch forward exactly (eval mode)
# ----------------------------------------------------------------------------
def caam_reference(x, params, bin_size):
    PREC = lax.Precision.HIGHEST
    B, C, H, W = x.shape
    bh, bw = bin_size
    K = params["w_cam"].shape[0]
    rH, rW = H // bh, W // bw
    N = bh * bw
    S = rH * rW

    cam = jnp.einsum("bchw,kc->bkhw", x, params["w_cam"], precision=PREC) \
        + params["b_cam"][None, :, None, None]
    pooled = cam.reshape(B, K, bh, rH, bw, rW).mean(axis=(3, 5))
    cls_score = jax.nn.sigmoid(pooled)                                   # (B, K, bh, bw)

    residual = x
    cam_ps = patch_split_jax(cam, bin_size).reshape(B, N, S, K)
    x_ps = patch_split_jax(x, bin_size).reshape(B, N, S, C)

    bin_conf = jnp.transpose(cls_score.reshape(B, K, N), (0, 2, 1))[..., None]   # (B,N,K,1)
    pix_conf = jax.nn.softmax(cam_ps, axis=2)
    local = jnp.einsum("bnsk,bnsc->bnkc", pix_conf, x_ps, precision=PREC) * bin_conf

    # GCN_CAM
    t = jnp.einsum("mn,bnkc->bmkc", params["w_gcn1"], local, precision=PREC)
    t = jax.nn.relu(t + local)
    local = jnp.einsum("bnkc,dc->bnkd", t, params["w_gcn2"], precision=PREC)

    # fuse + relu + broadcast over bins
    g = jnp.einsum("n,bnkc->bkc", params["w_fuse"][0], local, precision=PREC) + params["b_fuse"][0]
    g = jax.nn.relu(g)
    g = jnp.broadcast_to(g[:, None], (B, N, K, C))

    q = jnp.einsum("bnsc,ic->bnsi", x_ps, params["w_q"], precision=PREC) + params["b_q"]
    k = jnp.einsum("bnkc,ic->bnki", local, params["w_k"], precision=PREC) + params["b_k"]
    v = jnp.einsum("bnkc,ic->bnki", g, params["w_v"], precision=PREC) + params["b_v"]

    aff = jnp.einsum("bnsi,bnki->bnsk", q, k, precision=PREC)
    aff = jax.nn.softmax(aff, axis=-1)
    out = jnp.einsum("bnsk,bnki->bnsi", aff, v, precision=PREC)          # (B, N, S, Ci)

    out = patch_recover_jax(out.reshape(B, N, rH, rW, -1), bin_size)     # (B, Ci, H, W)
    co = jnp.einsum("bihw,ci->bchw", out, params["w_out"], precision=PREC)
    co = co * params["bn_scale"][None, :, None, None] + params["bn_shift"][None, :, None, None]
    out = residual + jax.nn.relu(co)
    return out, cls_score


# ----------------------------------------------------------------------------
if __name__ == "__main__":
    key = jax.random.PRNGKey(0)
    B, C, H, W = 2, 32, 16, 16           # feat_in = 32
    K = 8                                # num_classes
    bin_size = (2, 2)
    NBIN = bin_size[0] * bin_size[1]
    Ci = C // 2                          # feat_inner

    ks = jax.random.split(key, 16)

    def uinit(k, shape, fan_in):
        b = 1.0 / (fan_in ** 0.5)
        return jax.random.uniform(k, shape, jnp.float32, minval=-b, maxval=b)

    params = {
        "w_cam": uinit(ks[0], (K, C), C),      "b_cam": uinit(ks[1], (K,), C),
        "w_gcn1": uinit(ks[2], (NBIN, NBIN), NBIN),
        "w_gcn2": uinit(ks[3], (C, C), C),
        "w_fuse": uinit(ks[4], (1, NBIN), NBIN), "b_fuse": uinit(ks[5], (1,), NBIN),
        "w_q": uinit(ks[6], (Ci, C), C),       "b_q": uinit(ks[7], (Ci,), C),
        "w_k": uinit(ks[8], (Ci, C), C),       "b_k": uinit(ks[9], (Ci,), C),
        "w_v": uinit(ks[10], (Ci, C), C),      "b_v": uinit(ks[11], (Ci,), C),
        "w_out": uinit(ks[12], (C, Ci), Ci),
        "bn_scale": 1.0 + 0.1 * jax.random.normal(ks[13], (C,), jnp.float32),
        "bn_shift": 0.05 * jax.random.normal(ks[14], (C,), jnp.float32),
    }
    x = jax.random.normal(ks[15], (B, C, H, W), dtype=jnp.float32)
    y = None  # unused by CAAM.forward

    ref_out, ref_cls = caam_reference(x, params, bin_size)

    # default: one image per grid step (even parallel grid for v7x)
    out, cls_score = caam_forward(x, params, bin_size, y)
    out = jax.block_until_ready(out)
    cls_score = jax.block_until_ready(cls_score)
    assert out.shape == (B, C, H, W)
    assert cls_score.shape == (B, K, bin_size[0], bin_size[1])
    # tolerance covers MXU pass decomposition, folded BN scale, and the ~1e-3-level
    # relative error of the EUP approx reciprocal in both softmaxes; structural bugs
    # produce errors orders of magnitude larger.
    assert jnp.allclose(out, ref_out, atol=1e-2, rtol=1e-2), "out mismatch vs reference"
    assert jnp.allclose(cls_score, ref_cls, atol=5e-3, rtol=5e-3), "cls_score mismatch"

    # also exercise multi-image-per-step batching (v5e/v6e latency lever)
    out2, cls2 = caam_forward(x, params, bin_size, y, images_per_step=2)
    out2 = jax.block_until_ready(out2)
    cls2 = jax.block_until_ready(cls2)
    assert jnp.allclose(out2, ref_out, atol=1e-2, rtol=1e-2), "out mismatch (Bt=2)"
    assert jnp.allclose(cls2, ref_cls, atol=5e-3, rtol=5e-3), "cls mismatch (Bt=2)"

    print("KERNEL_OK")
</pallas_src>

<mosaic_0001>
module attributes {stable_mosaic.version = 11 : i64} {
  func.func @_caam_kernel(%arg0: i32, %arg1: memref<1x4x32x64xf32, #tpu.memory_space<vmem>>, %arg2: memref<24x32xf32, #tpu.memory_space<vmem>>, %arg3: memref<24x1xf32, #tpu.memory_space<vmem>>, %arg4: memref<32x32xf32, #tpu.memory_space<vmem>>, %arg5: memref<8x32xf32, #tpu.memory_space<vmem>>, %arg6: memref<32x32xf32, #tpu.memory_space<vmem>>, %arg7: memref<2x32x16xf32, #tpu.memory_space<vmem>>, %arg8: memref<2x16xf32, #tpu.memory_space<vmem>>, %arg9: memref<32x16xf32, #tpu.memory_space<vmem>>, %arg10: memref<32x1xf32, #tpu.memory_space<vmem>>, %arg11: memref<1x1xf32, #tpu.memory_space<smem>>, %arg12: memref<1x4x32x64xf32, #tpu.memory_space<vmem>>, %arg13: memref<1x8x4xf32, #tpu.memory_space<vmem>>, %arg14: memref<32x32xf32, #tpu.memory_space<vmem>>) attributes {dimension_semantics = [#tpu.dimension_semantics<parallel>], iteration_bounds = array<i64: 2>, scalar_prefetch = 0 : i64, scratch_operands = 1 : i64, tpu.core_type = #tpu.core_type<tc>, window_params = [{transform_indices = @transform_0, window_bounds = array<i64: 1, 4, 32, 64>}, {pipeline_mode = #tpu.pipeline_mode<synchronous>, transform_indices = @transform_1, window_bounds = array<i64: 24, 32>}, {pipeline_mode = #tpu.pipeline_mode<synchronous>, transform_indices = @transform_2, window_bounds = array<i64: 24, 1>}, {pipeline_mode = #tpu.pipeline_mode<synchronous>, transform_indices = @transform_3, window_bounds = array<i64: 32, 32>}, {pipeline_mode = #tpu.pipeline_mode<synchronous>, transform_indices = @transform_4, window_bounds = array<i64: 8, 32>}, {pipeline_mode = #tpu.pipeline_mode<synchronous>, transform_indices = @transform_5, window_bounds = array<i64: 32, 32>}, {pipeline_mode = #tpu.pipeline_mode<synchronous>, transform_indices = @transform_6, window_bounds = array<i64: 2, 32, 16>}, {pipeline_mode = #tpu.pipeline_mode<synchronous>, transform_indices = @transform_7, window_bounds = array<i64: 2, 16>}, {pipeline_mode = #tpu.pipeline_mode<synchronous>, transform_indices = @transform_8, window_bounds = array<i64: 32, 16>}, {pipeline_mode = #tpu.pipeline_mode<synchronous>, transform_indices = @transform_9, window_bounds = array<i64: 32, 1>}, {transform_indices = @transform_10, window_bounds = array<i64: 1, 1>}, {transform_indices = @transform_11, window_bounds = array<i64: 1, 4, 32, 64>}, {transform_indices = @transform_12, window_bounds = array<i64: 1, 8, 4>}]} {
    %c0 = arith.constant 0 : index
    %c0_0 = arith.constant 0 : index
    %0 = vector.load %arg2[%c0, %c0_0] : memref<24x32xf32, #tpu.memory_space<vmem>>, vector<24x32xf32>
    %c0_1 = arith.constant 0 : index
    %c0_2 = arith.constant 0 : index
    %1 = vector.load %arg3[%c0_1, %c0_2] : memref<24x1xf32, #tpu.memory_space<vmem>>, vector<24x1xf32>
    %c0_3 = arith.constant 0 : index
    %c0_4 = arith.constant 0 : index
    %2 = vector.load %arg4[%c0_3, %c0_4] : memref<32x32xf32, #tpu.memory_space<vmem>>, vector<32x32xf32>
    %c0_5 = arith.constant 0 : index
    %c0_6 = arith.constant 0 : index
    %3 = vector.load %arg5[%c0_5, %c0_6] : memref<8x32xf32, #tpu.memory_space<vmem>>, vector<8x32xf32>
    %c0_7 = arith.constant 0 : index
    %c0_8 = arith.constant 0 : index
    %4 = vector.load %arg6[%c0_7, %c0_8] : memref<32x32xf32, #tpu.memory_space<vmem>>, vector<32x32xf32>
    %c0_9 = arith.constant 0 : index
    %c0_10 = arith.constant 0 : index
    %c0_11 = arith.constant 0 : index
    %5 = vector.load %arg7[%c0_9, %c0_10, %c0_11] : memref<2x32x16xf32, #tpu.memory_space<vmem>>, vector<1x32x16xf32>
    %6 = vector.shape_cast %5 : vector<1x32x16xf32> to vector<32x16xf32>
    %c1 = arith.constant 1 : index
    %c0_12 = arith.constant 0 : index
    %c0_13 = arith.constant 0 : index
    %7 = vector.load %arg7[%c1, %c0_12, %c0_13] : memref<2x32x16xf32, #tpu.memory_space<vmem>>, vector<1x32x16xf32>
    %8 = vector.shape_cast %7 : vector<1x32x16xf32> to vector<32x16xf32>
    %c0_14 = arith.constant 0 : index
    %c0_15 = arith.constant 0 : index
    %9 = vector.load %arg8[%c0_14, %c0_15] : memref<2x16xf32, #tpu.memory_space<vmem>>, vector<1x16xf32>
    %c1_16 = arith.constant 1 : index
    %c0_17 = arith.constant 0 : index
    %10 = vector.load %arg8[%c1_16, %c0_17] : memref<2x16xf32, #tpu.memory_space<vmem>>, vector<1x16xf32>
    %c0_18 = arith.constant 0 : index
    %c0_19 = arith.constant 0 : index
    %11 = vector.load %arg9[%c0_18, %c0_19] : memref<32x16xf32, #tpu.memory_space<vmem>>, vector<32x16xf32>
    %c0_20 = arith.constant 0 : index
    %c0_21 = arith.constant 0 : index
    %12 = vector.load %arg10[%c0_20, %c0_21] : memref<32x1xf32, #tpu.memory_space<vmem>>, vector<32x1xf32>
    %c0_22 = arith.constant 0 : index
    %c0_23 = arith.constant 0 : index
    %13 = memref.load %arg11[%c0_22, %c0_23] : memref<1x1xf32, #tpu.memory_space<smem>>
    %c0_24 = arith.constant 0 : index
    %c0_25 = arith.constant 0 : index
    %c0_26 = arith.constant 0 : index
    %c0_27 = arith.constant 0 : index
    %14 = vector.load %arg1[%c0_24, %c0_25, %c0_26, %c0_27] : memref<1x4x32x64xf32, #tpu.memory_space<vmem>>, vector<1x1x32x64xf32>
    %15 = vector.shape_cast %14 : vector<1x1x32x64xf32> to vector<32x64xf32>
    %cst = arith.constant dense<0.000000e+00> : vector<24x64xf32>
    %16 = tpu.matmul %0, %15, %cst {dimension_numbers = #tpu.dot_dimension_numbers<[1], [0], [0], [1], [0, 0, 1, 1], [], []>} : vector<24x32xf32>, vector<32x64xf32>, vector<24x64xf32> -> vector<24x64xf32>
    %17 = vector.broadcast %1 : vector<24x1xf32> to vector<24x64xf32>
    %18 = arith.addf %16, %17 : vector<24x64xf32>
    %19 = vector.extract_strided_slice %18 {offsets = [0, 0], sizes = [8, 64], strides = [1, 1]} : vector<24x64xf32> to vector<8x64xf32>
    %20 = vector.extract_strided_slice %18 {offsets = [8, 0], sizes = [16, 64], strides = [1, 1]} : vector<24x64xf32> to vector<16x64xf32>
    %cst_28 = arith.constant dense<0.000000e+00> : vector<8xf32>
    %21 = vector.multi_reduction <add>, %19, %cst_28 [1] : vector<8x64xf32> to vector<8xf32>
    %22 = vector.shape_cast %21 : vector<8xf32> to vector<8x1xf32>
    %cst_29 = arith.constant 6.400000e+01 : f32
    %23 = vector.broadcast %cst_29 : f32 to vector<8x1xf32>
    %24 = arith.divf %22, %23 : vector<8x1xf32>
    %25 = arith.negf %24 : vector<8x1xf32>
    %26 = math.exp %25 : vector<8x1xf32>
    %cst_30 = arith.constant 1.000000e+00 : f32
    %27 = vector.broadcast %cst_30 : f32 to vector<8x1xf32>
    %28 = arith.addf %27, %26 : vector<8x1xf32>
    %29 = arith.divf %27, %28 : vector<8x1xf32>
    %c0_31 = arith.constant 0 : index
    %c0_32 = arith.constant 0 : index
    %c0_33 = arith.constant 0 : index
    %30 = vector.load %arg13[%c0_31, %c0_32, %c0_33] : memref<1x8x4xf32, #tpu.memory_space<vmem>>, vector<1x8x1xf32>
    %31 = vector.shape_cast %30 : vector<1x8x1xf32> to vector<8x1xf32>
    %32 = vector.shape_cast %29 : vector<8x1xf32> to vector<1x8x1xf32>
    tpu.vector_store %arg13[%c0_31, %c0_32, %c0_33], %32 {strides = array<i32>} : memref<1x8x4xf32, #tpu.memory_space<vmem>>, vector<1x8x1xf32>,
    %cst_34 = arith.constant dense<0xFF800000> : vector<8xf32>
    %33 = vector.multi_reduction <maximumf>, %19, %cst_34 [1] : vector<8x64xf32> to vector<8xf32>
    %34 = vector.shape_cast %33 : vector<8xf32> to vector<8x1xf32>
    %35 = vector.broadcast %34 : vector<8x1xf32> to vector<8x64xf32>
    %36 = arith.subf %19, %35 : vector<8x64xf32>
    %37 = math.exp %36 : vector<8x64xf32>
    %cst_35 = arith.constant dense<0.000000e+00> : vector<8xf32>
    %38 = vector.multi_reduction <add>, %37, %cst_35 [1] : vector<8x64xf32> to vector<8xf32>
    %39 = vector.shape_cast %38 : vector<8xf32> to vector<8x1xf32>
    %40 = tpu.reciprocal %39 {approx = true} : vector<8x1xf32> -> vector<8x1xf32>
    %41 = vector.broadcast %40 : vector<8x1xf32> to vector<8x64xf32>
    %42 = arith.mulf %37, %41 : vector<8x64xf32>
    %43 = vector.broadcast %29 : vector<8x1xf32> to vector<8x64xf32>
    %44 = arith.mulf %42, %43 : vector<8x64xf32>
    %cst_36 = arith.constant dense<0.000000e+00> : vector<8x32xf32>
    %45 = tpu.matmul %44, %15, %cst_36 {dimension_numbers = #tpu.dot_dimension_numbers<[1], [1], [0], [0], [0, 0, 1, 0], [], []>} : vector<8x64xf32>, vector<32x64xf32>, vector<8x32xf32> -> vector<8x32xf32>
    %c0_37 = arith.constant 0 : index
    %c0_38 = arith.constant 0 : index
    %46 = vector.load %arg14[%c0_37, %c0_38] : memref<32x32xf32, #tpu.memory_space<vmem>>, vector<8x32xf32>
    tpu.vector_store %arg14[%c0_37, %c0_38], %45 {strides = array<i32>} : memref<32x32xf32, #tpu.memory_space<vmem>>, vector<8x32xf32>,
    %c0_39 = arith.constant 0 : index
    %c1_40 = arith.constant 1 : index
    %c0_41 = arith.constant 0 : index
    %c0_42 = arith.constant 0 : index
    %47 = vector.load %arg1[%c0_39, %c1_40, %c0_41, %c0_42] : memref<1x4x32x64xf32, #tpu.memory_space<vmem>>, vector<1x1x32x64xf32>
    %48 = vector.shape_cast %47 : vector<1x1x32x64xf32> to vector<32x64xf32>
    %cst_43 = arith.constant dense<0.000000e+00> : vector<24x64xf32>
    %49 = tpu.matmul %0, %48, %cst_43 {dimension_numbers = #tpu.dot_dimension_numbers<[1], [0], [0], [1], [0, 0, 1, 1], [], []>} : vector<24x32xf32>, vector<32x64xf32>, vector<24x64xf32> -> vector<24x64xf32>
    %50 = vector.broadcast %1 : vector<24x1xf32> to vector<24x64xf32>
    %51 = arith.addf %49, %50 : vector<24x64xf32>
    %52 = vector.extract_strided_slice %51 {offsets = [0, 0], sizes = [8, 64], strides = [1, 1]} : vector<24x64xf32> to vector<8x64xf32>
    %53 = vector.extract_strided_slice %51 {offsets = [8, 0], sizes = [16, 64], strides = [1, 1]} : vector<24x64xf32> to vector<16x64xf32>
    %cst_44 = arith.constant dense<0.000000e+00> : vector<8xf32>
    %54 = vector.multi_reduction <add>, %52, %cst_44 [1] : vector<8x64xf32> to vector<8xf32>
    %55 = vector.shape_cast %54 : vector<8xf32> to vector<8x1xf32>
    %cst_45 = arith.constant 6.400000e+01 : f32
    %56 = vector.broadcast %cst_45 : f32 to vector<8x1xf32>
    %57 = arith.divf %55, %56 : vector<8x1xf32>
    %58 = arith.negf %57 : vector<8x1xf32>
    %59 = math.exp %58 : vector<8x1xf32>
    %cst_46 = arith.constant 1.000000e+00 : f32
    %60 = vector.broadcast %cst_46 : f32 to vector<8x1xf32>
    %61 = arith.addf %60, %59 : vector<8x1xf32>
    %62 = arith.divf %60, %61 : vector<8x1xf32>
    %c0_47 = arith.constant 0 : index
    %c0_48 = arith.constant 0 : index
    %c1_49 = arith.constant 1 : index
    %63 = vector.load %arg13[%c0_47, %c0_48, %c1_49] : memref<1x8x4xf32, #tpu.memory_space<vmem>>, vector<1x8x1xf32>
    %64 = vector.shape_cast %63 : vector<1x8x1xf32> to vector<8x1xf32>
    %65 = vector.shape_cast %62 : vector<8x1xf32> to vector<1x8x1xf32>
    tpu.vector_store %arg13[%c0_47, %c0_48, %c1_49], %65 {strides = array<i32>} : memref<1x8x4xf32, #tpu.memory_space<vmem>>, vector<1x8x1xf32>,
    %cst_50 = arith.constant dense<0xFF800000> : vector<8xf32>
    %66 = vector.multi_reduction <maximumf>, %52, %cst_50 [1] : vector<8x64xf32> to vector<8xf32>
    %67 = vector.shape_cast %66 : vector<8xf32> to vector<8x1xf32>
    %68 = vector.broadcast %67 : vector<8x1xf32> to vector<8x64xf32>
    %69 = arith.subf %52, %68 : vector<8x64xf32>
    %70 = math.exp %69 : vector<8x64xf32>
    %cst_51 = arith.constant dense<0.000000e+00> : vector<8xf32>
    %71 = vector.multi_reduction <add>, %70, %cst_51 [1] : vector<8x64xf32> to vector<8xf32>
    %72 = vector.shape_cast %71 : vector<8xf32> to vector<8x1xf32>
    %73 = tpu.reciprocal %72 {approx = true} : vector<8x1xf32> -> vector<8x1xf32>
    %74 = vector.broadcast %73 : vector<8x1xf32> to vector<8x64xf32>
    %75 = arith.mulf %70, %74 : vector<8x64xf32>
    %76 = vector.broadcast %62 : vector<8x1xf32> to vector<8x64xf32>
    %77 = arith.mulf %75, %76 : vector<8x64xf32>
    %cst_52 = arith.constant dense<0.000000e+00> : vector<8x32xf32>
    %78 = tpu.matmul %77, %48, %cst_52 {dimension_numbers = #tpu.dot_dimension_numbers<[1], [1], [0], [0], [0, 0, 1, 0], [], []>} : vector<8x64xf32>, vector<32x64xf32>, vector<8x32xf32> -> vector<8x32xf32>
    %c8 = arith.constant 8 : index
    %c0_53 = arith.constant 0 : index
    %79 = vector.load %arg14[%c8, %c0_53] : memref<32x32xf32, #tpu.memory_space<vmem>>, vector<8x32xf32>
    tpu.vector_store %arg14[%c8, %c0_53], %78 {strides = array<i32>} : memref<32x32xf32, #tpu.memory_space<vmem>>, vector<8x32xf32>,
    %c0_54 = arith.constant 0 : index
    %c2 = arith.constant 2 : index
    %c0_55 = arith.constant 0 : index
    %c0_56 = arith.constant 0 : index
    %80 = vector.load %arg1[%c0_54, %c2, %c0_55, %c0_56] : memref<1x4x32x64xf32, #tpu.memory_space<vmem>>, vector<1x1x32x64xf32>
    %81 = vector.shape_cast %80 : vector<1x1x32x64xf32> to vector<32x64xf32>
    %cst_57 = arith.constant dense<0.000000e+00> : vector<24x64xf32>
    %82 = tpu.matmul %0, %81, %cst_57 {dimension_numbers = #tpu.dot_dimension_numbers<[1], [0], [0], [1], [0, 0, 1, 1], [], []>} : vector<24x32xf32>, vector<32x64xf32>, vector<24x64xf32> -> vector<24x64xf32>
    %83 = vector.broadcast %1 : vector<24x1xf32> to vector<24x64xf32>
    %84 = arith.addf %82, %83 : vector<24x64xf32>
    %85 = vector.extract_strided_slice %84 {offsets = [0, 0], sizes = [8, 64], strides = [1, 1]} : vector<24x64xf32> to vector<8x64xf32>
    %86 = vector.extract_strided_slice %84 {offsets = [8, 0], sizes = [16, 64], strides = [1, 1]} : vector<24x64xf32> to vector<16x64xf32>
    %cst_58 = arith.constant dense<0.000000e+00> : vector<8xf32>
    %87 = vector.multi_reduction <add>, %85, %cst_58 [1] : vector<8x64xf32> to vector<8xf32>
    %88 = vector.shape_cast %87 : vector<8xf32> to vector<8x1xf32>
    %cst_59 = arith.constant 6.400000e+01 : f32
    %89 = vector.broadcast %cst_59 : f32 to vector<8x1xf32>
    %90 = arith.divf %88, %89 : vector<8x1xf32>
    %91 = arith.negf %90 : vector<8x1xf32>
    %92 = math.exp %91 : vector<8x1xf32>
    %cst_60 = arith.constant 1.000000e+00 : f32
    %93 = vector.broadcast %cst_60 : f32 to vector<8x1xf32>
    %94 = arith.addf %93, %92 : vector<8x1xf32>
    %95 = arith.divf %93, %94 : vector<8x1xf32>
    %c0_61 = arith.constant 0 : index
    %c0_62 = arith.constant 0 : index
    %c2_63 = arith.constant 2 : index
    %96 = vector.load %arg13[%c0_61, %c0_62, %c2_63] : memref<1x8x4xf32, #tpu.memory_space<vmem>>, vector<1x8x1xf32>
    %97 = vector.shape_cast %96 : vector<1x8x1xf32> to vector<8x1xf32>
    %98 = vector.shape_cast %95 : vector<8x1xf32> to vector<1x8x1xf32>
    tpu.vector_store %arg13[%c0_61, %c0_62, %c2_63], %98 {strides = array<i32>} : memref<1x8x4xf32, #tpu.memory_space<vmem>>, vector<1x8x1xf32>,
    %cst_64 = arith.constant dense<0xFF800000> : vector<8xf32>
    %99 = vector.multi_reduction <maximumf>, %85, %cst_64 [1] : vector<8x64xf32> to vector<8xf32>
    %100 = vector.shape_cast %99 : vector<8xf32> to vector<8x1xf32>
    %101 = vector.broadcast %100 : vector<8x1xf32> to vector<8x64xf32>
    %102 = arith.subf %85, %101 : vector<8x64xf32>
    %103 = math.exp %102 : vector<8x64xf32>
    %cst_65 = arith.constant dense<0.000000e+00> : vector<8xf32>
    %104 = vector.multi_reduction <add>, %103, %cst_65 [1] : vector<8x64xf32> to vector<8xf32>
    %105 = vector.shape_cast %104 : vector<8xf32> to vector<8x1xf32>
    %106 = tpu.reciprocal %105 {approx = true} : vector<8x1xf32> -> vector<8x1xf32>
    %107 = vector.broadcast %106 : vector<8x1xf32> to vector<8x64xf32>
    %108 = arith.mulf %103, %107 : vector<8x64xf32>
    %109 = vector.broadcast %95 : vector<8x1xf32> to vector<8x64xf32>
    %110 = arith.mulf %108, %109 : vector<8x64xf32>
    %cst_66 = arith.constant dense<0.000000e+00> : vector<8x32xf32>
    %111 = tpu.matmul %110, %81, %cst_66 {dimension_numbers = #tpu.dot_dimension_numbers<[1], [1], [0], [0], [0, 0, 1, 0], [], []>} : vector<8x64xf32>, vector<32x64xf32>, vector<8x32xf32> -> vector<8x32xf32>
    %c16 = arith.constant 16 : index
    %c0_67 = arith.constant 0 : index
    %112 = vector.load %arg14[%c16, %c0_67] : memref<32x32xf32, #tpu.memory_space<vmem>>, vector<8x32xf32>
    tpu.vector_store %arg14[%c16, %c0_67], %111 {strides = array<i32>} : memref<32x32xf32, #tpu.memory_space<vmem>>, vector<8x32xf32>,
    %c0_68 = arith.constant 0 : index
    %c3 = arith.constant 3 : index
    %c0_69 = arith.constant 0 : index
    %c0_70 = arith.constant 0 : index
    %113 = vector.load %arg1[%c0_68, %c3, %c0_69, %c0_70] : memref<1x4x32x64xf32, #tpu.memory_space<vmem>>, vector<1x1x32x64xf32>
    %114 = vector.shape_cast %113 : vector<1x1x32x64xf32> to vector<32x64xf32>
    %cst_71 = arith.constant dense<0.000000e+00> : vector<24x64xf32>
    %115 = tpu.matmul %0, %114, %cst_71 {dimension_numbers = #tpu.dot_dimension_numbers<[1], [0], [0], [1], [0, 0, 1, 1], [], []>} : vector<24x32xf32>, vector<32x64xf32>, vector<24x64xf32> -> vector<24x64xf32>
    %116 = vector.broadcast %1 : vector<24x1xf32> to vector<24x64xf32>
    %117 = arith.addf %115, %116 : vector<24x64xf32>
    %118 = vector.extract_strided_slice %117 {offsets = [0, 0], sizes = [8, 64], strides = [1, 1]} : vector<24x64xf32> to vector<8x64xf32>
    %119 = vector.extract_strided_slice %117 {offsets = [8, 0], sizes = [16, 64], strides = [1, 1]} : vector<24x64xf32> to vector<16x64xf32>
    %cst_72 = arith.constant dense<0.000000e+00> : vector<8xf32>
    %120 = vector.multi_reduction <add>, %118, %cst_72 [1] : vector<8x64xf32> to vector<8xf32>
    %121 = vector.shape_cast %120 : vector<8xf32> to vector<8x1xf32>
    %cst_73 = arith.constant 6.400000e+01 : f32
    %122 = vector.broadcast %cst_73 : f32 to vector<8x1xf32>
    %123 = arith.divf %121, %122 : vector<8x1xf32>
    %124 = arith.negf %123 : vector<8x1xf32>
    %125 = math.exp %124 : vector<8x1xf32>
    %cst_74 = arith.constant 1.000000e+00 : f32
    %126 = vector.broadcast %cst_74 : f32 to vector<8x1xf32>
    %127 = arith.addf %126, %125 : vector<8x1xf32>
    %128 = arith.divf %126, %127 : vector<8x1xf32>
    %c0_75 = arith.constant 0 : index
    %c0_76 = arith.constant 0 : index
    %c3_77 = arith.constant 3 : index
    %129 = vector.load %arg13[%c0_75, %c0_76, %c3_77] : memref<1x8x4xf32, #tpu.memory_space<vmem>>, vector<1x8x1xf32>
    %130 = vector.shape_cast %129 : vector<1x8x1xf32> to vector<8x1xf32>
    %131 = vector.shape_cast %128 : vector<8x1xf32> to vector<1x8x1xf32>
    tpu.vector_store %arg13[%c0_75, %c0_76, %c3_77], %131 {strides = array<i32>} : memref<1x8x4xf32, #tpu.memory_space<vmem>>, vector<1x8x1xf32>,
    %cst_78 = arith.constant dense<0xFF800000> : vector<8xf32>
    %132 = vector.multi_reduction <maximumf>, %118, %cst_78 [1] : vector<8x64xf32> to vector<8xf32>
    %133 = vector.shape_cast %132 : vector<8xf32> to vector<8x1xf32>
    %134 = vector.broadcast %133 : vector<8x1xf32> to vector<8x64xf32>
    %135 = arith.subf %118, %134 : vector<8x64xf32>
    %136 = math.exp %135 : vector<8x64xf32>
    %cst_79 = arith.constant dense<0.000000e+00> : vector<8xf32>
    %137 = vector.multi_reduction <add>, %136, %cst_79 [1] : vector<8x64xf32> to vector<8xf32>
    %138 = vector.shape_cast %137 : vector<8xf32> to vector<8x1xf32>
    %139 = tpu.reciprocal %138 {approx = true} : vector<8x1xf32> -> vector<8x1xf32>
    %140 = vector.broadcast %139 : vector<8x1xf32> to vector<8x64xf32>
    %141 = arith.mulf %136, %140 : vector<8x64xf32>
    %142 = vector.broadcast %128 : vector<8x1xf32> to vector<8x64xf32>
    %143 = arith.mulf %141, %142 : vector<8x64xf32>
    %cst_80 = arith.constant dense<0.000000e+00> : vector<8x32xf32>
    %144 = tpu.matmul %143, %114, %cst_80 {dimension_numbers = #tpu.dot_dimension_numbers<[1], [1], [0], [0], [0, 0, 1, 0], [], []>} : vector<8x64xf32>, vector<32x64xf32>, vector<8x32xf32> -> vector<8x32xf32>
    %c24 = arith.constant 24 : index
    %c0_81 = arith.constant 0 : index
    %145 = vector.load %arg14[%c24, %c0_81] : memref<32x32xf32, #tpu.memory_space<vmem>>, vector<8x32xf32>
    tpu.vector_store %arg14[%c24, %c0_81], %144 {strides = array<i32>} : memref<32x32xf32, #tpu.memory_space<vmem>>, vector<8x32xf32>,
    %c0_82 = arith.constant 0 : index
    %c0_83 = arith.constant 0 : index
    %146 = vector.load %arg14[%c0_82, %c0_83] : memref<32x32xf32, #tpu.memory_space<vmem>>, vector<32x32xf32>
    %cst_84 = arith.constant dense<0.000000e+00> : vector<32x32xf32>
    %147 = tpu.matmul %2, %146, %cst_84 {dimension_numbers = #tpu.dot_dimension_numbers<[1], [0], [0], [1], [0, 0, 1, 1], [], []>} : vector<32x32xf32>, vector<32x32xf32>, vector<32x32xf32> -> vector<32x32xf32>
    %cst_85 = arith.constant 0.000000e+00 : f32
    %148 = vector.broadcast %cst_85 : f32 to vector<32x32xf32>
    %149 = arith.maximumf %147, %148 : vector<32x32xf32>
    %cst_86 = arith.constant dense<0.000000e+00> : vector<8x32xf32>
    %150 = tpu.matmul %3, %149, %cst_86 {dimension_numbers = #tpu.dot_dimension_numbers<[1], [0], [0], [1], [0, 0, 1, 1], [], []>} : vector<8x32xf32>, vector<32x32xf32>, vector<8x32xf32> -> vector<8x32xf32>
    %cst_87 = arith.constant dense<0.000000e+00> : vector<32x32xf32>
    %151 = tpu.matmul %149, %4, %cst_87 {dimension_numbers = #tpu.dot_dimension_numbers<[1], [0], [0], [1], [0, 0, 1, 1], [], []>} : vector<32x32xf32>, vector<32x32xf32>, vector<32x32xf32> -> vector<32x32xf32>
    %cst_88 = arith.constant dense<0.000000e+00> : vector<8x32xf32>
    %152 = tpu.matmul %150, %4, %cst_88 {dimension_numbers = #tpu.dot_dimension_numbers<[1], [0], [0], [1], [0, 0, 1, 1], [], []>} : vector<8x32xf32>, vector<32x32xf32>, vector<8x32xf32> -> vector<8x32xf32>
    %153 = vector.broadcast %13 : f32 to vector<8x32xf32>
    %154 = arith.addf %152, %153 : vector<8x32xf32>
    %cst_89 = arith.constant 0.000000e+00 : f32
    %155 = vector.broadcast %cst_89 : f32 to vector<8x32xf32>
    %156 = arith.maximumf %154, %155 : vector<8x32xf32>
    %cst_90 = arith.constant dense<0.000000e+00> : vector<32x16xf32>
    %157 = tpu.matmul %151, %6, %cst_90 {dimension_numbers = #tpu.dot_dimension_numbers<[1], [0], [0], [1], [0, 0, 1, 1], [], []>} : vector<32x32xf32>, vector<32x16xf32>, vector<32x16xf32> -> vector<32x16xf32>
    %158 = vector.broadcast %9 : vector<1x16xf32> to vector<32x16xf32>
    %159 = arith.addf %157, %158 : vector<32x16xf32>
    %cst_91 = arith.constant dense<0.000000e+00> : vector<8x16xf32>
    %160 = tpu.matmul %156, %8, %cst_91 {dimension_numbers = #tpu.dot_dimension_numbers<[1], [0], [0], [1], [0, 0, 1, 1], [], []>} : vector<8x32xf32>, vector<32x16xf32>, vector<8x16xf32> -> vector<8x16xf32>
    %161 = vector.broadcast %10 : vector<1x16xf32> to vector<8x16xf32>
    %162 = arith.addf %160, %161 : vector<8x16xf32>
    %c0_92 = arith.constant 0 : index
    %c0_93 = arith.constant 0 : index
    %c0_94 = arith.constant 0 : index
    %c0_95 = arith.constant 0 : index
    %163 = vector.load %arg1[%c0_92, %c0_93, %c0_94, %c0_95] : memref<1x4x32x64xf32, #tpu.memory_space<vmem>>, vector<1x1x32x64xf32>
    %164 = vector.shape_cast %163 : vector<1x1x32x64xf32> to vector<32x64xf32>
    %165 = vector.extract_strided_slice %159 {offsets = [0, 0], sizes = [8, 16], strides = [1, 1]} : vector<32x16xf32> to vector<8x16xf32>
    %cst_96 = arith.constant dense<0.000000e+00> : vector<8x64xf32>
    %166 = tpu.matmul %165, %20, %cst_96 {dimension_numbers = #tpu.dot_dimension_numbers<[1], [0], [0], [1], [0, 0, 1, 1], [], []>} : vector<8x16xf32>, vector<16x64xf32>, vector<8x64xf32> -> vector<8x64xf32>
    %cst_97 = arith.constant dense<0xFF800000> : vector<64xf32>
    %167 = vector.multi_reduction <maximumf>, %166, %cst_97 [0] : vector<8x64xf32> to vector<64xf32>
    %168 = vector.shape_cast %167 : vector<64xf32> to vector<1x64xf32>
    %169 = vector.broadcast %168 : vector<1x64xf32> to vector<8x64xf32>
    %170 = arith.subf %166, %169 : vector<8x64xf32>
    %171 = math.exp %170 : vector<8x64xf32>
    %cst_98 = arith.constant dense<0.000000e+00> : vector<64xf32>
    %172 = vector.multi_reduction <add>, %171, %cst_98 [0] : vector<8x64xf32> to vector<64xf32>
    %173 = vector.shape_cast %172 : vector<64xf32> to vector<1x64xf32>
    %174 = tpu.reciprocal %173 {approx = true} : vector<1x64xf32> -> vector<1x64xf32>
    %175 = vector.broadcast %174 : vector<1x64xf32> to vector<8x64xf32>
    %176 = arith.mulf %171, %175 : vector<8x64xf32>
    %cst_99 = arith.constant dense<0.000000e+00> : vector<16x64xf32>
    %177 = tpu.matmul %162, %176, %cst_99 {dimension_numbers = #tpu.dot_dimension_numbers<[0], [0], [1], [1], [0, 1, 1, 1], [], []>} : vector<8x16xf32>, vector<8x64xf32>, vector<16x64xf32> -> vector<16x64xf32>
    %cst_100 = arith.constant dense<0.000000e+00> : vector<32x64xf32>
    %178 = tpu.matmul %11, %177, %cst_100 {dimension_numbers = #tpu.dot_dimension_numbers<[1], [0], [0], [1], [0, 0, 1, 1], [], []>} : vector<32x16xf32>, vector<16x64xf32>, vector<32x64xf32> -> vector<32x64xf32>
    %179 = vector.broadcast %12 : vector<32x1xf32> to vector<32x64xf32>
    %180 = arith.addf %178, %179 : vector<32x64xf32>
    %cst_101 = arith.constant 0.000000e+00 : f32
    %181 = vector.broadcast %cst_101 : f32 to vector<32x64xf32>
    %182 = arith.maximumf %180, %181 : vector<32x64xf32>
    %183 = arith.addf %164, %182 : vector<32x64xf32>
    %c0_102 = arith.constant 0 : index
    %c0_103 = arith.constant 0 : index
    %c0_104 = arith.constant 0 : index
    %c0_105 = arith.constant 0 : index
    %184 = vector.load %arg12[%c0_102, %c0_103, %c0_104, %c0_105] : memref<1x4x32x64xf32, #tpu.memory_space<vmem>>, vector<1x1x32x64xf32>
    %185 = vector.shape_cast %184 : vector<1x1x32x64xf32> to vector<32x64xf32>
    %186 = vector.shape_cast %183 : vector<32x64xf32> to vector<1x1x32x64xf32>
    tpu.vector_store %arg12[%c0_102, %c0_103, %c0_104, %c0_105], %186 {strides = array<i32>} : memref<1x4x32x64xf32, #tpu.memory_space<vmem>>, vector<1x1x32x64xf32>,
    %c0_106 = arith.constant 0 : index
    %c1_107 = arith.constant 1 : index
    %c0_108 = arith.constant 0 : index
    %c0_109 = arith.constant 0 : index
    %187 = vector.load %arg1[%c0_106, %c1_107, %c0_108, %c0_109] : memref<1x4x32x64xf32, #tpu.memory_space<vmem>>, vector<1x1x32x64xf32>
    %188 = vector.shape_cast %187 : vector<1x1x32x64xf32> to vector<32x64xf32>
    %189 = vector.extract_strided_slice %159 {offsets = [8, 0], sizes = [8, 16], strides = [1, 1]} : vector<32x16xf32> to vector<8x16xf32>
    %cst_110 = arith.constant dense<0.000000e+00> : vector<8x64xf32>
    %190 = tpu.matmul %189, %53, %cst_110 {dimension_numbers = #tpu.dot_dimension_numbers<[1], [0], [0], [1], [0, 0, 1, 1], [], []>} : vector<8x16xf32>, vector<16x64xf32>, vector<8x64xf32> -> vector<8x64xf32>
    %cst_111 = arith.constant dense<0xFF800000> : vector<64xf32>
    %191 = vector.multi_reduction <maximumf>, %190, %cst_111 [0] : vector<8x64xf32> to vector<64xf32>
    %192 = vector.shape_cast %191 : vector<64xf32> to vector<1x64xf32>
    %193 = vector.broadcast %192 : vector<1x64xf32> to vector<8x64xf32>
    %194 = arith.subf %190, %193 : vector<8x64xf32>
    %195 = math.exp %194 : vector<8x64xf32>
    %cst_112 = arith.constant dense<0.000000e+00> : vector<64xf32>
    %196 = vector.multi_reduction <add>, %195, %cst_112 [0] : vector<8x64xf32> to vector<64xf32>
    %197 = vector.shape_cast %196 : vector<64xf32> to vector<1x64xf32>
    %198 = tpu.reciprocal %197 {approx = true} : vector<1x64xf32> -> vector<1x64xf32>
    %199 = vector.broadcast %198 : vector<1x64xf32> to vector<8x64xf32>
    %200 = arith.mulf %195, %199 : vector<8x64xf32>
    %cst_113 = arith.constant dense<0.000000e+00> : vector<16x64xf32>
    %201 = tpu.matmul %162, %200, %cst_113 {dimension_numbers = #tpu.dot_dimension_numbers<[0], [0], [1], [1], [0, 1, 1, 1], [], []>} : vector<8x16xf32>, vector<8x64xf32>, vector<16x64xf32> -> vector<16x64xf32>
    %cst_114 = arith.constant dense<0.000000e+00> : vector<32x64xf32>
    %202 = tpu.matmul %11, %201, %cst_114 {dimension_numbers = #tpu.dot_dimension_numbers<[1], [0], [0], [1], [0, 0, 1, 1], [], []>} : vector<32x16xf32>, vector<16x64xf32>, vector<32x64xf32> -> vector<32x64xf32>
    %203 = vector.broadcast %12 : vector<32x1xf32> to vector<32x64xf32>
    %204 = arith.addf %202, %203 : vector<32x64xf32>
    %cst_115 = arith.constant 0.000000e+00 : f32
    %205 = vector.broadcast %cst_115 : f32 to vector<32x64xf32>
    %206 = arith.maximumf %204, %205 : vector<32x64xf32>
    %207 = arith.addf %188, %206 : vector<32x64xf32>
    %c0_116 = arith.constant 0 : index
    %c1_117 = arith.constant 1 : index
    %c0_118 = arith.constant 0 : index
    %c0_119 = arith.constant 0 : index
    %208 = vector.load %arg12[%c0_116, %c1_117, %c0_118, %c0_119] : memref<1x4x32x64xf32, #tpu.memory_space<vmem>>, vector<1x1x32x64xf32>
    %209 = vector.shape_cast %208 : vector<1x1x32x64xf32> to vector<32x64xf32>
    %210 = vector.shape_cast %207 : vector<32x64xf32> to vector<1x1x32x64xf32>
    tpu.vector_store %arg12[%c0_116, %c1_117, %c0_118, %c0_119], %210 {strides = array<i32>} : memref<1x4x32x64xf32, #tpu.memory_space<vmem>>, vector<1x1x32x64xf32>,
    %c0_120 = arith.constant 0 : index
    %c2_121 = arith.constant 2 : index
    %c0_122 = arith.constant 0 : index
    %c0_123 = arith.constant 0 : index
    %211 = vector.load %arg1[%c0_120, %c2_121, %c0_122, %c0_123] : memref<1x4x32x64xf32, #tpu.memory_space<vmem>>, vector<1x1x32x64xf32>
    %212 = vector.shape_cast %211 : vector<1x1x32x64xf32> to vector<32x64xf32>
    %213 = vector.extract_strided_slice %159 {offsets = [16, 0], sizes = [8, 16], strides = [1, 1]} : vector<32x16xf32> to vector<8x16xf32>
    %cst_124 = arith.constant dense<0.000000e+00> : vector<8x64xf32>
    %214 = tpu.matmul %213, %86, %cst_124 {dimension_numbers = #tpu.dot_dimension_numbers<[1], [0], [0], [1], [0, 0, 1, 1], [], []>} : vector<8x16xf32>, vector<16x64xf32>, vector<8x64xf32> -> vector<8x64xf32>
    %cst_125 = arith.constant dense<0xFF800000> : vector<64xf32>
    %215 = vector.multi_reduction <maximumf>, %214, %cst_125 [0] : vector<8x64xf32> to vector<64xf32>
    %216 = vector.shape_cast %215 : vector<64xf32> to vector<1x64xf32>
    %217 = vector.broadcast %216 : vector<1x64xf32> to vector<8x64xf32>
    %218 = arith.subf %214, %217 : vector<8x64xf32>
    %219 = math.exp %218 : vector<8x64xf32>
    %cst_126 = arith.constant dense<0.000000e+00> : vector<64xf32>
    %220 = vector.multi_reduction <add>, %219, %cst_126 [0] : vector<8x64xf32> to vector<64xf32>
    %221 = vector.shape_cast %220 : vector<64xf32> to vector<1x64xf32>
    %222 = tpu.reciprocal %221 {approx = true} : vector<1x64xf32> -> vector<1x64xf32>
    %223 = vector.broadcast %222 : vector<1x64xf32> to vector<8x64xf32>
    %224 = arith.mulf %219, %223 : vector<8x64xf32>
    %cst_127 = arith.constant dense<0.000000e+00> : vector<16x64xf32>
    %225 = tpu.matmul %162, %224, %cst_127 {dimension_numbers = #tpu.dot_dimension_numbers<[0], [0], [1], [1], [0, 1, 1, 1], [], []>} : vector<8x16xf32>, vector<8x64xf32>, vector<16x64xf32> -> vector<16x64xf32>
    %cst_128 = arith.constant dense<0.000000e+00> : vector<32x64xf32>
    %226 = tpu.matmul %11, %225, %cst_128 {dimension_numbers = #tpu.dot_dimension_numbers<[1], [0], [0], [1], [0, 0, 1, 1], [], []>} : vector<32x16xf32>, vector<16x64xf32>, vector<32x64xf32> -> vector<32x64xf32>
    %227 = vector.broadcast %12 : vector<32x1xf32> to vector<32x64xf32>
    %228 = arith.addf %226, %227 : vector<32x64xf32>
    %cst_129 = arith.constant 0.000000e+00 : f32
    %229 = vector.broadcast %cst_129 : f32 to vector<32x64xf32>
    %230 = arith.maximumf %228, %229 : vector<32x64xf32>
    %231 = arith.addf %212, %230 : vector<32x64xf32>
    %c0_130 = arith.constant 0 : index
    %c2_131 = arith.constant 2 : index
    %c0_132 = arith.constant 0 : index
    %c0_133 = arith.constant 0 : index
    %232 = vector.load %arg12[%c0_130, %c2_131, %c0_132, %c0_133] : memref<1x4x32x64xf32, #tpu.memory_space<vmem>>, vector<1x1x32x64xf32>
    %233 = vector.shape_cast %232 : vector<1x1x32x64xf32> to vector<32x64xf32>
    %234 = vector.shape_cast %231 : vector<32x64xf32> to vector<1x1x32x64xf32>
    tpu.vector_store %arg12[%c0_130, %c2_131, %c0_132, %c0_133], %234 {strides = array<i32>} : memref<1x4x32x64xf32, #tpu.memory_space<vmem>>, vector<1x1x32x64xf32>,
    %c0_134 = arith.constant 0 : index
    %c3_135 = arith.constant 3 : index
    %c0_136 = arith.constant 0 : index
    %c0_137 = arith.constant 0 : index
    %235 = vector.load %arg1[%c0_134, %c3_135, %c0_136, %c0_137] : memref<1x4x32x64xf32, #tpu.memory_space<vmem>>, vector<1x1x32x64xf32>
    %236 = vector.shape_cast %235 : vector<1x1x32x64xf32> to vector<32x64xf32>
    %237 = vector.extract_strided_slice %159 {offsets = [24, 0], sizes = [8, 16], strides = [1, 1]} : vector<32x16xf32> to vector<8x16xf32>
    %cst_138 = arith.constant dense<0.000000e+00> : vector<8x64xf32>
    %238 = tpu.matmul %237, %119, %cst_138 {dimension_numbers = #tpu.dot_dimension_numbers<[1], [0], [0], [1], [0, 0, 1, 1], [], []>} : vector<8x16xf32>, vector<16x64xf32>, vector<8x64xf32> -> vector<8x64xf32>
    %cst_139 = arith.constant dense<0xFF800000> : vector<64xf32>
    %239 = vector.multi_reduction <maximumf>, %238, %cst_139 [0] : vector<8x64xf32> to vector<64xf32>
    %240 = vector.shape_cast %239 : vector<64xf32> to vector<1x64xf32>
    %241 = vector.broadcast %240 : vector<1x64xf32> to vector<8x64xf32>
    %242 = arith.subf %238, %241 : vector<8x64xf32>
    %243 = math.exp %242 : vector<8x64xf32>
    %cst_140 = arith.constant dense<0.000000e+00> : vector<64xf32>
    %244 = vector.multi_reduction <add>, %243, %cst_140 [0] : vector<8x64xf32> to vector<64xf32>
    %245 = vector.shape_cast %244 : vector<64xf32> to vector<1x64xf32>
    %246 = tpu.reciprocal %245 {approx = true} : vector<1x64xf32> -> vector<1x64xf32>
    %247 = vector.broadcast %246 : vector<1x64xf32> to vector<8x64xf32>
    %248 = arith.mulf %243, %247 : vector<8x64xf32>
    %cst_141 = arith.constant dense<0.000000e+00> : vector<16x64xf32>
    %249 = tpu.matmul %162, %248, %cst_141 {dimension_numbers = #tpu.dot_dimension_numbers<[0], [0], [1], [1], [0, 1, 1, 1], [], []>} : vector<8x16xf32>, vector<8x64xf32>, vector<16x64xf32> -> vector<16x64xf32>
    %cst_142 = arith.constant dense<0.000000e+00> : vector<32x64xf32>
    %250 = tpu.matmul %11, %249, %cst_142 {dimension_numbers = #tpu.dot_dimension_numbers<[1], [0], [0], [1], [0, 0, 1, 1], [], []>} : vector<32x16xf32>, vector<16x64xf32>, vector<32x64xf32> -> vector<32x64xf32>
    %251 = vector.broadcast %12 : vector<32x1xf32> to vector<32x64xf32>
    %252 = arith.addf %250, %251 : vector<32x64xf32>
    %cst_143 = arith.constant 0.000000e+00 : f32
    %253 = vector.broadcast %cst_143 : f32 to vector<32x64xf32>
    %254 = arith.maximumf %252, %253 : vector<32x64xf32>
    %255 = arith.addf %236, %254 : vector<32x64xf32>
    %c0_144 = arith.constant 0 : index
    %c3_145 = arith.constant 3 : index
    %c0_146 = arith.constant 0 : index
    %c0_147 = arith.constant 0 : index
    %256 = vector.load %arg12[%c0_144, %c3_145, %c0_146, %c0_147] : memref<1x4x32x64xf32, #tpu.memory_space<vmem>>, vector<1x1x32x64xf32>
    %257 = vector.shape_cast %256 : vector<1x1x32x64xf32> to vector<32x64xf32>
    %258 = vector.shape_cast %255 : vector<32x64xf32> to vector<1x1x32x64xf32>
    tpu.vector_store %arg12[%c0_144, %c3_145, %c0_146, %c0_147], %258 {strides = array<i32>} : memref<1x4x32x64xf32, #tpu.memory_space<vmem>>, vector<1x1x32x64xf32>,
    return
  }
  func.func @transform_0(%arg0: i32) -> (i32, i32, i32, i32) {
    %c0_i32 = arith.constant 0 : i32
    %c0_i32_0 = arith.constant 0 : i32
    %c0_i32_1 = arith.constant 0 : i32
    %c0_i32_2 = arith.constant 0 : i32
    return %arg0, %c0_i32, %c0_i32_0, %c0_i32_1 : i32, i32, i32, i32
  }
  func.func @transform_1(%arg0: i32) -> (i32, i32) {
    %c0_i32 = arith.constant 0 : i32
    %c0_i32_0 = arith.constant 0 : i32
    %c0_i32_1 = arith.constant 0 : i32
    return %c0_i32, %c0_i32_0 : i32, i32
  }
  func.func @transform_2(%arg0: i32) -> (i32, i32) {
    %c0_i32 = arith.constant 0 : i32
    %c0_i32_0 = arith.constant 0 : i32
    %c0_i32_1 = arith.constant 0 : i32
    return %c0_i32, %c0_i32_0 : i32, i32
  }
  func.func @transform_3(%arg0: i32) -> (i32, i32) {
    %c0_i32 = arith.constant 0 : i32
    %c0_i32_0 = arith.constant 0 : i32
    %c0_i32_1 = arith.constant 0 : i32
    return %c0_i32, %c0_i32_0 : i32, i32
  }
  func.func @transform_4(%arg0: i32) -> (i32, i32) {
    %c0_i32 = arith.constant 0 : i32
    %c0_i32_0 = arith.constant 0 : i32
    %c0_i32_1 = arith.constant 0 : i32
    return %c0_i32, %c0_i32_0 : i32, i32
  }
  func.func @transform_5(%arg0: i32) -> (i32, i32) {
    %c0_i32 = arith.constant 0 : i32
    %c0_i32_0 = arith.constant 0 : i32
    %c0_i32_1 = arith.constant 0 : i32
    return %c0_i32, %c0_i32_0 : i32, i32
  }
  func.func @transform_6(%arg0: i32) -> (i32, i32, i32) {
    %c0_i32 = arith.constant 0 : i32
    %c0_i32_0 = arith.constant 0 : i32
    %c0_i32_1 = arith.constant 0 : i32
    %c0_i32_2 = arith.constant 0 : i32
    return %c0_i32, %c0_i32_0, %c0_i32_1 : i32, i32, i32
  }
  func.func @transform_7(%arg0: i32) -> (i32, i32) {
    %c0_i32 = arith.constant 0 : i32
    %c0_i32_0 = arith.constant 0 : i32
    %c0_i32_1 = arith.constant 0 : i32
    return %c0_i32, %c0_i32_0 : i32, i32
  }
  func.func @transform_8(%arg0: i32) -> (i32, i32) {
    %c0_i32 = arith.constant 0 : i32
    %c0_i32_0 = arith.constant 0 : i32
    %c0_i32_1 = arith.constant 0 : i32
    return %c0_i32, %c0_i32_0 : i32, i32
  }
  func.func @transform_9(%arg0: i32) -> (i32, i32) {
    %c0_i32 = arith.constant 0 : i32
    %c0_i32_0 = arith.constant 0 : i32
    %c0_i32_1 = arith.constant 0 : i32
    return %c0_i32, %c0_i32_0 : i32, i32
  }
  func.func @transform_10(%arg0: i32) -> (i32, i32) {
    %c0_i32 = arith.constant 0 : i32
    %c0_i32_0 = arith.constant 0 : i32
    %c0_i32_1 = arith.constant 0 : i32
    return %c0_i32, %c0_i32_0 : i32, i32
  }
  func.func @transform_11(%arg0: i32) -> (i32, i32, i32, i32) {
    %c0_i32 = arith.constant 0 : i32
    %c0_i32_0 = arith.constant 0 : i32
    %c0_i32_1 = arith.constant 0 : i32
    %c0_i32_2 = arith.constant 0 : i32
    return %arg0, %c0_i32, %c0_i32_0, %c0_i32_1 : i32, i32, i32, i32
  }
  func.func @transform_12(%arg0: i32) -> (i32, i32, i32) {
    %c0_i32 = arith.constant 0 : i32
    %c0_i32_0 = arith.constant 0 : i32
    %c0_i32_1 = arith.constant 0 : i32
    return %arg0, %c0_i32, %c0_i32_0 : i32, i32, i32
  }
}

</mosaic_0001>

<llo_original>
// kernel: tpu_custom_call.1
$region0: #{tpu_custom_call.1}
  #allocation0 [shape = 'u32[]', space=smem, size = 0x4, offset = 0x4, fixed_abs, tag = 'smem constant byte address 0x4 - core index']
  #allocation1 [shape = 'u32[144,128]{1,0:T(1,128)}', space=vmem, size = 0x12000, scoped, tag = 'internal scratch']
  #allocation2 [shape = 'f32[32,32]{1,0:T(8,128)}', space=vmem, size = 0x4000, scoped, tag = 'scratch operand']
  #allocation3 [shape = 'f32[1,1]{1,0:T(1,128)S(6)}', space=smem, size = 0x200, scoped, tag = 'scoped memory for tpu_custom_call.1']
  %s0 = inlined_call_operand.hbm [shape: f32[2,4,32,64], index: 0, kind: input, shape index: {}]
  %s1 = inlined_call_operand.vmem [shape: f32[24,32], index: 1, kind: input, shape index: {}]
  %s2 = inlined_call_operand.vmem [shape: f32[24,1], index: 2, kind: input, shape index: {}]
  %s3 = inlined_call_operand.vmem [shape: f32[32,32], index: 3, kind: input, shape index: {}]
  %s4 = inlined_call_operand.vmem [shape: f32[8,32], index: 4, kind: input, shape index: {}]
  %s5 = inlined_call_operand.vmem [shape: f32[32,32], index: 5, kind: input, shape index: {}]
  %s6 = inlined_call_operand.vmem [shape: f32[2,32,16], index: 6, kind: input, shape index: {}]
  %s7 = inlined_call_operand.vmem [shape: f32[2,16], index: 7, kind: input, shape index: {}]
  %s8 = inlined_call_operand.vmem [shape: f32[32,16], index: 8, kind: input, shape index: {}]
  %s9 = inlined_call_operand.vmem [shape: f32[32,1], index: 9, kind: input, shape index: {}]
  %s10 = inlined_call_operand.<no memory space> [shape: f32[1,1], index: 10, kind: input, shape index: {}]
  %s11 = inlined_call_operand.hbm [shape: f32[2,4,32,64], index: 11, kind: output, shape index: {0}]
  %s12 = inlined_call_operand.vmem [shape: f32[2,8,4], index: 12, kind: output, shape index: {1}]
  %13 = xla_tuple %s11, %s12
  %s14 = sld [smem:[#allocation0]]
  $region89: #{tpu_custom_call.1} parent=0
    _
  %s16 = ssub.s32 1, %s14
  %s17 = scalar_select 0, %s16, %s14
  %18 = sst [smem:[#allocation3]] %s10
  $region1: #{tpu_custom_call.1} parent=0
    #allocation4 [shape = 'u8[131072]{0}', space=vmem, size = 0x20000, scoped, tag = 'input window, operand 0']
    #allocation5 [shape = 's32[2]{0}', space=sflag, size = 0x8, scoped, tag = 'scoped memory for tpu_custom_call.1']
    #allocation6 [shape = 's32[2]{0}', space=sflag, size = 0x8, scoped, tag = 'scoped memory for tpu_custom_call.1']
    #allocation7 [shape = 'u8[131072]{0}', space=vmem, size = 0x20000, scoped, tag = 'output window, operand 0']
    %19 = vsyncpa [#allocation5], 0
    %s20 = scalar_lea.sflag [#allocation5], 1
    %21 = vsyncpa %s20, 0
    %22 = vsyncpa [#allocation6], 0
    %s23 = scalar_lea.sflag [#allocation6], 1
    %24 = vsyncpa %s23, 0
    loop: start=0, step=1, limit=4
    $region2: #{tpu_custom_call.1} parent=1 // loop_pre_header
      _
    $region3: #{tpu_custom_call.1} parent=1 // loop_header
      %s26 = sphi 0, %s30
      %p27 = scmp.ge.s32.totalorder %s26, 4
      %s36 = sphi 0, %s38
      %s39 = sphi 0, %s36
      %s40 = sphi 0, %s39
      %s56 = sphi 0, %s40
      %s60 = sphi 0, %s60
      %s62 = sphi 0, %s60
      %s63 = sphi 0, %s62
      %s77 = sphi 0, %s63
      %s81 = sphi 0, %s81
      %s83 = sphi 0, %s81
      %s84 = sphi 0, %s83
      %s98 = sphi 0, %s84
      %s102 = sphi 0, %s102
      %s104 = sphi 0, %s102
      %s105 = sphi 0, %s104
      %s119 = sphi 0, %s105
      %s123 = sphi 0, %s123
      %s125 = sphi 0, %s123
      %s126 = sphi 0, %s125
      %s140 = sphi 0, %s126
      %s144 = sphi 0, %s144
      %s146 = sphi 0, %s144
      %s147 = sphi 0, %s146
      %s161 = sphi 0, %s147
      %s165 = sphi 0, %s165
      %s167 = sphi 0, %s165
      %s168 = sphi 0, %s167
      %s182 = sphi 0, %s168
      %s186 = sphi 0, %s186
      %s188 = sphi 0, %s186
      %s189 = sphi 0, %s188
      %s203 = sphi 0, %s189
      %s207 = sphi 0, %s207
      %s209 = sphi 0, %s207
      %s210 = sphi 0, %s209
      %s224 = sphi 0, %s210
      %s228 = sphi 0, %s228
      %s230 = sphi 0, %s228
      %s231 = sphi 0, %s230
      %s245 = sphi 0, %s231
      %s249 = sphi 0, %s249
      %s251 = sphi 0, %s249
      %s252 = sphi 0, %s251
      %s266 = sphi 0, %s252
      %s272 = sphi 0, %s274
      %s275 = sphi 0, %s272
      %s276 = sphi 0, %s275
      %s292 = sphi 0, %s276
      %s298 = sphi 0, %s300
      %s301 = sphi 0, %s298
      %s302 = sphi 0, %s301
      %s318 = sphi 0, %s302
    $region4: #{tpu_custom_call.1} parent=1 // loop_header_branch
      %29 = sbr.rel (%p27) target = $region8
    $region5: #{tpu_custom_call.1} parent=1 // loop_body
      %s31 = ssub.s32 %s26, 1
      %s32 = ssub.s32 %s26, 2
      %s33 = sadd.s32 %s26, 1
      %s34 = ssub.s32 %s26, %s33
      %p35 = scmp.eq.s32.totalorder %s34, 0
      %s37 = sadd.s32 %s36, 1
      %s38 = scalar_select %p35, %s36, %s37
      %p41 = pneg %p35
      %p42 = scmp.eq.s32.totalorder %s26, 1
      %p43 = por %p41, %p42
      %p44 = scmp.ne.s32.totalorder %s36, %s39
      %p45 = scmp.eq.s32.totalorder %s26, 0
      %p46 = por %p44, %p45
      %p47 = scmp.ne.s32.totalorder %s36, %s39
      %p48 = scmp.eq.s32.totalorder %s31, 1
      %p49 = por %p47, %p48
      %p50 = scmp.ne.s32.totalorder %s39, %s40
      %p51 = scmp.eq.s32.totalorder %s31, 0
      %p52 = por %p50, %p51
      %p53 = scmp.ne.s32.totalorder %s39, %s40
      %p54 = scmp.eq.s32.totalorder %s32, 1
      %p55 = por %p53, %p54
      %p57 = scmp.ne.s32.totalorder %s40, %s56
      %p58 = scmp.eq.s32.totalorder %s32, 0
      %p59 = por %p57, %p58
      %s61 = sadd.s32 %s60, 1
      %p64 = scmp.eq.s32.totalorder %s26, 1
      %p65 = scmp.ne.s32.totalorder %s60, %s62
      %p66 = scmp.eq.s32.totalorder %s26, 0
      %p67 = por %p65, %p66
      %p68 = scmp.ne.s32.totalorder %s60, %s62
      %p69 = scmp.eq.s32.totalorder %s31, 1
      %p70 = por %p68, %p69
      %p71 = scmp.ne.s32.totalorder %s62, %s63
      %p72 = scmp.eq.s32.totalorder %s31, 0
      %p73 = por %p71, %p72
      %p74 = scmp.ne.s32.totalorder %s62, %s63
      %p75 = scmp.eq.s32.totalorder %s32, 1
      %p76 = por %p74, %p75
      %p78 = scmp.ne.s32.totalorder %s63, %s77
      %p79 = scmp.eq.s32.totalorder %s32, 0
      %p80 = por %p78, %p79
      %s82 = sadd.s32 %s81, 1
      %p85 = scmp.eq.s32.totalorder %s26, 1
      %p86 = scmp.ne.s32.totalorder %s81, %s83
      %p87 = scmp.eq.s32.totalorder %s26, 0
      %p88 = por %p86, %p87
      %p89 = scmp.ne.s32.totalorder %s81, %s83
      %p90 = scmp.eq.s32.totalorder %s31, 1
      %p91 = por %p89, %p90
      %p92 = scmp.ne.s32.totalorder %s83, %s84
      %p93 = scmp.eq.s32.totalorder %s31, 0
      %p94 = por %p92, %p93
      %p95 = scmp.ne.s32.totalorder %s83, %s84
      %p96 = scmp.eq.s32.totalorder %s32, 1
      %p97 = por %p95, %p96
      %p99 = scmp.ne.s32.totalorder %s84, %s98
      %p100 = scmp.eq.s32.totalorder %s32, 0
      %p101 = por %p99, %p100
      %s103 = sadd.s32 %s102, 1
      %p106 = scmp.eq.s32.totalorder %s26, 1
      %p107 = scmp.ne.s32.totalorder %s102, %s104
      %p108 = scmp.eq.s32.totalorder %s26, 0
      %p109 = por %p107, %p108
      %p110 = scmp.ne.s32.totalorder %s102, %s104
      %p111 = scmp.eq.s32.totalorder %s31, 1
      %p112 = por %p110, %p111
      %p113 = scmp.ne.s32.totalorder %s104, %s105
      %p114 = scmp.eq.s32.totalorder %s31, 0
      %p115 = por %p113, %p114
      %p116 = scmp.ne.s32.totalorder %s104, %s105
      %p117 = scmp.eq.s32.totalorder %s32, 1
      %p118 = por %p116, %p117
      %p120 = scmp.ne.s32.totalorder %s105, %s119
      %p121 = scmp.eq.s32.totalorder %s32, 0
      %p122 = por %p120, %p121
      %s124 = sadd.s32 %s123, 1
      %p127 = scmp.eq.s32.totalorder %s26, 1
      %p128 = scmp.ne.s32.totalorder %s123, %s125
      %p129 = scmp.eq.s32.totalorder %s26, 0
      %p130 = por %p128, %p129
      %p131 = scmp.ne.s32.totalorder %s123, %s125
      %p132 = scmp.eq.s32.totalorder %s31, 1
      %p133 = por %p131, %p132
      %p134 = scmp.ne.s32.totalorder %s125, %s126
      %p135 = scmp.eq.s32.totalorder %s31, 0
      %p136 = por %p134, %p135
      %p137 = scmp.ne.s32.totalorder %s125, %s126
      %p138 = scmp.eq.s32.totalorder %s32, 1
      %p139 = por %p137, %p138
      %p141 = scmp.ne.s32.totalorder %s126, %s140
      %p142 = scmp.eq.s32.totalorder %s32, 0
      %p143 = por %p141, %p142
      %s145 = sadd.s32 %s144, 1
      %p148 = scmp.eq.s32.totalorder %s26, 1
      %p149 = scmp.ne.s32.totalorder %s144, %s146
      %p150 = scmp.eq.s32.totalorder %s26, 0
      %p151 = por %p149, %p150
      %p152 = scmp.ne.s32.totalorder %s144, %s146
      %p153 = scmp.eq.s32.totalorder %s31, 1
      %p154 = por %p152, %p153
      %p155 = scmp.ne.s32.totalorder %s146, %s147
      %p156 = scmp.eq.s32.totalorder %s31, 0
      %p157 = por %p155, %p156
      %p158 = scmp.ne.s32.totalorder %s146, %s147
      %p159 = scmp.eq.s32.totalorder %s32, 1
      %p160 = por %p158, %p159
      %p162 = scmp.ne.s32.totalorder %s147, %s161
      %p163 = scmp.eq.s32.totalorder %s32, 0
      %p164 = por %p162, %p163
      %s166 = sadd.s32 %s165, 1
      %p169 = scmp.eq.s32.totalorder %s26, 1
      %p170 = scmp.ne.s32.totalorder %s165, %s167
      %p171 = scmp.eq.s32.totalorder %s26, 0
      %p172 = por %p170, %p171
      %p173 = scmp.ne.s32.totalorder %s165, %s167
      %p174 = scmp.eq.s32.totalorder %s31, 1
      %p175 = por %p173, %p174
      %p176 = scmp.ne.s32.totalorder %s167, %s168
      %p177 = scmp.eq.s32.totalorder %s31, 0
      %p178 = por %p176, %p177
      %p179 = scmp.ne.s32.totalorder %s167, %s168
      %p180 = scmp.eq.s32.totalorder %s32, 1
      %p181 = por %p179, %p180
      %p183 = scmp.ne.s32.totalorder %s168, %s182
      %p184 = scmp.eq.s32.totalorder %s32, 0
      %p185 = por %p183, %p184
      %s187 = sadd.s32 %s186, 1
      %p190 = scmp.eq.s32.totalorder %s26, 1
      %p191 = scmp.ne.s32.totalorder %s186, %s188
      %p192 = scmp.eq.s32.totalorder %s26, 0
      %p193 = por %p191, %p192
      %p194 = scmp.ne.s32.totalorder %s186, %s188
      %p195 = scmp.eq.s32.totalorder %s31, 1
      %p196 = por %p194, %p195
      %p197 = scmp.ne.s32.totalorder %s188, %s189
      %p198 = scmp.eq.s32.totalorder %s31, 0
      %p199 = por %p197, %p198
      %p200 = scmp.ne.s32.totalorder %s188, %s189
      %p201 = scmp.eq.s32.totalorder %s32, 1
      %p202 = por %p200, %p201
      %p204 = scmp.ne.s32.totalorder %s189, %s203
      %p205 = scmp.eq.s32.totalorder %s32, 0
      %p206 = por %p204, %p205
      %s208 = sadd.s32 %s207, 1
      %p211 = scmp.eq.s32.totalorder %s26, 1
      %p212 = scmp.ne.s32.totalorder %s207, %s209
      %p213 = scmp.eq.s32.totalorder %s26, 0
      %p214 = por %p212, %p213
      %p215 = scmp.ne.s32.totalorder %s207, %s209
      %p216 = scmp.eq.s32.totalorder %s31, 1
      %p217 = por %p215, %p216
      %p218 = scmp.ne.s32.totalorder %s209, %s210
      %p219 = scmp.eq.s32.totalorder %s31, 0
      %p220 = por %p218, %p219
      %p221 = scmp.ne.s32.totalorder %s209, %s210
      %p222 = scmp.eq.s32.totalorder %s32, 1
      %p223 = por %p221, %p222
      %p225 = scmp.ne.s32.totalorder %s210, %s224
      %p226 = scmp.eq.s32.totalorder %s32, 0
      %p227 = por %p225, %p226
      %s229 = sadd.s32 %s228, 1
      %p232 = scmp.eq.s32.totalorder %s26, 1
      %p233 = scmp.ne.s32.totalorder %s228, %s230
      %p234 = scmp.eq.s32.totalorder %s26, 0
      %p235 = por %p233, %p234
      %p236 = scmp.ne.s32.totalorder %s228, %s230
      %p237 = scmp.eq.s32.totalorder %s31, 1
      %p238 = por %p236, %p237
      %p239 = scmp.ne.s32.totalorder %s230, %s231
      %p240 = scmp.eq.s32.totalorder %s31, 0
      %p241 = por %p239, %p240
      %p242 = scmp.ne.s32.totalorder %s230, %s231
      %p243 = scmp.eq.s32.totalorder %s32, 1
      %p244 = por %p242, %p243
      %p246 = scmp.ne.s32.totalorder %s231, %s245
      %p247 = scmp.eq.s32.totalorder %s32, 0
      %p248 = por %p246, %p247
      %s250 = sadd.s32 %s249, 1
      %p253 = scmp.eq.s32.totalorder %s26, 1
      %p254 = scmp.ne.s32.totalorder %s249, %s251
      %p255 = scmp.eq.s32.totalorder %s26, 0
      %p256 = por %p254, %p255
      %p257 = scmp.ne.s32.totalorder %s249, %s251
      %p258 = scmp.eq.s32.totalorder %s31, 1
      %p259 = por %p257, %p258
      %p260 = scmp.ne.s32.totalorder %s251, %s252
      %p261 = scmp.eq.s32.totalorder %s31, 0
      %p262 = por %p260, %p261
      %p263 = scmp.ne.s32.totalorder %s251, %s252
      %p264 = scmp.eq.s32.totalorder %s32, 1
      %p265 = por %p263, %p264
      %p267 = scmp.ne.s32.totalorder %s252, %s266
      %p268 = scmp.eq.s32.totalorder %s32, 0
      %p269 = por %p267, %p268
      %s270 = ssub.s32 %s26, %s33
      %p271 = scmp.eq.s32.totalorder %s270, 0
      %s273 = sadd.s32 %s272, 1
      %s274 = scalar_select %p271, %s272, %s273
      %p277 = pneg %p271
      %p278 = scmp.eq.s32.totalorder %s26, 1
      %p279 = por %p277, %p278
      %p280 = scmp.ne.s32.totalorder %s272, %s275
      %p281 = scmp.eq.s32.totalorder %s26, 0
      %p282 = por %p280, %p281
      %p283 = scmp.ne.s32.totalorder %s272, %s275
      %p284 = scmp.eq.s32.totalorder %s31, 1
      %p285 = por %p283, %p284
      %p286 = scmp.ne.s32.totalorder %s275, %s276
      %p287 = scmp.eq.s32.totalorder %s31, 0
      %p288 = por %p286, %p287
      %p289 = scmp.ne.s32.totalorder %s275, %s276
      %p290 = scmp.eq.s32.totalorder %s32, 1
      %p291 = por %p289, %p290
      %p293 = scmp.ne.s32.totalorder %s276, %s292
      %p294 = scmp.eq.s32.totalorder %s32, 0
      %p295 = por %p293, %p294
      %s296 = ssub.s32 %s26, %s33
      %p297 = scmp.eq.s32.totalorder %s296, 0
      %s299 = sadd.s32 %s298, 1
      %s300 = scalar_select %p297, %s298, %s299
      %p303 = pneg %p297
      %p304 = scmp.eq.s32.totalorder %s26, 1
      %p305 = por %p303, %p304
      %p306 = scmp.ne.s32.totalorder %s298, %s301
      %p307 = scmp.eq.s32.totalorder %s26, 0
      %p308 = por %p306, %p307
      %p309 = scmp.ne.s32.totalorder %s298, %s301
      %p310 = scmp.eq.s32.totalorder %s31, 1
      %p311 = por %p309, %p310
      %p312 = scmp.ne.s32.totalorder %s301, %s302
      %p313 = scmp.eq.s32.totalorder %s31, 0
      %p314 = por %p312, %p313
      %p315 = scmp.ne.s32.totalorder %s301, %s302
      %p316 = scmp.eq.s32.totalorder %s32, 1
      %p317 = por %p315, %p316
      %p319 = scmp.ne.s32.totalorder %s302, %s318
      %p320 = scmp.eq.s32.totalorder %s32, 0
      %p321 = por %p319, %p320
      %p322 = scmp.le.s32.totalorder 1, %s26
      %p323 = scmp.lt.s32.totalorder %s26, 3
      %p324 = pnand %p322, %p323
      %p325 = pneg %p324
      // Predicated region
      $region9: #{tpu_custom_call.1} parent=5 // pred_check
        _
      $region10: #{tpu_custom_call.1} parent=5 // pred_check_branch
        %327 = sbr.rel (%p324) target = $region12
      $region11: #{tpu_custom_call.1} parent=5 // pred_region
        %s328 = ssub.s32 %s26, 1
        // Predicated region
        $region13: #{tpu_custom_call.1} parent=11 // pred_check
          %p329 = pneg %p73
        $region14: #{tpu_custom_call.1} parent=11 // pred_check_branch
          %331 = sbr.rel (%p329) target = $region16
        $region15: #{tpu_custom_call.1} parent=11 // pred_region
          _
        $region16: #{tpu_custom_call.1} parent=11 // pred_fallthru
          _
        // Predicated region
        $region17: #{tpu_custom_call.1} parent=11 // pred_check
          %p332 = pneg %p94
        $region18: #{tpu_custom_call.1} parent=11 // pred_check_branch
          %334 = sbr.rel (%p332) target = $region20
        $region19: #{tpu_custom_call.1} parent=11 // pred_region
          _
        $region20: #{tpu_custom_call.1} parent=11 // pred_fallthru
          _
        // Predicated region
        $region21: #{tpu_custom_call.1} parent=11 // pred_check
          %p335 = pneg %p115
        $region22: #{tpu_custom_call.1} parent=11 // pred_check_branch
          %337 = sbr.rel (%p335) target = $region24
        $region23: #{tpu_custom_call.1} parent=11 // pred_region
          _
        $region24: #{tpu_custom_call.1} parent=11 // pred_fallthru
          _
        // Predicated region
        $region25: #{tpu_custom_call.1} parent=11 // pred_check
          %p338 = pneg %p136
        $region26: #{tpu_custom_call.1} parent=11 // pred_check_branch
          %340 = sbr.rel (%p338) target = $region28
        $region27: #{tpu_custom_call.1} parent=11 // pred_region
          _
        $region28: #{tpu_custom_call.1} parent=11 // pred_fallthru
          _
        // Predicated region
        $region29: #{tpu_custom_call.1} parent=11 // pred_check
          %p341 = pneg %p157
        $region30: #{tpu_custom_call.1} parent=11 // pred_check_branch
          %343 = sbr.rel (%p341) target = $region32
        $region31: #{tpu_custom_call.1} parent=11 // pred_region
          _
        $region32: #{tpu_custom_call.1} parent=11 // pred_fallthru
          _
        // Predicated region
        $region33: #{tpu_custom_call.1} parent=11 // pred_check
          %p344 = pneg %p178
        $region34: #{tpu_custom_call.1} parent=11 // pred_check_branch
          %346 = sbr.rel (%p344) target = $region36
        $region35: #{tpu_custom_call.1} parent=11 // pred_region
          _
        $region36: #{tpu_custom_call.1} parent=11 // pred_fallthru
          _
        // Predicated region
        $region37: #{tpu_custom_call.1} parent=11 // pred_check
          %p347 = pneg %p199
        $region38: #{tpu_custom_call.1} parent=11 // pred_check_branch
          %349 = sbr.rel (%p347) target = $region40
        $region39: #{tpu_custom_call.1} parent=11 // pred_region
          _
        $region40: #{tpu_custom_call.1} parent=11 // pred_fallthru
          _
        // Predicated region
        $region41: #{tpu_custom_call.1} parent=11 // pred_check
          %p350 = pneg %p220
        $region42: #{tpu_custom_call.1} parent=11 // pred_check_branch
          %352 = sbr.rel (%p350) target = $region44
        $region43: #{tpu_custom_call.1} parent=11 // pred_region
          _
        $region44: #{tpu_custom_call.1} parent=11 // pred_fallthru
          _
        // Predicated region
        $region45: #{tpu_custom_call.1} parent=11 // pred_check
          %p353 = pneg %p241
        $region46: #{tpu_custom_call.1} parent=11 // pred_check_branch
          %355 = sbr.rel (%p353) target = $region48
        $region47: #{tpu_custom_call.1} parent=11 // pred_region
          _
        $region48: #{tpu_custom_call.1} parent=11 // pred_fallthru
          _
        // Predicated region
        $region49: #{tpu_custom_call.1} parent=11 // pred_check
          %p356 = pneg %p262
        $region50: #{tpu_custom_call.1} parent=11 // pred_check_branch
          %358 = sbr.rel (%p356) target = $region52
        $region51: #{tpu_custom_call.1} parent=11 // pred_region
          _
        $region52: #{tpu_custom_call.1} parent=11 // pred_fallthru
          _
      $region12: #{tpu_custom_call.1} parent=5 // pred_fallthru
        _
      %p359 = scmp.lt.s32.totalorder %s26, 2
      // Predicated region
      $region53: #{tpu_custom_call.1} parent=5 // pred_check
        %p360 = pneg %p359
      $region54: #{tpu_custom_call.1} parent=5 // pred_check_branch
        %362 = sbr.rel (%p360) target = $region56
      $region55: #{tpu_custom_call.1} parent=5 // pred_region
        // Predicated region
        $region57: #{tpu_custom_call.1} parent=55 // pred_check
          %p363 = pneg %p46
        $region58: #{tpu_custom_call.1} parent=55 // pred_check_branch
          %365 = sbr.rel (%p363) target = $region60
        $region59: #{tpu_custom_call.1} parent=55 // pred_region
          %s366 = sand.u32 %s36, 1
          %s367 = scalar_lea.sflag [#allocation5], %s366
          %s368 = sand.u32 %s36, 1
          %s369 = smul.addr %s368, 128
          %s370 = scalar_lea.vmem [#allocation4], %s369
          %s372 = ssub.s32 2048, 2048
          %373 = vsyncadd %s367, %s372
          %s374 = smul.addr %s26, 16
          %s375 = smul.addr %s374, 128
          %s376 = scalar_lea.hbm %s0, %s375
          %s377 = sshll.u32 %s370, 4
          %s378 = int_to_ptr.vmem [resolvable:$true] %s377
          %383 = dma.hbm_to_vmem [thread:$0]  %s376, 2048, %s378, %s367, 128, 128, 8
        $region60: #{tpu_custom_call.1} parent=55 // pred_fallthru
          _
      $region56: #{tpu_custom_call.1} parent=5 // pred_fallthru
        _
      %p384 = scmp.le.s32.totalorder 1, %s26
      %p385 = scmp.lt.s32.totalorder %s26, 3
      %p386 = pnand %p384, %p385
      %p387 = pneg %p386
      // Predicated region
      $region61: #{tpu_custom_call.1} parent=5 // pred_check
        _
      $region62: #{tpu_custom_call.1} parent=5 // pred_check_branch
        %389 = sbr.rel (%p386) target = $region64
      $region63: #{tpu_custom_call.1} parent=5 // pred_region
        %s390 = ssub.s32 %s26, 1
        %s391 = sand.u32 %s39, 1
        %s392 = scalar_lea.sflag [#allocation5], %s391
        %s393 = sand.u32 %s39, 1
        %s394 = smul.addr %s393, 128
        %s395 = scalar_lea.vmem [#allocation4], %s394
        // Predicated region
        $region65: #{tpu_custom_call.1} parent=63 // pred_check
          %p396 = pneg %p52
        $region66: #{tpu_custom_call.1} parent=63 // pred_check_branch
          %398 = sbr.rel (%p396) target = $region68
        $region67: #{tpu_custom_call.1} parent=63 // pred_region
          %399 = dma.done %s392, 2048
        $region68: #{tpu_custom_call.1} parent=63 // pred_fallthru
          _
        %s400 = sand.u32 %s39, 1
        %s401 = scalar_lea.sflag [#allocation5], %s400
        %s402 = sand.u32 %s39, 1
        %s403 = smul.addr %s402, 128
        %s404 = scalar_lea.vmem [#allocation4], %s403
        %p405 = pneg %p52
        %p406 = pneg %p49
        %p407 = pneg %p73
        %p408 = pneg %p70
        %p409 = pneg %p94
        %p410 = pneg %p91
        %p411 = pneg %p115
        %p412 = pneg %p112
        %p413 = pneg %p136
        %p414 = pneg %p133
        %p415 = pneg %p157
        %p416 = pneg %p154
        %p417 = pneg %p178
        %p418 = pneg %p175
        %p419 = pneg %p199
        %p420 = pneg %p196
        %p421 = pneg %p220
        %p422 = pneg %p217
        %p423 = pneg %p241
        %p424 = pneg %p238
        %p425 = pneg %p262
        %p426 = pneg %p259
        %p427 = pneg %p288
        %p428 = pneg %p285
        %s429 = sand.u32 %s275, 1
        %s430 = scalar_lea.sflag [#allocation6], %s429
        %s431 = sand.u32 %s275, 1
        %s432 = smul.addr %s431, 128
        %s433 = scalar_lea.vmem [#allocation7], %s432
        %p434 = pneg %p314
        %p435 = pneg %p311
        %p436 = scmp.lt.s32.totalorder %s31, 1
        %s437 = scalar_select %p436, %s31, 1
        %s438 = smul.addr %s437, 8
        %s439 = scalar_lea.vmem %s12, %s438
        %p440 = scmp.lt.s32.totalorder %s31, 1
        %s441 = scalar_select %p440, %s31, 1
        %s442 = smul.addr %s441, 8
        %s443 = scalar_lea.vmem %s12, %s442
        %v444 = vld [vmem:[%s1] sm:$0xff]
        %v445 = vld [vmem:[%s1 + $0x8] sm:$0xff]
        %v446 = vld [vmem:[%s1 + $0x10] sm:$0xff]
        %v447 = vld [vmem:[%s2] sm:$0xff]
        %v448 = vld [vmem:[%s2 + $0x8] sm:$0xff]
        %v449 = vld [vmem:[%s2 + $0x10] sm:$0xff]
        %v450 = vld [vmem:[%s3] sm:$0xff]
        %v451 = vld [vmem:[%s3 + $0x8] sm:$0xff]
        %v452 = vld [vmem:[%s3 + $0x10] sm:$0xff]
        %v453 = vld [vmem:[%s3 + $0x18] sm:$0xff]
        %v454 = vld [vmem:[%s4] sm:$0xff]
        %v455 = vld [vmem:[%s5] sm:$0xff]
        %v456 = vld [vmem:[%s5 + $0x8] sm:$0xff]
        %v457 = vld [vmem:[%s5 + $0x10] sm:$0xff]
        %v458 = vld [vmem:[%s5 + $0x18] sm:$0xff]
        %v459 = vld [vmem:[%s6] sm:$0xff]
        %v460 = vld [vmem:[%s6 + $0x8] sm:$0xff]
        %v461 = vld [vmem:[%s6 + $0x10] sm:$0xff]
        %v462 = vld [vmem:[%s6 + $0x18] sm:$0xff]
        %s463 = scalar_lea.vmem %s6, 32
        %v464 = vld [vmem:[%s463] sm:$0xff]
        %v465 = vld [vmem:[%s463 + $0x8] sm:$0xff]
        %v466 = vld [vmem:[%s463 + $0x10] sm:$0xff]
        %v467 = vld [vmem:[%s463 + $0x18] sm:$0xff]
        %v468 = vld [vmem:[%s7] sm:$0x1]
        %v469 = vld [vmem:[%s7 + $0x1] sm:$0x1]
        %v470 = vld [vmem:[%s8] sm:$0xff]
        %v471 = vld [vmem:[%s8 + $0x8] sm:$0xff]
        %v472 = vld [vmem:[%s8 + $0x10] sm:$0xff]
        %v473 = vld [vmem:[%s8 + $0x18] sm:$0xff]
        %v474 = vld [vmem:[%s9] sm:$0xff]
        %v475 = vld [vmem:[%s9 + $0x8] sm:$0xff]
        %v476 = vld [vmem:[%s9 + $0x10] sm:$0xff]
        %v477 = vld [vmem:[%s9 + $0x18] sm:$0xff]
        %s478 = sld [smem:[#allocation3]]
        %v479 = vld [vmem:[%s395] sm:$0xff]
        %v480 = vld [vmem:[%s395 + $0x8] sm:$0xff]
        %v481 = vld [vmem:[%s395 + $0x10] sm:$0xff]
        %v482 = vld [vmem:[%s395 + $0x18] sm:$0xff]
        %484 = vset.pattern.permute.xlu0 0
        %485 = vperm.xlu0 %484, %v447
        %v486 = vpop.permute.xlu0 %485
        %489 = vset.pattern.permute.xlu0 0
        %490 = vperm.xlu0 %489, %v448
        %v491 = vpop.permute.xlu0 %490
        %494 = vset.pattern.permute.xlu0 0
        %495 = vperm.xlu0 %494, %v449
        %v496 = vpop.permute.xlu0 %495
        %vm498 = vcmask 261120
        %v500 = vsel %vm498, %v444, 0
        %v503 = vsel %vm498, %v445, 0
        %v506 = vsel %vm498, %v446, 0
        %508 = vmatprep.subr.mxu0 0.0
        %509 = vmatpush1.msra.mxu0 0.0
        %510 = vmatprep.subr.mxu0 0.0
        %511 = vmatpush1.msra.mxu0 0.0
        %512 = vmatprep.subr.mxu0 0.0
        %513 = vmatpush1.msra.mxu0 0.0
        %514 = vmatprep.subr.mxu0 0.0
        %515 = vmatpush1.msra.mxu0 0.0
        %516 = vmatprep.subr.mxu0 0.0
        %517 = vmatpush1.msra.mxu0 0.0
        %518 = vmatprep.subr.mxu0 0.0
        %519 = vmatpush1.msra.mxu0 0.0
        %520 = vmatprep.subr.mxu0 0.0
        %521 = vmatpush1.msra.mxu0 0.0
        %522 = vmatprep.subr.mxu0 0.0
        %523 = vmatpush1.msra.mxu0 0.0
        %524 = vmatprep.subr.mxu0 0.0
        %525 = vmatpush1.msra.mxu0 0.0
        %526 = vmatprep.subr.mxu0 0.0
        %527 = vmatpush1.msra.mxu0 0.0
        %528 = vmatprep.subr.mxu0 0.0
        %529 = vmatpush1.msra.mxu0 0.0
        %530 = vmatprep.subr.mxu0 0.0
        %531 = vmatpush1.msra.mxu0 0.0
        %532 = vmatprep.subr.mxu0 0.0
        %533 = vmatpush1.msra.mxu0 %v482
        %534 = vmatprep.subr.mxu0 0.0
        %535 = vmatpush1.msra.mxu0 %v481
        %536 = vmatprep.subr.mxu0 0.0
        %537 = vmatpush1.msra.mxu0 %v480
        %538 = vmatprep.subr.mxu0 0.0
        %539 = vmatpush1.msra.mxu0 %v479
        %540 = vmatprep.subr.mxu0 0.0
        %541 = vmatpush2.msra.mxu0 0.0
        %542 = vmatprep.subr.mxu0 0.0
        %543 = vmatpush2.msra.mxu0 0.0
        %544 = vmatprep.subr.mxu0 0.0
        %545 = vmatpush2.msra.mxu0 0.0
        %546 = vmatprep.subr.mxu0 0.0
        %547 = vmatpush2.msra.mxu0 0.0
        %548 = vmatprep.subr.mxu0 0.0
        %549 = vmatpush2.msra.mxu0 0.0
        %550 = vmatprep.subr.mxu0 0.0
        %551 = vmatpush2.msra.mxu0 0.0
        %552 = vmatprep.subr.mxu0 0.0
        %553 = vmatpush2.msra.mxu0 0.0
        %554 = vmatprep.subr.mxu0 0.0
        %555 = vmatpush2.msra.mxu0 0.0
        %556 = vmatprep.subr.mxu0 0.0
        %557 = vmatpush2.msra.mxu0 0.0
        %558 = vmatprep.subr.mxu0 0.0
        %559 = vmatpush2.msra.mxu0 0.0
        %560 = vmatprep.subr.mxu0 0.0
        %561 = vmatpush2.msra.mxu0 0.0
        %562 = vmatprep.subr.mxu0 0.0
        %563 = vmatpush2.msra.mxu0 0.0
        %564 = vmatprep.subr.mxu0 0.0
        %565 = vmatpush2.msra.mxu0 0.0
        %566 = vmatprep.subr.mxu0 0.0
        %567 = vmatpush2.msra.mxu0 0.0
        %568 = vmatprep.subr.mxu0 0.0
        %569 = vmatpush2.msra.mxu0 0.0
        %570 = vmatprep.subr.mxu0 0.0
        %571 = vmatpush2.msra.mxu0 0.0
        %572 = vmatprep.mubr.f32.mxu0 0.0
        %573 = vmatmul.mubr.f32.gmra.mxu0 %v500
        %v574 = vpop.f32.mrf.mxu0
        %v575 = vadd.f32 %v486, %v574
        %v576 = vpop.f32.mrf.mxu0
        %577 = vmatprep.mubr.f32.mxu0 0.0
        %578 = vmatmul.mubr.f32.gmra.mxu0 %v503
        %v579 = vpop.f32.mrf.mxu0
        %v580 = vadd.f32 %v491, %v579
        %v581 = vpop.f32.mrf.mxu0
        %582 = vmatprep.mubr.f32.mxu0 0.0
        %583 = vmatmul.mubr.f32.gmra.mxu0 %v506
        %v584 = vpop.f32.mrf.mxu0
        %v585 = vadd.f32 %v496, %v584
        %v586 = vpop.f32.mrf.mxu0
        %587 = vdwg.mxu0
        %vm588 = vcmask 523264
        %v589 = vsel %vm588, %v575, 0.0
        %590 = vadd.xlane.f32.xlu0 %v589
        %v591 = vpop.xlane.xlu0 %590
        %v592 = vrcp.pop 64.0
        %v593 = vmul.f32 %v591, %v592
        %v594 = vxor.u32 %v593, 2147483648
        %v595 = vmul.f32 %v594, 1.442695
        %v596 = vpow.pop %v595
        %v597 = vadd.f32 %v596, 1.0
        %v598 = vrcp.pop %v597
        %v599 = vmul.f32 1.0, %v598
        %vm600 = vcmask 7168
        %601 = vst.msk [vmem:[%s443] sm:$0xff] %vm600, %v599
        %v602 = vsel %vm588, %v575, -inf
        %603 = vmax.xlane.f32.xlu0 %v602
        %v604 = vpop.xlane.xlu0 %603
        %v605 = vsub.f32 %v575, %v604
        %v606 = vmul.f32 %v605, 1.442695
        %v607 = vpow.pop %v606
        %v608 = vsel %vm588, %v607, 0.0
        %609 = vadd.xlane.f32.xlu0 %v608
        %v610 = vpop.xlane.xlu0 %609
        %v611 = vrcp.pop %v610
        %v612 = vmul.f32 %v607, %v611
        %v613 = vmul.f32 %v612, %v599
        %v615 = vsel %vm588, %v613, 0
        %v618 = vsel %vm588, %v479, 0
        %v621 = vsel %vm588, %v480, 0
        %v624 = vsel %vm588, %v481, 0
        %v627 = vsel %vm588, %v482, 0
        %629 = vmatprep.subr.mxu0 0.0
        %630 = vmatpush1.xpose.msra.mxu0 0.0
        %631 = vmatprep.subr.mxu0 0.0
        %632 = vmatpush1.xpose.msra.mxu0 0.0
        %633 = vmatprep.subr.mxu0 0.0
        %634 = vmatpush1.xpose.msra.mxu0 0.0
        %635 = vmatprep.subr.mxu0 0.0
        %636 = vmatpush1.xpose.msra.mxu0 0.0
        %637 = vmatprep.subr.mxu0 0.0
        %638 = vmatpush1.xpose.msra.mxu0 0.0
        %639 = vmatprep.subr.mxu0 0.0
        %640 = vmatpush1.xpose.msra.mxu0 0.0
        %641 = vmatprep.subr.mxu0 0.0
        %642 = vmatpush1.xpose.msra.mxu0 0.0
        %643 = vmatprep.subr.mxu0 0.0
        %644 = vmatpush1.xpose.msra.mxu0 0.0
        %645 = vmatprep.subr.mxu0 0.0
        %646 = vmatpush1.xpose.msra.mxu0 0.0
        %647 = vmatprep.subr.mxu0 0.0
        %648 = vmatpush1.xpose.msra.mxu0 0.0
        %649 = vmatprep.subr.mxu0 0.0
        %650 = vmatpush1.xpose.msra.mxu0 0.0
        %651 = vmatprep.subr.mxu0 0.0
        %652 = vmatpush1.xpose.msra.mxu0 0.0
        %653 = vmatprep.subr.mxu0 0.0
        %654 = vmatpush1.xpose.msra.mxu0 %v627
        %655 = vmatprep.subr.mxu0 0.0
        %656 = vmatpush1.xpose.msra.mxu0 %v624
        %657 = vmatprep.subr.mxu0 0.0
        %658 = vmatpush1.xpose.msra.mxu0 %v621
        %659 = vmatprep.subr.mxu0 0.0
        %660 = vmatpush1.xpose.msra.mxu0 %v618
        %661 = vmatprep.subr.mxu0 0.0
        %662 = vmatpush2.xpose.msra.mxu0 0.0
        %663 = vmatprep.subr.mxu0 0.0
        %664 = vmatpush2.xpose.msra.mxu0 0.0
        %665 = vmatprep.subr.mxu0 0.0
        %666 = vmatpush2.xpose.msra.mxu0 0.0
        %667 = vmatprep.subr.mxu0 0.0
        %668 = vmatpush2.xpose.msra.mxu0 0.0
        %669 = vmatprep.subr.mxu0 0.0
        %670 = vmatpush2.xpose.msra.mxu0 0.0
        %671 = vmatprep.subr.mxu0 0.0
        %672 = vmatpush2.xpose.msra.mxu0 0.0
        %673 = vmatprep.subr.mxu0 0.0
        %674 = vmatpush2.xpose.msra.mxu0 0.0
        %675 = vmatprep.subr.mxu0 0.0
        %676 = vmatpush2.xpose.msra.mxu0 0.0
        %677 = vmatprep.subr.mxu0 0.0
        %678 = vmatpush2.xpose.msra.mxu0 0.0
        %679 = vmatprep.subr.mxu0 0.0
        %680 = vmatpush2.xpose.msra.mxu0 0.0
        %681 = vmatprep.subr.mxu0 0.0
        %682 = vmatpush2.xpose.msra.mxu0 0.0
        %683 = vmatprep.subr.mxu0 0.0
        %684 = vmatpush2.xpose.msra.mxu0 0.0
        %685 = vmatprep.subr.mxu0 0.0
        %686 = vmatpush2.xpose.msra.mxu0 0.0
        %687 = vmatprep.subr.mxu0 0.0
        %688 = vmatpush2.xpose.msra.mxu0 0.0
        %689 = vmatprep.subr.mxu0 0.0
        %690 = vmatpush2.xpose.msra.mxu0 0.0
        %691 = vmatprep.subr.mxu0 0.0
        %692 = vmatpush2.xpose.msra.mxu0 0.0
        %693 = vmatprep.mubr.f32.mxu0 0.0
        %694 = vmatmul.mubr.f32.gmra.mxu0 %v615
        %v695 = vpop.f32.mrf.mxu0
        %v696 = vadd.f32 0.0, %v695
        %v697 = vpop.f32.mrf.mxu0
        %698 = vdwg.mxu0
        %699 = vst.msk [vmem:[#allocation2] sm:$0xff] %vm498, %v696
        %s700 = scalar_lea.vmem %s395, 32 [#allocation4]
        %v701 = vld [vmem:[%s700] sm:$0xff]
        %v702 = vld [vmem:[%s700 + $0x8] sm:$0xff]
        %v703 = vld [vmem:[%s700 + $0x10] sm:$0xff]
        %v704 = vld [vmem:[%s700 + $0x18] sm:$0xff]
        %705 = vmatprep.subr.mxu0 0.0
        %706 = vmatpush1.msra.mxu0 0.0
        %707 = vmatprep.subr.mxu0 0.0
        %708 = vmatpush1.msra.mxu0 0.0
        %709 = vmatprep.subr.mxu0 0.0
        %710 = vmatpush1.msra.mxu0 0.0
        %711 = vmatprep.subr.mxu0 0.0
        %712 = vmatpush1.msra.mxu0 0.0
        %713 = vmatprep.subr.mxu0 0.0
        %714 = vmatpush1.msra.mxu0 0.0
        %715 = vmatprep.subr.mxu0 0.0
        %716 = vmatpush1.msra.mxu0 0.0
        %717 = vmatprep.subr.mxu0 0.0
        %718 = vmatpush1.msra.mxu0 0.0
        %719 = vmatprep.subr.mxu0 0.0
        %720 = vmatpush1.msra.mxu0 0.0
        %721 = vmatprep.subr.mxu0 0.0
        %722 = vmatpush1.msra.mxu0 0.0
        %723 = vmatprep.subr.mxu0 0.0
        %724 = vmatpush1.msra.mxu0 0.0
        %725 = vmatprep.subr.mxu0 0.0
        %726 = vmatpush1.msra.mxu0 0.0
        %727 = vmatprep.subr.mxu0 0.0
        %728 = vmatpush1.msra.mxu0 0.0
        %729 = vmatprep.subr.mxu0 0.0
        %730 = vmatpush1.msra.mxu0 %v704
        %731 = vmatprep.subr.mxu0 0.0
        %732 = vmatpush1.msra.mxu0 %v703
        %733 = vmatprep.subr.mxu0 0.0
        %734 = vmatpush1.msra.mxu0 %v702
        %735 = vmatprep.subr.mxu0 0.0
        %736 = vmatpush1.msra.mxu0 %v701
        %737 = vmatprep.subr.mxu0 0.0
        %738 = vmatpush2.msra.mxu0 0.0
        %739 = vmatprep.subr.mxu0 0.0
        %740 = vmatpush2.msra.mxu0 0.0
        %741 = vmatprep.subr.mxu0 0.0
        %742 = vmatpush2.msra.mxu0 0.0
        %743 = vmatprep.subr.mxu0 0.0
        %744 = vmatpush2.msra.mxu0 0.0
        %745 = vmatprep.subr.mxu0 0.0
        %746 = vmatpush2.msra.mxu0 0.0
        %747 = vmatprep.subr.mxu0 0.0
        %748 = vmatpush2.msra.mxu0 0.0
        %749 = vmatprep.subr.mxu0 0.0
        %750 = vmatpush2.msra.mxu0 0.0
        %751 = vmatprep.subr.mxu0 0.0
        %752 = vmatpush2.msra.mxu0 0.0
        %753 = vmatprep.subr.mxu0 0.0
        %754 = vmatpush2.msra.mxu0 0.0
        %755 = vmatprep.subr.mxu0 0.0
        %756 = vmatpush2.msra.mxu0 0.0
        %757 = vmatprep.subr.mxu0 0.0
        %758 = vmatpush2.msra.mxu0 0.0
        %759 = vmatprep.subr.mxu0 0.0
        %760 = vmatpush2.msra.mxu0 0.0
        %761 = vmatprep.subr.mxu0 0.0
        %762 = vmatpush2.msra.mxu0 0.0
        %763 = vmatprep.subr.mxu0 0.0
        %764 = vmatpush2.msra.mxu0 0.0
        %765 = vmatprep.subr.mxu0 0.0
        %766 = vmatpush2.msra.mxu0 0.0
        %767 = vmatprep.subr.mxu0 0.0
        %768 = vmatpush2.msra.mxu0 0.0
        %769 = vmatprep.mubr.f32.mxu0 0.0
        %770 = vmatmul.mubr.f32.gmra.mxu0 %v500
        %v771 = vpop.f32.mrf.mxu0
        %v772 = vadd.f32 %v486, %v771
        %v773 = vpop.f32.mrf.mxu0
        %774 = vmatprep.mubr.f32.mxu0 0.0
        %775 = vmatmul.mubr.f32.gmra.mxu0 %v503
        %v776 = vpop.f32.mrf.mxu0
        %v777 = vadd.f32 %v491, %v776
        %v778 = vpop.f32.mrf.mxu0
        %779 = vmatprep.mubr.f32.mxu0 0.0
        %780 = vmatmul.mubr.f32.gmra.mxu0 %v506
        %v781 = vpop.f32.mrf.mxu0
        %v782 = vadd.f32 %v496, %v781
        %v783 = vpop.f32.mrf.mxu0
        %784 = vdwg.mxu0
        %v785 = vsel %vm588, %v772, 0.0
        %786 = vadd.xlane.f32.xlu0 %v785
        %v787 = vpop.xlane.xlu0 %786
        %v788 = vmul.f32 %v787, %v592
        %v789 = vxor.u32 %v788, 2147483648
        %v790 = vmul.f32 %v789, 1.442695
        %v791 = vpow.pop %v790
        %v792 = vadd.f32 %v791, 1.0
        %v793 = vrcp.pop %v792
        %v794 = vmul.f32 1.0, %v793
        %vm795 = vcmask 15368
        %796 = vst.msk [vmem:[%s443] sm:$0xff] %vm795, %v794
        %v797 = vsel %vm588, %v772, -inf
        %798 = vmax.xlane.f32.xlu0 %v797
        %v799 = vpop.xlane.xlu0 %798
        %v800 = vsub.f32 %v772, %v799
        %v801 = vmul.f32 %v800, 1.442695
        %v802 = vpow.pop %v801
        %v803 = vsel %vm588, %v802, 0.0
        %804 = vadd.xlane.f32.xlu0 %v803
        %v805 = vpop.xlane.xlu0 %804
        %v806 = vrcp.pop %v805
        %v807 = vmul.f32 %v802, %v806
        %v808 = vmul.f32 %v807, %v794
        %v810 = vsel %vm588, %v808, 0
        %v813 = vsel %vm588, %v701, 0
        %v816 = vsel %vm588, %v702, 0
        %v819 = vsel %vm588, %v703, 0
        %v822 = vsel %vm588, %v704, 0
        %824 = vmatprep.subr.mxu0 0.0
        %825 = vmatpush1.xpose.msra.mxu0 0.0
        %826 = vmatprep.subr.mxu0 0.0
        %827 = vmatpush1.xpose.msra.mxu0 0.0
        %828 = vmatprep.subr.mxu0 0.0
        %829 = vmatpush1.xpose.msra.mxu0 0.0
        %830 = vmatprep.subr.mxu0 0.0
        %831 = vmatpush1.xpose.msra.mxu0 0.0
        %832 = vmatprep.subr.mxu0 0.0
        %833 = vmatpush1.xpose.msra.mxu0 0.0
        %834 = vmatprep.subr.mxu0 0.0
        %835 = vmatpush1.xpose.msra.mxu0 0.0
        %836 = vmatprep.subr.mxu0 0.0
        %837 = vmatpush1.xpose.msra.mxu0 0.0
        %838 = vmatprep.subr.mxu0 0.0
        %839 = vmatpush1.xpose.msra.mxu0 0.0
        %840 = vmatprep.subr.mxu0 0.0
        %841 = vmatpush1.xpose.msra.mxu0 0.0
        %842 = vmatprep.subr.mxu0 0.0
        %843 = vmatpush1.xpose.msra.mxu0 0.0
        %844 = vmatprep.subr.mxu0 0.0
        %845 = vmatpush1.xpose.msra.mxu0 0.0
        %846 = vmatprep.subr.mxu0 0.0
        %847 = vmatpush1.xpose.msra.mxu0 0.0
        %848 = vmatprep.subr.mxu0 0.0
        %849 = vmatpush1.xpose.msra.mxu0 %v822
        %850 = vmatprep.subr.mxu0 0.0
        %851 = vmatpush1.xpose.msra.mxu0 %v819
        %852 = vmatprep.subr.mxu0 0.0
        %853 = vmatpush1.xpose.msra.mxu0 %v816
        %854 = vmatprep.subr.mxu0 0.0
        %855 = vmatpush1.xpose.msra.mxu0 %v813
        %856 = vmatprep.subr.mxu0 0.0
        %857 = vmatpush2.xpose.msra.mxu0 0.0
        %858 = vmatprep.subr.mxu0 0.0
        %859 = vmatpush2.xpose.msra.mxu0 0.0
        %860 = vmatprep.subr.mxu0 0.0
        %861 = vmatpush2.xpose.msra.mxu0 0.0
        %862 = vmatprep.subr.mxu0 0.0
        %863 = vmatpush2.xpose.msra.mxu0 0.0
        %864 = vmatprep.subr.mxu0 0.0
        %865 = vmatpush2.xpose.msra.mxu0 0.0
        %866 = vmatprep.subr.mxu0 0.0
        %867 = vmatpush2.xpose.msra.mxu0 0.0
        %868 = vmatprep.subr.mxu0 0.0
        %869 = vmatpush2.xpose.msra.mxu0 0.0
        %870 = vmatprep.subr.mxu0 0.0
        %871 = vmatpush2.xpose.msra.mxu0 0.0
        %872 = vmatprep.subr.mxu0 0.0
        %873 = vmatpush2.xpose.msra.mxu0 0.0
        %874 = vmatprep.subr.mxu0 0.0
        %875 = vmatpush2.xpose.msra.mxu0 0.0
        %876 = vmatprep.subr.mxu0 0.0
        %877 = vmatpush2.xpose.msra.mxu0 0.0
        %878 = vmatprep.subr.mxu0 0.0
        %879 = vmatpush2.xpose.msra.mxu0 0.0
        %880 = vmatprep.subr.mxu0 0.0
        %881 = vmatpush2.xpose.msra.mxu0 0.0
        %882 = vmatprep.subr.mxu0 0.0
        %883 = vmatpush2.xpose.msra.mxu0 0.0
        %884 = vmatprep.subr.mxu0 0.0
        %885 = vmatpush2.xpose.msra.mxu0 0.0
        %886 = vmatprep.subr.mxu0 0.0
        %887 = vmatpush2.xpose.msra.mxu0 0.0
        %888 = vmatprep.mubr.f32.mxu0 0.0
        %889 = vmatmul.mubr.f32.gmra.mxu0 %v810
        %v890 = vpop.f32.mrf.mxu0
        %v891 = vadd.f32 0.0, %v890
        %v892 = vpop.f32.mrf.mxu0
        %893 = vdwg.mxu0
        %894 = vst.msk [vmem:[#allocation2 + $0x8] sm:$0xff] %vm498, %v891
        %s895 = scalar_lea.vmem %s395, 64 [#allocation4]
        %v896 = vld [vmem:[%s895] sm:$0xff]
        %v897 = vld [vmem:[%s895 + $0x8] sm:$0xff]
        %v898 = vld [vmem:[%s895 + $0x10] sm:$0xff]
        %v899 = vld [vmem:[%s895 + $0x18] sm:$0xff]
        %900 = vmatprep.subr.mxu0 0.0
        %901 = vmatpush1.msra.mxu0 0.0
        %902 = vmatprep.subr.mxu0 0.0
        %903 = vmatpush1.msra.mxu0 0.0
        %904 = vmatprep.subr.mxu0 0.0
        %905 = vmatpush1.msra.mxu0 0.0
        %906 = vmatprep.subr.mxu0 0.0
        %907 = vmatpush1.msra.mxu0 0.0
        %908 = vmatprep.subr.mxu0 0.0
        %909 = vmatpush1.msra.mxu0 0.0
        %910 = vmatprep.subr.mxu0 0.0
        %911 = vmatpush1.msra.mxu0 0.0
        %912 = vmatprep.subr.mxu0 0.0
        %913 = vmatpush1.msra.mxu0 0.0
        %914 = vmatprep.subr.mxu0 0.0
        %915 = vmatpush1.msra.mxu0 0.0
        %916 = vmatprep.subr.mxu0 0.0
        %917 = vmatpush1.msra.mxu0 0.0
        %918 = vmatprep.subr.mxu0 0.0
        %919 = vmatpush1.msra.mxu0 0.0
        %920 = vmatprep.subr.mxu0 0.0
        %921 = vmatpush1.msra.mxu0 0.0
        %922 = vmatprep.subr.mxu0 0.0
        %923 = vmatpush1.msra.mxu0 0.0
        %924 = vmatprep.subr.mxu0 0.0
        %925 = vmatpush1.msra.mxu0 %v899
        %926 = vmatprep.subr.mxu0 0.0
        %927 = vmatpush1.msra.mxu0 %v898
        %928 = vmatprep.subr.mxu0 0.0
        %929 = vmatpush1.msra.mxu0 %v897
        %930 = vmatprep.subr.mxu0 0.0
        %931 = vmatpush1.msra.mxu0 %v896
        %932 = vmatprep.subr.mxu0 0.0
        %933 = vmatpush2.msra.mxu0 0.0
        %934 = vmatprep.subr.mxu0 0.0
        %935 = vmatpush2.msra.mxu0 0.0
        %936 = vmatprep.subr.mxu0 0.0
        %937 = vmatpush2.msra.mxu0 0.0
        %938 = vmatprep.subr.mxu0 0.0
        %939 = vmatpush2.msra.mxu0 0.0
        %940 = vmatprep.subr.mxu0 0.0
        %941 = vmatpush2.msra.mxu0 0.0
        %942 = vmatprep.subr.mxu0 0.0
        %943 = vmatpush2.msra.mxu0 0.0
        %944 = vmatprep.subr.mxu0 0.0
        %945 = vmatpush2.msra.mxu0 0.0
        %946 = vmatprep.subr.mxu0 0.0
        %947 = vmatpush2.msra.mxu0 0.0
        %948 = vmatprep.subr.mxu0 0.0
        %949 = vmatpush2.msra.mxu0 0.0
        %950 = vmatprep.subr.mxu0 0.0
        %951 = vmatpush2.msra.mxu0 0.0
        %952 = vmatprep.subr.mxu0 0.0
        %953 = vmatpush2.msra.mxu0 0.0
        %954 = vmatprep.subr.mxu0 0.0
        %955 = vmatpush2.msra.mxu0 0.0
        %956 = vmatprep.subr.mxu0 0.0
        %957 = vmatpush2.msra.mxu0 0.0
        %958 = vmatprep.subr.mxu0 0.0
        %959 = vmatpush2.msra.mxu0 0.0
        %960 = vmatprep.subr.mxu0 0.0
        %961 = vmatpush2.msra.mxu0 0.0
        %962 = vmatprep.subr.mxu0 0.0
        %963 = vmatpush2.msra.mxu0 0.0
        %964 = vmatprep.mubr.f32.mxu0 0.0
        %965 = vmatmul.mubr.f32.gmra.mxu0 %v500
        %v966 = vpop.f32.mrf.mxu0
        %v967 = vadd.f32 %v486, %v966
        %v968 = vpop.f32.mrf.mxu0
        %969 = vmatprep.mubr.f32.mxu0 0.0
        %970 = vmatmul.mubr.f32.gmra.mxu0 %v503
        %v971 = vpop.f32.mrf.mxu0
        %v972 = vadd.f32 %v491, %v971
        %v973 = vpop.f32.mrf.mxu0
        %974 = vmatprep.mubr.f32.mxu0 0.0
        %975 = vmatmul.mubr.f32.gmra.mxu0 %v506
        %v976 = vpop.f32.mrf.mxu0
        %v977 = vadd.f32 %v496, %v976
        %v978 = vpop.f32.mrf.mxu0
        %979 = vdwg.mxu0
        %v980 = vsel %vm588, %v967, 0.0
        %981 = vadd.xlane.f32.xlu0 %v980
        %v982 = vpop.xlane.xlu0 %981
        %v983 = vmul.f32 %v982, %v592
        %v984 = vxor.u32 %v983, 2147483648
        %v985 = vmul.f32 %v984, 1.442695
        %v986 = vpow.pop %v985
        %v987 = vadd.f32 %v986, 1.0
        %v988 = vrcp.pop %v987
        %v989 = vmul.f32 1.0, %v988
        %vm990 = vcmask 23568
        %991 = vst.msk [vmem:[%s443] sm:$0xff] %vm990, %v989
        %v992 = vsel %vm588, %v967, -inf
        %993 = vmax.xlane.f32.xlu0 %v992
        %v994 = vpop.xlane.xlu0 %993
        %v995 = vsub.f32 %v967, %v994
        %v996 = vmul.f32 %v995, 1.442695
        %v997 = vpow.pop %v996
        %v998 = vsel %vm588, %v997, 0.0
        %999 = vadd.xlane.f32.xlu0 %v998
        %v1000 = vpop.xlane.xlu0 %999
        %v1001 = vrcp.pop %v1000
        %v1002 = vmul.f32 %v997, %v1001
        %v1003 = vmul.f32 %v1002, %v989
        %v1005 = vsel %vm588, %v1003, 0
        %v1008 = vsel %vm588, %v896, 0
        %v1011 = vsel %vm588, %v897, 0
        %v1014 = vsel %vm588, %v898, 0
        %v1017 = vsel %vm588, %v899, 0
        %1019 = vmatprep.subr.mxu0 0.0
        %1020 = vmatpush1.xpose.msra.mxu0 0.0
        %1021 = vmatprep.subr.mxu0 0.0
        %1022 = vmatpush1.xpose.msra.mxu0 0.0
        %1023 = vmatprep.subr.mxu0 0.0
        %1024 = vmatpush1.xpose.msra.mxu0 0.0
        %1025 = vmatprep.subr.mxu0 0.0
        %1026 = vmatpush1.xpose.msra.mxu0 0.0
        %1027 = vmatprep.subr.mxu0 0.0
        %1028 = vmatpush1.xpose.msra.mxu0 0.0
        %1029 = vmatprep.subr.mxu0 0.0
        %1030 = vmatpush1.xpose.msra.mxu0 0.0
        %1031 = vmatprep.subr.mxu0 0.0
        %1032 = vmatpush1.xpose.msra.mxu0 0.0
        %1033 = vmatprep.subr.mxu0 0.0
        %1034 = vmatpush1.xpose.msra.mxu0 0.0
        %1035 = vmatprep.subr.mxu0 0.0
        %1036 = vmatpush1.xpose.msra.mxu0 0.0
        %1037 = vmatprep.subr.mxu0 0.0
        %1038 = vmatpush1.xpose.msra.mxu0 0.0
        %1039 = vmatprep.subr.mxu0 0.0
        %1040 = vmatpush1.xpose.msra.mxu0 0.0
        %1041 = vmatprep.subr.mxu0 0.0
        %1042 = vmatpush1.xpose.msra.mxu0 0.0
        %1043 = vmatprep.subr.mxu0 0.0
        %1044 = vmatpush1.xpose.msra.mxu0 %v1017
        %1045 = vmatprep.subr.mxu0 0.0
        %1046 = vmatpush1.xpose.msra.mxu0 %v1014
        %1047 = vmatprep.subr.mxu0 0.0
        %1048 = vmatpush1.xpose.msra.mxu0 %v1011
        %1049 = vmatprep.subr.mxu0 0.0
        %1050 = vmatpush1.xpose.msra.mxu0 %v1008
        %1051 = vmatprep.subr.mxu0 0.0
        %1052 = vmatpush2.xpose.msra.mxu0 0.0
        %1053 = vmatprep.subr.mxu0 0.0
        %1054 = vmatpush2.xpose.msra.mxu0 0.0
        %1055 = vmatprep.subr.mxu0 0.0
        %1056 = vmatpush2.xpose.msra.mxu0 0.0
        %1057 = vmatprep.subr.mxu0 0.0
        %1058 = vmatpush2.xpose.msra.mxu0 0.0
        %1059 = vmatprep.subr.mxu0 0.0
        %1060 = vmatpush2.xpose.msra.mxu0 0.0
        %1061 = vmatprep.subr.mxu0 0.0
        %1062 = vmatpush2.xpose.msra.mxu0 0.0
        %1063 = vmatprep.subr.mxu0 0.0
        %1064 = vmatpush2.xpose.msra.mxu0 0.0
        %1065 = vmatprep.subr.mxu0 0.0
        %1066 = vmatpush2.xpose.msra.mxu0 0.0
        %1067 = vmatprep.subr.mxu0 0.0
        %1068 = vmatpush2.xpose.msra.mxu0 0.0
        %1069 = vmatprep.subr.mxu0 0.0
        %1070 = vmatpush2.xpose.msra.mxu0 0.0
        %1071 = vmatprep.subr.mxu0 0.0
        %1072 = vmatpush2.xpose.msra.mxu0 0.0
        %1073 = vmatprep.subr.mxu0 0.0
        %1074 = vmatpush2.xpose.msra.mxu0 0.0
        %1075 = vmatprep.subr.mxu0 0.0
        %1076 = vmatpush2.xpose.msra.mxu0 0.0
        %1077 = vmatprep.subr.mxu0 0.0
        %1078 = vmatpush2.xpose.msra.mxu0 0.0
        %1079 = vmatprep.subr.mxu0 0.0
        %1080 = vmatpush2.xpose.msra.mxu0 0.0
        %1081 = vmatprep.subr.mxu0 0.0
        %1082 = vmatpush2.xpose.msra.mxu0 0.0
        %1083 = vmatprep.mubr.f32.mxu0 0.0
        %1084 = vmatmul.mubr.f32.gmra.mxu0 %v1005
        %v1085 = vpop.f32.mrf.mxu0
        %v1086 = vadd.f32 0.0, %v1085
        %v1087 = vpop.f32.mrf.mxu0
        %1088 = vdwg.mxu0
        %1089 = vst.msk [vmem:[#allocation2 + $0x10] sm:$0xff] %vm498, %v1086
        %s1090 = scalar_lea.vmem %s395, 96 [#allocation4]
        %v1091 = vld [vmem:[%s1090] sm:$0xff]
        %v1092 = vld [vmem:[%s1090 + $0x8] sm:$0xff]
        %v1093 = vld [vmem:[%s1090 + $0x10] sm:$0xff]
        %v1094 = vld [vmem:[%s1090 + $0x18] sm:$0xff]
        %1095 = vmatprep.subr.mxu0 0.0
        %1096 = vmatpush1.msra.mxu0 0.0
        %1097 = vmatprep.subr.mxu0 0.0
        %1098 = vmatpush1.msra.mxu0 0.0
        %1099 = vmatprep.subr.mxu0 0.0
        %1100 = vmatpush1.msra.mxu0 0.0
        %1101 = vmatprep.subr.mxu0 0.0
        %1102 = vmatpush1.msra.mxu0 0.0
        %1103 = vmatprep.subr.mxu0 0.0
        %1104 = vmatpush1.msra.mxu0 0.0
        %1105 = vmatprep.subr.mxu0 0.0
        %1106 = vmatpush1.msra.mxu0 0.0
        %1107 = vmatprep.subr.mxu0 0.0
        %1108 = vmatpush1.msra.mxu0 0.0
        %1109 = vmatprep.subr.mxu0 0.0
        %1110 = vmatpush1.msra.mxu0 0.0
        %1111 = vmatprep.subr.mxu0 0.0
        %1112 = vmatpush1.msra.mxu0 0.0
        %1113 = vmatprep.subr.mxu0 0.0
        %1114 = vmatpush1.msra.mxu0 0.0
        %1115 = vmatprep.subr.mxu0 0.0
        %1116 = vmatpush1.msra.mxu0 0.0
        %1117 = vmatprep.subr.mxu0 0.0
        %1118 = vmatpush1.msra.mxu0 0.0
        %1119 = vmatprep.subr.mxu0 0.0
        %1120 = vmatpush1.msra.mxu0 %v1094
        %1121 = vmatprep.subr.mxu0 0.0
        %1122 = vmatpush1.msra.mxu0 %v1093
        %1123 = vmatprep.subr.mxu0 0.0
        %1124 = vmatpush1.msra.mxu0 %v1092
        %1125 = vmatprep.subr.mxu0 0.0
        %1126 = vmatpush1.msra.mxu0 %v1091
        %1127 = vmatprep.subr.mxu0 0.0
        %1128 = vmatpush2.msra.mxu0 0.0
        %1129 = vmatprep.subr.mxu0 0.0
        %1130 = vmatpush2.msra.mxu0 0.0
        %1131 = vmatprep.subr.mxu0 0.0
        %1132 = vmatpush2.msra.mxu0 0.0
        %1133 = vmatprep.subr.mxu0 0.0
        %1134 = vmatpush2.msra.mxu0 0.0
        %1135 = vmatprep.subr.mxu0 0.0
        %1136 = vmatpush2.msra.mxu0 0.0
        %1137 = vmatprep.subr.mxu0 0.0
        %1138 = vmatpush2.msra.mxu0 0.0
        %1139 = vmatprep.subr.mxu0 0.0
        %1140 = vmatpush2.msra.mxu0 0.0
        %1141 = vmatprep.subr.mxu0 0.0
        %1142 = vmatpush2.msra.mxu0 0.0
        %1143 = vmatprep.subr.mxu0 0.0
        %1144 = vmatpush2.msra.mxu0 0.0
        %1145 = vmatprep.subr.mxu0 0.0
        %1146 = vmatpush2.msra.mxu0 0.0
        %1147 = vmatprep.subr.mxu0 0.0
        %1148 = vmatpush2.msra.mxu0 0.0
        %1149 = vmatprep.subr.mxu0 0.0
        %1150 = vmatpush2.msra.mxu0 0.0
        %1151 = vmatprep.subr.mxu0 0.0
        %1152 = vmatpush2.msra.mxu0 0.0
        %1153 = vmatprep.subr.mxu0 0.0
        %1154 = vmatpush2.msra.mxu0 0.0
        %1155 = vmatprep.subr.mxu0 0.0
        %1156 = vmatpush2.msra.mxu0 0.0
        %1157 = vmatprep.subr.mxu0 0.0
        %1158 = vmatpush2.msra.mxu0 0.0
        %1159 = vmatprep.mubr.f32.mxu0 0.0
        %1160 = vmatmul.mubr.f32.gmra.mxu0 %v500
        %v1161 = vpop.f32.mrf.mxu0
        %v1162 = vadd.f32 %v486, %v1161
        %v1163 = vpop.f32.mrf.mxu0
        %1164 = vmatprep.mubr.f32.mxu0 0.0
        %1165 = vmatmul.mubr.f32.gmra.mxu0 %v503
        %v1166 = vpop.f32.mrf.mxu0
        %v1167 = vadd.f32 %v491, %v1166
        %v1168 = vpop.f32.mrf.mxu0
        %1169 = vmatprep.mubr.f32.mxu0 0.0
        %1170 = vmatmul.mubr.f32.gmra.mxu0 %v506
        %v1171 = vpop.f32.mrf.mxu0
        %v1172 = vadd.f32 %v496, %v1171
        %v1173 = vpop.f32.mrf.mxu0
        %1174 = vdwg.mxu0
        %v1175 = vsel %vm588, %v1162, 0.0
        %1176 = vadd.xlane.f32.xlu0 %v1175
        %v1177 = vpop.xlane.xlu0 %1176
        %v1178 = vmul.f32 %v1177, %v592
        %v1179 = vxor.u32 %v1178, 2147483648
        %v1180 = vmul.f32 %v1179, 1.442695
        %v1181 = vpow.pop %v1180
        %v1182 = vadd.f32 %v1181, 1.0
        %v1183 = vrcp.pop %v1182
        %v1184 = vmul.f32 1.0, %v1183
        %vm1185 = vcmask 31768
        %1186 = vst.msk [vmem:[%s443] sm:$0xff] %vm1185, %v1184
        %v1187 = vsel %vm588, %v1162, -inf
        %1188 = vmax.xlane.f32.xlu0 %v1187
        %v1189 = vpop.xlane.xlu0 %1188
        %v1190 = vsub.f32 %v1162, %v1189
        %v1191 = vmul.f32 %v1190, 1.442695
        %v1192 = vpow.pop %v1191
        %v1193 = vsel %vm588, %v1192, 0.0
        %1194 = vadd.xlane.f32.xlu0 %v1193
        %v1195 = vpop.xlane.xlu0 %1194
        %v1196 = vrcp.pop %v1195
        %v1197 = vmul.f32 %v1192, %v1196
        %v1198 = vmul.f32 %v1197, %v1184
        %v1200 = vsel %vm588, %v1198, 0
        %v1203 = vsel %vm588, %v1091, 0
        %v1206 = vsel %vm588, %v1092, 0
        %v1209 = vsel %vm588, %v1093, 0
        %v1212 = vsel %vm588, %v1094, 0
        %1214 = vmatprep.subr.mxu0 0.0
        %1215 = vmatpush1.xpose.msra.mxu0 0.0
        %1216 = vmatprep.subr.mxu0 0.0
        %1217 = vmatpush1.xpose.msra.mxu0 0.0
        %1218 = vmatprep.subr.mxu0 0.0
        %1219 = vmatpush1.xpose.msra.mxu0 0.0
        %1220 = vmatprep.subr.mxu0 0.0
        %1221 = vmatpush1.xpose.msra.mxu0 0.0
        %1222 = vmatprep.subr.mxu0 0.0
        %1223 = vmatpush1.xpose.msra.mxu0 0.0
        %1224 = vmatprep.subr.mxu0 0.0
        %1225 = vmatpush1.xpose.msra.mxu0 0.0
        %1226 = vmatprep.subr.mxu0 0.0
        %1227 = vmatpush1.xpose.msra.mxu0 0.0
        %1228 = vmatprep.subr.mxu0 0.0
        %1229 = vmatpush1.xpose.msra.mxu0 0.0
        %1230 = vmatprep.subr.mxu0 0.0
        %1231 = vmatpush1.xpose.msra.mxu0 0.0
        %1232 = vmatprep.subr.mxu0 0.0
        %1233 = vmatpush1.xpose.msra.mxu0 0.0
        %1234 = vmatprep.subr.mxu0 0.0
        %1235 = vmatpush1.xpose.msra.mxu0 0.0
        %1236 = vmatprep.subr.mxu0 0.0
        %1237 = vmatpush1.xpose.msra.mxu0 0.0
        %1238 = vmatprep.subr.mxu0 0.0
        %1239 = vmatpush1.xpose.msra.mxu0 %v1212
        %1240 = vmatprep.subr.mxu0 0.0
        %1241 = vmatpush1.xpose.msra.mxu0 %v1209
        %1242 = vmatprep.subr.mxu0 0.0
        %1243 = vmatpush1.xpose.msra.mxu0 %v1206
        %1244 = vmatprep.subr.mxu0 0.0
        %1245 = vmatpush1.xpose.msra.mxu0 %v1203
        %1246 = vmatprep.subr.mxu0 0.0
        %1247 = vmatpush2.xpose.msra.mxu0 0.0
        %1248 = vmatprep.subr.mxu0 0.0
        %1249 = vmatpush2.xpose.msra.mxu0 0.0
        %1250 = vmatprep.subr.mxu0 0.0
        %1251 = vmatpush2.xpose.msra.mxu0 0.0
        %1252 = vmatprep.subr.mxu0 0.0
        %1253 = vmatpush2.xpose.msra.mxu0 0.0
        %1254 = vmatprep.subr.mxu0 0.0
        %1255 = vmatpush2.xpose.msra.mxu0 0.0
        %1256 = vmatprep.subr.mxu0 0.0
        %1257 = vmatpush2.xpose.msra.mxu0 0.0
        %1258 = vmatprep.subr.mxu0 0.0
        %1259 = vmatpush2.xpose.msra.mxu0 0.0
        %1260 = vmatprep.subr.mxu0 0.0
        %1261 = vmatpush2.xpose.msra.mxu0 0.0
        %1262 = vmatprep.subr.mxu0 0.0
        %1263 = vmatpush2.xpose.msra.mxu0 0.0
        %1264 = vmatprep.subr.mxu0 0.0
        %1265 = vmatpush2.xpose.msra.mxu0 0.0
        %1266 = vmatprep.subr.mxu0 0.0
        %1267 = vmatpush2.xpose.msra.mxu0 0.0
        %1268 = vmatprep.subr.mxu0 0.0
        %1269 = vmatpush2.xpose.msra.mxu0 0.0
        %1270 = vmatprep.subr.mxu0 0.0
        %1271 = vmatpush2.xpose.msra.mxu0 0.0
        %1272 = vmatprep.subr.mxu0 0.0
        %1273 = vmatpush2.xpose.msra.mxu0 0.0
        %1274 = vmatprep.subr.mxu0 0.0
        %1275 = vmatpush2.xpose.msra.mxu0 0.0
        %1276 = vmatprep.subr.mxu0 0.0
        %1277 = vmatpush2.xpose.msra.mxu0 0.0
        %1278 = vmatprep.mubr.f32.mxu0 0.0
        %1279 = vmatmul.mubr.f32.gmra.mxu0 %v1200
        %v1280 = vpop.f32.mrf.mxu0
        %v1281 = vadd.f32 0.0, %v1280
        %v1282 = vpop.f32.mrf.mxu0
        %1283 = vdwg.mxu0
        %1284 = vst.msk [vmem:[#allocation2 + $0x18] sm:$0xff] %vm498, %v1281
        %v1285 = vld [vmem:[#allocation2] sm:$0xff]
        %v1286 = vld [vmem:[#allocation2 + $0x8] sm:$0xff]
        %v1287 = vld [vmem:[#allocation2 + $0x10] sm:$0xff]
        %v1288 = vld [vmem:[#allocation2 + $0x18] sm:$0xff]
        %v1290 = vsel %vm498, %v450, 0
        %v1293 = vsel %vm498, %v451, 0
        %v1296 = vsel %vm498, %v452, 0
        %v1299 = vsel %vm498, %v453, 0
        %1301 = vmatprep.subr.mxu0 0.0
        %1302 = vmatpush1.msra.mxu0 0.0
        %1303 = vmatprep.subr.mxu0 0.0
        %1304 = vmatpush1.msra.mxu0 0.0
        %1305 = vmatprep.subr.mxu0 0.0
        %1306 = vmatpush1.msra.mxu0 0.0
        %1307 = vmatprep.subr.mxu0 0.0
        %1308 = vmatpush1.msra.mxu0 0.0
        %1309 = vmatprep.subr.mxu0 0.0
        %1310 = vmatpush1.msra.mxu0 0.0
        %1311 = vmatprep.subr.mxu0 0.0
        %1312 = vmatpush1.msra.mxu0 0.0
        %1313 = vmatprep.subr.mxu0 0.0
        %1314 = vmatpush1.msra.mxu0 0.0
        %1315 = vmatprep.subr.mxu0 0.0
        %1316 = vmatpush1.msra.mxu0 0.0
        %1317 = vmatprep.subr.mxu0 0.0
        %1318 = vmatpush1.msra.mxu0 0.0
        %1319 = vmatprep.subr.mxu0 0.0
        %1320 = vmatpush1.msra.mxu0 0.0
        %1321 = vmatprep.subr.mxu0 0.0
        %1322 = vmatpush1.msra.mxu0 0.0
        %1323 = vmatprep.subr.mxu0 0.0
        %1324 = vmatpush1.msra.mxu0 0.0
        %1325 = vmatprep.subr.mxu0 0.0
        %1326 = vmatpush1.msra.mxu0 %v1288
        %1327 = vmatprep.subr.mxu0 0.0
        %1328 = vmatpush1.msra.mxu0 %v1287
        %1329 = vmatprep.subr.mxu0 0.0
        %1330 = vmatpush1.msra.mxu0 %v1286
        %1331 = vmatprep.subr.mxu0 0.0
        %1332 = vmatpush1.msra.mxu0 %v1285
        %1333 = vmatprep.subr.mxu0 0.0
        %1334 = vmatpush2.msra.mxu0 0.0
        %1335 = vmatprep.subr.mxu0 0.0
        %1336 = vmatpush2.msra.mxu0 0.0
        %1337 = vmatprep.subr.mxu0 0.0
        %1338 = vmatpush2.msra.mxu0 0.0
        %1339 = vmatprep.subr.mxu0 0.0
        %1340 = vmatpush2.msra.mxu0 0.0
        %1341 = vmatprep.subr.mxu0 0.0
        %1342 = vmatpush2.msra.mxu0 0.0
        %1343 = vmatprep.subr.mxu0 0.0
        %1344 = vmatpush2.msra.mxu0 0.0
        %1345 = vmatprep.subr.mxu0 0.0
        %1346 = vmatpush2.msra.mxu0 0.0
        %1347 = vmatprep.subr.mxu0 0.0
        %1348 = vmatpush2.msra.mxu0 0.0
        %1349 = vmatprep.subr.mxu0 0.0
        %1350 = vmatpush2.msra.mxu0 0.0
        %1351 = vmatprep.subr.mxu0 0.0
        %1352 = vmatpush2.msra.mxu0 0.0
        %1353 = vmatprep.subr.mxu0 0.0
        %1354 = vmatpush2.msra.mxu0 0.0
        %1355 = vmatprep.subr.mxu0 0.0
        %1356 = vmatpush2.msra.mxu0 0.0
        %1357 = vmatprep.subr.mxu0 0.0
        %1358 = vmatpush2.msra.mxu0 0.0
        %1359 = vmatprep.subr.mxu0 0.0
        %1360 = vmatpush2.msra.mxu0 0.0
        %1361 = vmatprep.subr.mxu0 0.0
        %1362 = vmatpush2.msra.mxu0 0.0
        %1363 = vmatprep.subr.mxu0 0.0
        %1364 = vmatpush2.msra.mxu0 0.0
        %1365 = vmatprep.mubr.f32.mxu0 0.0
        %1366 = vmatmul.mubr.f32.gmra.mxu0 %v1290
        %v1367 = vpop.f32.mrf.mxu0
        %v1368 = vadd.f32 0.0, %v1367
        %v1369 = vpop.f32.mrf.mxu0
        %1370 = vmatprep.mubr.f32.mxu0 0.0
        %1371 = vmatmul.mubr.f32.gmra.mxu0 %v1293
        %v1372 = vpop.f32.mrf.mxu0
        %v1373 = vadd.f32 0.0, %v1372
        %v1374 = vpop.f32.mrf.mxu0
        %1375 = vmatprep.mubr.f32.mxu0 0.0
        %1376 = vmatmul.mubr.f32.gmra.mxu0 %v1296
        %v1377 = vpop.f32.mrf.mxu0
        %v1378 = vadd.f32 0.0, %v1377
        %v1379 = vpop.f32.mrf.mxu0
        %1380 = vmatprep.mubr.f32.mxu0 0.0
        %1381 = vmatmul.mubr.f32.gmra.mxu0 %v1299
        %v1382 = vpop.f32.mrf.mxu0
        %v1383 = vadd.f32 0.0, %v1382
        %v1384 = vpop.f32.mrf.mxu0
        %1385 = vdwg.mxu0
        %v1386 = vmax.f32 %v1368, 0.0
        %v1387 = vmax.f32 %v1373, 0.0
        %v1388 = vmax.f32 %v1378, 0.0
        %v1389 = vmax.f32 %v1383, 0.0
        %v1391 = vsel %vm498, %v454, 0
        %1393 = vmatprep.subr.mxu0 0.0
        %1394 = vmatpush1.msra.mxu0 0.0
        %1395 = vmatprep.subr.mxu0 0.0
        %1396 = vmatpush1.msra.mxu0 0.0
        %1397 = vmatprep.subr.mxu0 0.0
        %1398 = vmatpush1.msra.mxu0 0.0
        %1399 = vmatprep.subr.mxu0 0.0
        %1400 = vmatpush1.msra.mxu0 0.0
        %1401 = vmatprep.subr.mxu0 0.0
        %1402 = vmatpush1.msra.mxu0 0.0
        %1403 = vmatprep.subr.mxu0 0.0
        %1404 = vmatpush1.msra.mxu0 0.0
        %1405 = vmatprep.subr.mxu0 0.0
        %1406 = vmatpush1.msra.mxu0 0.0
        %1407 = vmatprep.subr.mxu0 0.0
        %1408 = vmatpush1.msra.mxu0 0.0
        %1409 = vmatprep.subr.mxu0 0.0
        %1410 = vmatpush1.msra.mxu0 0.0
        %1411 = vmatprep.subr.mxu0 0.0
        %1412 = vmatpush1.msra.mxu0 0.0
        %1413 = vmatprep.subr.mxu0 0.0
        %1414 = vmatpush1.msra.mxu0 0.0
        %1415 = vmatprep.subr.mxu0 0.0
        %1416 = vmatpush1.msra.mxu0 0.0
        %1417 = vmatprep.subr.mxu0 0.0
        %1418 = vmatpush1.msra.mxu0 %v1389
        %1419 = vmatprep.subr.mxu0 0.0
        %1420 = vmatpush1.msra.mxu0 %v1388
        %1421 = vmatprep.subr.mxu0 0.0
        %1422 = vmatpush1.msra.mxu0 %v1387
        %1423 = vmatprep.subr.mxu0 0.0
        %1424 = vmatpush1.msra.mxu0 %v1386
        %1425 = vmatprep.subr.mxu0 0.0
        %1426 = vmatpush2.msra.mxu0 0.0
        %1427 = vmatprep.subr.mxu0 0.0
        %1428 = vmatpush2.msra.mxu0 0.0
        %1429 = vmatprep.subr.mxu0 0.0
        %1430 = vmatpush2.msra.mxu0 0.0
        %1431 = vmatprep.subr.mxu0 0.0
        %1432 = vmatpush2.msra.mxu0 0.0
        %1433 = vmatprep.subr.mxu0 0.0
        %1434 = vmatpush2.msra.mxu0 0.0
        %1435 = vmatprep.subr.mxu0 0.0
        %1436 = vmatpush2.msra.mxu0 0.0
        %1437 = vmatprep.subr.mxu0 0.0
        %1438 = vmatpush2.msra.mxu0 0.0
        %1439 = vmatprep.subr.mxu0 0.0
        %1440 = vmatpush2.msra.mxu0 0.0
        %1441 = vmatprep.subr.mxu0 0.0
        %1442 = vmatpush2.msra.mxu0 0.0
        %1443 = vmatprep.subr.mxu0 0.0
        %1444 = vmatpush2.msra.mxu0 0.0
        %1445 = vmatprep.subr.mxu0 0.0
        %1446 = vmatpush2.msra.mxu0 0.0
        %1447 = vmatprep.subr.mxu0 0.0
        %1448 = vmatpush2.msra.mxu0 0.0
        %1449 = vmatprep.subr.mxu0 0.0
        %1450 = vmatpush2.msra.mxu0 0.0
        %1451 = vmatprep.subr.mxu0 0.0
        %1452 = vmatpush2.msra.mxu0 0.0
        %1453 = vmatprep.subr.mxu0 0.0
        %1454 = vmatpush2.msra.mxu0 0.0
        %1455 = vmatprep.subr.mxu0 0.0
        %1456 = vmatpush2.msra.mxu0 0.0
        %1457 = vmatprep.mubr.f32.mxu0 0.0
        %1458 = vmatmul.mubr.f32.gmra.mxu0 %v1391
        %v1459 = vpop.f32.mrf.mxu0
        %v1460 = vadd.f32 0.0, %v1459
        %v1461 = vpop.f32.mrf.mxu0
        %1462 = vdwg.mxu0
        %v1464 = vsel %vm498, %v1386, 0
        %v1467 = vsel %vm498, %v1387, 0
        %v1470 = vsel %vm498, %v1388, 0
        %v1473 = vsel %vm498, %v1389, 0
        %1475 = vmatprep.subr.mxu0 0.0
        %1476 = vmatpush1.msra.mxu0 0.0
        %1477 = vmatprep.subr.mxu0 0.0
        %1478 = vmatpush1.msra.mxu0 0.0
        %1479 = vmatprep.subr.mxu0 0.0
        %1480 = vmatpush1.msra.mxu0 0.0
        %1481 = vmatprep.subr.mxu0 0.0
        %1482 = vmatpush1.msra.mxu0 0.0
        %1483 = vmatprep.subr.mxu0 0.0
        %1484 = vmatpush1.msra.mxu0 0.0
        %1485 = vmatprep.subr.mxu0 0.0
        %1486 = vmatpush1.msra.mxu0 0.0
        %1487 = vmatprep.subr.mxu0 0.0
        %1488 = vmatpush1.msra.mxu0 0.0
        %1489 = vmatprep.subr.mxu0 0.0
        %1490 = vmatpush1.msra.mxu0 0.0
        %1491 = vmatprep.subr.mxu0 0.0
        %1492 = vmatpush1.msra.mxu0 0.0
        %1493 = vmatprep.subr.mxu0 0.0
        %1494 = vmatpush1.msra.mxu0 0.0
        %1495 = vmatprep.subr.mxu0 0.0
        %1496 = vmatpush1.msra.mxu0 0.0
        %1497 = vmatprep.subr.mxu0 0.0
        %1498 = vmatpush1.msra.mxu0 0.0
        %1499 = vmatprep.subr.mxu0 0.0
        %1500 = vmatpush1.msra.mxu0 %v458
        %1501 = vmatprep.subr.mxu0 0.0
        %1502 = vmatpush1.msra.mxu0 %v457
        %1503 = vmatprep.subr.mxu0 0.0
        %1504 = vmatpush1.msra.mxu0 %v456
        %1505 = vmatprep.subr.mxu0 0.0
        %1506 = vmatpush1.msra.mxu0 %v455
        %1507 = vmatprep.subr.mxu0 0.0
        %1508 = vmatpush2.msra.mxu0 0.0
        %1509 = vmatprep.subr.mxu0 0.0
        %1510 = vmatpush2.msra.mxu0 0.0
        %1511 = vmatprep.subr.mxu0 0.0
        %1512 = vmatpush2.msra.mxu0 0.0
        %1513 = vmatprep.subr.mxu0 0.0
        %1514 = vmatpush2.msra.mxu0 0.0
        %1515 = vmatprep.subr.mxu0 0.0
        %1516 = vmatpush2.msra.mxu0 0.0
        %1517 = vmatprep.subr.mxu0 0.0
        %1518 = vmatpush2.msra.mxu0 0.0
        %1519 = vmatprep.subr.mxu0 0.0
        %1520 = vmatpush2.msra.mxu0 0.0
        %1521 = vmatprep.subr.mxu0 0.0
        %1522 = vmatpush2.msra.mxu0 0.0
        %1523 = vmatprep.subr.mxu0 0.0
        %1524 = vmatpush2.msra.mxu0 0.0
        %1525 = vmatprep.subr.mxu0 0.0
        %1526 = vmatpush2.msra.mxu0 0.0
        %1527 = vmatprep.subr.mxu0 0.0
        %1528 = vmatpush2.msra.mxu0 0.0
        %1529 = vmatprep.subr.mxu0 0.0
        %1530 = vmatpush2.msra.mxu0 0.0
        %1531 = vmatprep.subr.mxu0 0.0
        %1532 = vmatpush2.msra.mxu0 0.0
        %1533 = vmatprep.subr.mxu0 0.0
        %1534 = vmatpush2.msra.mxu0 0.0
        %1535 = vmatprep.subr.mxu0 0.0
        %1536 = vmatpush2.msra.mxu0 0.0
        %1537 = vmatprep.subr.mxu0 0.0
        %1538 = vmatpush2.msra.mxu0 0.0
        %1539 = vmatprep.mubr.f32.mxu0 0.0
        %1540 = vmatmul.mubr.f32.gmra.mxu0 %v1464
        %v1541 = vpop.f32.mrf.mxu0
        %v1542 = vadd.f32 0.0, %v1541
        %v1543 = vpop.f32.mrf.mxu0
        %1544 = vmatprep.mubr.f32.mxu0 0.0
        %1545 = vmatmul.mubr.f32.gmra.mxu0 %v1467
        %v1546 = vpop.f32.mrf.mxu0
        %v1547 = vadd.f32 0.0, %v1546
        %v1548 = vpop.f32.mrf.mxu0
        %1549 = vmatprep.mubr.f32.mxu0 0.0
        %1550 = vmatmul.mubr.f32.gmra.mxu0 %v1470
        %v1551 = vpop.f32.mrf.mxu0
        %v1552 = vadd.f32 0.0, %v1551
        %v1553 = vpop.f32.mrf.mxu0
        %1554 = vmatprep.mubr.f32.mxu0 0.0
        %1555 = vmatmul.mubr.f32.gmra.mxu0 %v1473
        %v1556 = vpop.f32.mrf.mxu0
        %v1557 = vadd.f32 0.0, %v1556
        %v1558 = vpop.f32.mrf.mxu0
        %1559 = vdwg.mxu0
        %v1560 = vstv %s478
        %v1562 = vsel %vm498, %v1460, 0
        %1564 = vmatprep.subr.mxu0 0.0
        %1565 = vmatpush1.msra.mxu0 0.0
        %1566 = vmatprep.subr.mxu0 0.0
        %1567 = vmatpush1.msra.mxu0 0.0
        %1568 = vmatprep.subr.mxu0 0.0
        %1569 = vmatpush1.msra.mxu0 0.0
        %1570 = vmatprep.subr.mxu0 0.0
        %1571 = vmatpush1.msra.mxu0 0.0
        %1572 = vmatprep.subr.mxu0 0.0
        %1573 = vmatpush1.msra.mxu0 0.0
        %1574 = vmatprep.subr.mxu0 0.0
        %1575 = vmatpush1.msra.mxu0 0.0
        %1576 = vmatprep.subr.mxu0 0.0
        %1577 = vmatpush1.msra.mxu0 0.0
        %1578 = vmatprep.subr.mxu0 0.0
        %1579 = vmatpush1.msra.mxu0 0.0
        %1580 = vmatprep.subr.mxu0 0.0
        %1581 = vmatpush1.msra.mxu0 0.0
        %1582 = vmatprep.subr.mxu0 0.0
        %1583 = vmatpush1.msra.mxu0 0.0
        %1584 = vmatprep.subr.mxu0 0.0
        %1585 = vmatpush1.msra.mxu0 0.0
        %1586 = vmatprep.subr.mxu0 0.0
        %1587 = vmatpush1.msra.mxu0 0.0
        %1588 = vmatprep.subr.mxu0 0.0
        %1589 = vmatpush1.msra.mxu0 %v458
        %1590 = vmatprep.subr.mxu0 0.0
        %1591 = vmatpush1.msra.mxu0 %v457
        %1592 = vmatprep.subr.mxu0 0.0
        %1593 = vmatpush1.msra.mxu0 %v456
        %1594 = vmatprep.subr.mxu0 0.0
        %1595 = vmatpush1.msra.mxu0 %v455
        %1596 = vmatprep.subr.mxu0 0.0
        %1597 = vmatpush2.msra.mxu0 0.0
        %1598 = vmatprep.subr.mxu0 0.0
        %1599 = vmatpush2.msra.mxu0 0.0
        %1600 = vmatprep.subr.mxu0 0.0
        %1601 = vmatpush2.msra.mxu0 0.0
        %1602 = vmatprep.subr.mxu0 0.0
        %1603 = vmatpush2.msra.mxu0 0.0
        %1604 = vmatprep.subr.mxu0 0.0
        %1605 = vmatpush2.msra.mxu0 0.0
        %1606 = vmatprep.subr.mxu0 0.0
        %1607 = vmatpush2.msra.mxu0 0.0
        %1608 = vmatprep.subr.mxu0 0.0
        %1609 = vmatpush2.msra.mxu0 0.0
        %1610 = vmatprep.subr.mxu0 0.0
        %1611 = vmatpush2.msra.mxu0 0.0
        %1612 = vmatprep.subr.mxu0 0.0
        %1613 = vmatpush2.msra.mxu0 0.0
        %1614 = vmatprep.subr.mxu0 0.0
        %1615 = vmatpush2.msra.mxu0 0.0
        %1616 = vmatprep.subr.mxu0 0.0
        %1617 = vmatpush2.msra.mxu0 0.0
        %1618 = vmatprep.subr.mxu0 0.0
        %1619 = vmatpush2.msra.mxu0 0.0
        %1620 = vmatprep.subr.mxu0 0.0
        %1621 = vmatpush2.msra.mxu0 0.0
        %1622 = vmatprep.subr.mxu0 0.0
        %1623 = vmatpush2.msra.mxu0 0.0
        %1624 = vmatprep.subr.mxu0 0.0
        %1625 = vmatpush2.msra.mxu0 0.0
        %1626 = vmatprep.subr.mxu0 0.0
        %1627 = vmatpush2.msra.mxu0 0.0
        %1628 = vmatprep.mubr.f32.mxu0 0.0
        %1629 = vmatmul.mubr.f32.gmra.mxu0 %v1562
        %v1630 = vpop.f32.mrf.mxu0
        %v1631 = vadd.f32 %v1560, %v1630
        %v1632 = vpop.f32.mrf.mxu0
        %1633 = vdwg.mxu0
        %v1634 = vmax.f32 %v1631, 0.0
        %v1635 = vlaneseq
        %v1636 = vshrl.u32 %v1635, 7
        %v1637 = vsub.s32 0, %v1636
        %v1638 = vrot.slane %v468, %v1637
        %v1640 = vsel %vm498, %v1542, 0
        %v1643 = vsel %vm498, %v1547, 0
        %v1646 = vsel %vm498, %v1552, 0
        %v1649 = vsel %vm498, %v1557, 0
        %1651 = vmatprep.subr.mxu0 0.0
        %1652 = vmatpush1.msra.mxu0 0.0
        %1653 = vmatprep.subr.mxu0 0.0
        %1654 = vmatpush1.msra.mxu0 0.0
        %1655 = vmatprep.subr.mxu0 0.0
        %1656 = vmatpush1.msra.mxu0 0.0
        %1657 = vmatprep.subr.mxu0 0.0
        %1658 = vmatpush1.msra.mxu0 0.0
        %1659 = vmatprep.subr.mxu0 0.0
        %1660 = vmatpush1.msra.mxu0 0.0
        %1661 = vmatprep.subr.mxu0 0.0
        %1662 = vmatpush1.msra.mxu0 0.0
        %1663 = vmatprep.subr.mxu0 0.0
        %1664 = vmatpush1.msra.mxu0 0.0
        %1665 = vmatprep.subr.mxu0 0.0
        %1666 = vmatpush1.msra.mxu0 0.0
        %1667 = vmatprep.subr.mxu0 0.0
        %1668 = vmatpush1.msra.mxu0 0.0
        %1669 = vmatprep.subr.mxu0 0.0
        %1670 = vmatpush1.msra.mxu0 0.0
        %1671 = vmatprep.subr.mxu0 0.0
        %1672 = vmatpush1.msra.mxu0 0.0
        %1673 = vmatprep.subr.mxu0 0.0
        %1674 = vmatpush1.msra.mxu0 0.0
        %1675 = vmatprep.subr.mxu0 0.0
        %1676 = vmatpush1.msra.mxu0 %v462
        %1677 = vmatprep.subr.mxu0 0.0
        %1678 = vmatpush1.msra.mxu0 %v461
        %1679 = vmatprep.subr.mxu0 0.0
        %1680 = vmatpush1.msra.mxu0 %v460
        %1681 = vmatprep.subr.mxu0 0.0
        %1682 = vmatpush1.msra.mxu0 %v459
        %1683 = vmatprep.subr.mxu0 0.0
        %1684 = vmatpush2.msra.mxu0 0.0
        %1685 = vmatprep.subr.mxu0 0.0
        %1686 = vmatpush2.msra.mxu0 0.0
        %1687 = vmatprep.subr.mxu0 0.0
        %1688 = vmatpush2.msra.mxu0 0.0
        %1689 = vmatprep.subr.mxu0 0.0
        %1690 = vmatpush2.msra.mxu0 0.0
        %1691 = vmatprep.subr.mxu0 0.0
        %1692 = vmatpush2.msra.mxu0 0.0
        %1693 = vmatprep.subr.mxu0 0.0
        %1694 = vmatpush2.msra.mxu0 0.0
        %1695 = vmatprep.subr.mxu0 0.0
        %1696 = vmatpush2.msra.mxu0 0.0
        %1697 = vmatprep.subr.mxu0 0.0
        %1698 = vmatpush2.msra.mxu0 0.0
        %1699 = vmatprep.subr.mxu0 0.0
        %1700 = vmatpush2.msra.mxu0 0.0
        %1701 = vmatprep.subr.mxu0 0.0
        %1702 = vmatpush2.msra.mxu0 0.0
        %1703 = vmatprep.subr.mxu0 0.0
        %1704 = vmatpush2.msra.mxu0 0.0
        %1705 = vmatprep.subr.mxu0 0.0
        %1706 = vmatpush2.msra.mxu0 0.0
        %1707 = vmatprep.subr.mxu0 0.0
        %1708 = vmatpush2.msra.mxu0 0.0
        %1709 = vmatprep.subr.mxu0 0.0
        %1710 = vmatpush2.msra.mxu0 0.0
        %1711 = vmatprep.subr.mxu0 0.0
        %1712 = vmatpush2.msra.mxu0 0.0
        %1713 = vmatprep.subr.mxu0 0.0
        %1714 = vmatpush2.msra.mxu0 0.0
        %1715 = vmatprep.mubr.f32.mxu0 0.0
        %1716 = vmatmul.mubr.f32.gmra.mxu0 %v1640
        %v1717 = vpop.f32.mrf.mxu0
        %v1718 = vadd.f32 %v1638, %v1717
        %v1719 = vpop.f32.mrf.mxu0
        %1720 = vmatprep.mubr.f32.mxu0 0.0
        %1721 = vmatmul.mubr.f32.gmra.mxu0 %v1643
        %v1722 = vpop.f32.mrf.mxu0
        %v1723 = vadd.f32 %v1638, %v1722
        %v1724 = vpop.f32.mrf.mxu0
        %1725 = vmatprep.mubr.f32.mxu0 0.0
        %1726 = vmatmul.mubr.f32.gmra.mxu0 %v1646
        %v1727 = vpop.f32.mrf.mxu0
        %v1728 = vadd.f32 %v1638, %v1727
        %v1729 = vpop.f32.mrf.mxu0
        %1730 = vmatprep.mubr.f32.mxu0 0.0
        %1731 = vmatmul.mubr.f32.gmra.mxu0 %v1649
        %v1732 = vpop.f32.mrf.mxu0
        %v1733 = vadd.f32 %v1638, %v1732
        %v1734 = vpop.f32.mrf.mxu0
        %1735 = vdwg.mxu0
        %v1736 = vlaneseq
        %v1737 = vshrl.u32 %v1736, 7
        %v1738 = vsub.s32 0, %v1737
        %v1739 = vrot.slane %v469, %v1738
        %v1741 = vsel %vm498, %v1634, 0
        %1743 = vmatprep.subr.mxu0 0.0
        %1744 = vmatpush1.msra.mxu0 0.0
        %1745 = vmatprep.subr.mxu0 0.0
        %1746 = vmatpush1.msra.mxu0 0.0
        %1747 = vmatprep.subr.mxu0 0.0
        %1748 = vmatpush1.msra.mxu0 0.0
        %1749 = vmatprep.subr.mxu0 0.0
        %1750 = vmatpush1.msra.mxu0 0.0
        %1751 = vmatprep.subr.mxu0 0.0
        %1752 = vmatpush1.msra.mxu0 0.0
        %1753 = vmatprep.subr.mxu0 0.0
        %1754 = vmatpush1.msra.mxu0 0.0
        %1755 = vmatprep.subr.mxu0 0.0
        %1756 = vmatpush1.msra.mxu0 0.0
        %1757 = vmatprep.subr.mxu0 0.0
        %1758 = vmatpush1.msra.mxu0 0.0
        %1759 = vmatprep.subr.mxu0 0.0
        %1760 = vmatpush1.msra.mxu0 0.0
        %1761 = vmatprep.subr.mxu0 0.0
        %1762 = vmatpush1.msra.mxu0 0.0
        %1763 = vmatprep.subr.mxu0 0.0
        %1764 = vmatpush1.msra.mxu0 0.0
        %1765 = vmatprep.subr.mxu0 0.0
        %1766 = vmatpush1.msra.mxu0 0.0
        %1767 = vmatprep.subr.mxu0 0.0
        %1768 = vmatpush1.msra.mxu0 %v467
        %1769 = vmatprep.subr.mxu0 0.0
        %1770 = vmatpush1.msra.mxu0 %v466
        %1771 = vmatprep.subr.mxu0 0.0
        %1772 = vmatpush1.msra.mxu0 %v465
        %1773 = vmatprep.subr.mxu0 0.0
        %1774 = vmatpush1.msra.mxu0 %v464
        %1775 = vmatprep.subr.mxu0 0.0
        %1776 = vmatpush2.msra.mxu0 0.0
        %1777 = vmatprep.subr.mxu0 0.0
        %1778 = vmatpush2.msra.mxu0 0.0
        %1779 = vmatprep.subr.mxu0 0.0
        %1780 = vmatpush2.msra.mxu0 0.0
        %1781 = vmatprep.subr.mxu0 0.0
        %1782 = vmatpush2.msra.mxu0 0.0
        %1783 = vmatprep.subr.mxu0 0.0
        %1784 = vmatpush2.msra.mxu0 0.0
        %1785 = vmatprep.subr.mxu0 0.0
        %1786 = vmatpush2.msra.mxu0 0.0
        %1787 = vmatprep.subr.mxu0 0.0
        %1788 = vmatpush2.msra.mxu0 0.0
        %1789 = vmatprep.subr.mxu0 0.0
        %1790 = vmatpush2.msra.mxu0 0.0
        %1791 = vmatprep.subr.mxu0 0.0
        %1792 = vmatpush2.msra.mxu0 0.0
        %1793 = vmatprep.subr.mxu0 0.0
        %1794 = vmatpush2.msra.mxu0 0.0
        %1795 = vmatprep.subr.mxu0 0.0
        %1796 = vmatpush2.msra.mxu0 0.0
        %1797 = vmatprep.subr.mxu0 0.0
        %1798 = vmatpush2.msra.mxu0 0.0
        %1799 = vmatprep.subr.mxu0 0.0
        %1800 = vmatpush2.msra.mxu0 0.0
        %1801 = vmatprep.subr.mxu0 0.0
        %1802 = vmatpush2.msra.mxu0 0.0
        %1803 = vmatprep.subr.mxu0 0.0
        %1804 = vmatpush2.msra.mxu0 0.0
        %1805 = vmatprep.subr.mxu0 0.0
        %1806 = vmatpush2.msra.mxu0 0.0
        %1807 = vmatprep.mubr.f32.mxu0 0.0
        %1808 = vmatmul.mubr.f32.gmra.mxu0 %v1741
        %v1809 = vpop.f32.mrf.mxu0
        %v1810 = vadd.f32 %v1739, %v1809
        %v1811 = vpop.f32.mrf.mxu0
        %1812 = vdwg.mxu0
        %v1813 = vld [vmem:[%s395] sm:$0xff]
        %v1814 = vld [vmem:[%s395 + $0x8] sm:$0xff]
        %v1815 = vld [vmem:[%s395 + $0x10] sm:$0xff]
        %v1816 = vld [vmem:[%s395 + $0x18] sm:$0xff]
        %vm1817 = vcmask 130048
        %v1819 = vsel %vm1817, %v1718, 0
        %1821 = vmatprep.subr.mxu0 0.0
        %1822 = vmatpush1.msra.mxu0 0.0
        %1823 = vmatprep.subr.mxu0 0.0
        %1824 = vmatpush1.msra.mxu0 0.0
        %1825 = vmatprep.subr.mxu0 0.0
        %1826 = vmatpush1.msra.mxu0 0.0
        %1827 = vmatprep.subr.mxu0 0.0
        %1828 = vmatpush1.msra.mxu0 0.0
        %1829 = vmatprep.subr.mxu0 0.0
        %1830 = vmatpush1.msra.mxu0 0.0
        %1831 = vmatprep.subr.mxu0 0.0
        %1832 = vmatpush1.msra.mxu0 0.0
        %1833 = vmatprep.subr.mxu0 0.0
        %1834 = vmatpush1.msra.mxu0 0.0
        %1835 = vmatprep.subr.mxu0 0.0
        %1836 = vmatpush1.msra.mxu0 0.0
        %1837 = vmatprep.subr.mxu0 0.0
        %1838 = vmatpush1.msra.mxu0 0.0
        %1839 = vmatprep.subr.mxu0 0.0
        %1840 = vmatpush1.msra.mxu0 0.0
        %1841 = vmatprep.subr.mxu0 0.0
        %1842 = vmatpush1.msra.mxu0 0.0
        %1843 = vmatprep.subr.mxu0 0.0
        %1844 = vmatpush1.msra.mxu0 0.0
        %1845 = vmatprep.subr.mxu0 0.0
        %1846 = vmatpush1.msra.mxu0 0.0
        %1847 = vmatprep.subr.mxu0 0.0
        %1848 = vmatpush1.msra.mxu0 0.0
        %1849 = vmatprep.subr.mxu0 0.0
        %1850 = vmatpush1.msra.mxu0 %v585
        %1851 = vmatprep.subr.mxu0 0.0
        %1852 = vmatpush1.msra.mxu0 %v580
        %1853 = vmatprep.subr.mxu0 0.0
        %1854 = vmatpush2.msra.mxu0 0.0
        %1855 = vmatprep.subr.mxu0 0.0
        %1856 = vmatpush2.msra.mxu0 0.0
        %1857 = vmatprep.subr.mxu0 0.0
        %1858 = vmatpush2.msra.mxu0 0.0
        %1859 = vmatprep.subr.mxu0 0.0
        %1860 = vmatpush2.msra.mxu0 0.0
        %1861 = vmatprep.subr.mxu0 0.0
        %1862 = vmatpush2.msra.mxu0 0.0
        %1863 = vmatprep.subr.mxu0 0.0
        %1864 = vmatpush2.msra.mxu0 0.0
        %1865 = vmatprep.subr.mxu0 0.0
        %1866 = vmatpush2.msra.mxu0 0.0
        %1867 = vmatprep.subr.mxu0 0.0
        %1868 = vmatpush2.msra.mxu0 0.0
        %1869 = vmatprep.subr.mxu0 0.0
        %1870 = vmatpush2.msra.mxu0 0.0
        %1871 = vmatprep.subr.mxu0 0.0
        %1872 = vmatpush2.msra.mxu0 0.0
        %1873 = vmatprep.subr.mxu0 0.0
        %1874 = vmatpush2.msra.mxu0 0.0
        %1875 = vmatprep.subr.mxu0 0.0
        %1876 = vmatpush2.msra.mxu0 0.0
        %1877 = vmatprep.subr.mxu0 0.0
        %1878 = vmatpush2.msra.mxu0 0.0
        %1879 = vmatprep.subr.mxu0 0.0
        %1880 = vmatpush2.msra.mxu0 0.0
        %1881 = vmatprep.subr.mxu0 0.0
        %1882 = vmatpush2.msra.mxu0 0.0
        %1883 = vmatprep.subr.mxu0 0.0
        %1884 = vmatpush2.msra.mxu0 0.0
        %1885 = vmatprep.mubr.f32.mxu0 0.0
        %1886 = vmatmul.mubr.f32.gmra.mxu0 %v1819
        %v1887 = vpop.f32.mrf.mxu0
        %v1888 = vadd.f32 0.0, %v1887
        %v1889 = vpop.f32.mrf.mxu0
        %1890 = vdwg.mxu0
        %v1891 = vsel %vm588, %v1888, -inf
        %v1892 = vrot.slane %v1891, 4
        %v1893 = vmax.f32 %v1891, %v1892
        %v1894 = vrot.slane %v1893, 2
        %v1895 = vmax.f32 %v1893, %v1894
        %v1896 = vrot.slane %v1895, 1
        %v1897 = vmax.f32 %v1895, %v1896
        %v1898 = vsub.f32 %v1888, %v1897
        %v1899 = vmul.f32 %v1898, 1.442695
        %v1900 = vpow.pop %v1899
        %v1901 = vsel %vm588, %v1900, 0.0
        %v1902 = vrot.slane %v1901, 4
        %v1903 = vadd.f32 %v1901, %v1902
        %v1904 = vrot.slane %v1903, 2
        %v1905 = vadd.f32 %v1903, %v1904
        %v1906 = vrot.slane %v1905, 1
        %v1907 = vadd.f32 %v1905, %v1906
        %v1908 = vrcp.pop %v1907
        %v1909 = vmul.f32 %v1900, %v1908
        %1910 = vxpose.xlu0.b32.start [1/16] %v1810, 128
        %1911 = vxpose.xlu0.b32.cont [2/16] 0.0, 128
        %1912 = vxpose.xlu0.b32.cont [3/16] 0.0, 128
        %1913 = vxpose.xlu0.b32.cont [4/16] 0.0, 128
        %1914 = vxpose.xlu0.b32.cont [5/16] 0.0, 128
        %1915 = vxpose.xlu0.b32.cont [6/16] 0.0, 128
        %1916 = vxpose.xlu0.b32.cont [7/16] 0.0, 128
        %1917 = vxpose.xlu0.b32.cont [8/16] 0.0, 128
        %1918 = vxpose.xlu0.b32.cont [9/16] 0.0, 128
        %1919 = vxpose.xlu0.b32.cont [10/16] 0.0, 128
        %1920 = vxpose.xlu0.b32.cont [11/16] 0.0, 128
        %1921 = vxpose.xlu0.b32.cont [12/16] 0.0, 128
        %1922 = vxpose.xlu0.b32.cont [13/16] 0.0, 128
        %1923 = vxpose.xlu0.b32.cont [14/16] 0.0, 128
        %1924 = vxpose.xlu0.b32.cont [15/16] 0.0, 128
        %1925 = vxpose.xlu0.b32.end [16/16] 0.0, 128
        %v1926 = vpop.trf.xlu0
        %v1927 = vpop.trf.xlu0
        %v1928 = vpop.trf.xlu0
        %v1929 = vpop.trf.xlu0
        %v1930 = vpop.trf.xlu0
        %v1931 = vpop.trf.xlu0
        %v1932 = vpop.trf.xlu0
        %v1933 = vpop.trf.xlu0
        %v1934 = vpop.trf.xlu0
        %v1935 = vpop.trf.xlu0
        %v1936 = vpop.trf.xlu0
        %v1937 = vpop.trf.xlu0
        %v1938 = vpop.trf.xlu0
        %v1939 = vpop.trf.xlu0
        %v1940 = vpop.trf.xlu0
        %v1941 = vpop.trf.xlu0
        %vm1942 = vcmask 64512
        %v1944 = vsel %vm1942, %v1926, 0
        %v1947 = vsel %vm1942, %v1927, 0
        %1949 = vmatprep.subr.mxu0 0.0
        %1950 = vmatpush1.msra.mxu0 0.0
        %1951 = vmatprep.subr.mxu0 0.0
        %1952 = vmatpush1.msra.mxu0 0.0
        %1953 = vmatprep.subr.mxu0 0.0
        %1954 = vmatpush1.msra.mxu0 0.0
        %1955 = vmatprep.subr.mxu0 0.0
        %1956 = vmatpush1.msra.mxu0 0.0
        %1957 = vmatprep.subr.mxu0 0.0
        %1958 = vmatpush1.msra.mxu0 0.0
        %1959 = vmatprep.subr.mxu0 0.0
        %1960 = vmatpush1.msra.mxu0 0.0
        %1961 = vmatprep.subr.mxu0 0.0
        %1962 = vmatpush1.msra.mxu0 0.0
        %1963 = vmatprep.subr.mxu0 0.0
        %1964 = vmatpush1.msra.mxu0 0.0
        %1965 = vmatprep.subr.mxu0 0.0
        %1966 = vmatpush1.msra.mxu0 0.0
        %1967 = vmatprep.subr.mxu0 0.0
        %1968 = vmatpush1.msra.mxu0 0.0
        %1969 = vmatprep.subr.mxu0 0.0
        %1970 = vmatpush1.msra.mxu0 0.0
        %1971 = vmatprep.subr.mxu0 0.0
        %1972 = vmatpush1.msra.mxu0 0.0
        %1973 = vmatprep.subr.mxu0 0.0
        %1974 = vmatpush1.msra.mxu0 0.0
        %1975 = vmatprep.subr.mxu0 0.0
        %1976 = vmatpush1.msra.mxu0 0.0
        %1977 = vmatprep.subr.mxu0 0.0
        %1978 = vmatpush1.msra.mxu0 0.0
        %1979 = vmatprep.subr.mxu0 0.0
        %1980 = vmatpush1.msra.mxu0 %v1909
        %1981 = vmatprep.subr.mxu0 0.0
        %1982 = vmatpush2.msra.mxu0 0.0
        %1983 = vmatprep.subr.mxu0 0.0
        %1984 = vmatpush2.msra.mxu0 0.0
        %1985 = vmatprep.subr.mxu0 0.0
        %1986 = vmatpush2.msra.mxu0 0.0
        %1987 = vmatprep.subr.mxu0 0.0
        %1988 = vmatpush2.msra.mxu0 0.0
        %1989 = vmatprep.subr.mxu0 0.0
        %1990 = vmatpush2.msra.mxu0 0.0
        %1991 = vmatprep.subr.mxu0 0.0
        %1992 = vmatpush2.msra.mxu0 0.0
        %1993 = vmatprep.subr.mxu0 0.0
        %1994 = vmatpush2.msra.mxu0 0.0
        %1995 = vmatprep.subr.mxu0 0.0
        %1996 = vmatpush2.msra.mxu0 0.0
        %1997 = vmatprep.subr.mxu0 0.0
        %1998 = vmatpush2.msra.mxu0 0.0
        %1999 = vmatprep.subr.mxu0 0.0
        %2000 = vmatpush2.msra.mxu0 0.0
        %2001 = vmatprep.subr.mxu0 0.0
        %2002 = vmatpush2.msra.mxu0 0.0
        %2003 = vmatprep.subr.mxu0 0.0
        %2004 = vmatpush2.msra.mxu0 0.0
        %2005 = vmatprep.subr.mxu0 0.0
        %2006 = vmatpush2.msra.mxu0 0.0
        %2007 = vmatprep.subr.mxu0 0.0
        %2008 = vmatpush2.msra.mxu0 0.0
        %2009 = vmatprep.subr.mxu0 0.0
        %2010 = vmatpush2.msra.mxu0 0.0
        %2011 = vmatprep.subr.mxu0 0.0
        %2012 = vmatpush2.msra.mxu0 0.0
        %2013 = vmatprep.mubr.f32.mxu0 0.0
        %2014 = vmatmul.mubr.f32.gmra.mxu0 %v1944
        %v2015 = vpop.f32.mrf.mxu0
        %v2016 = vadd.f32 0.0, %v2015
        %v2017 = vpop.f32.mrf.mxu0
        %2018 = vmatprep.mubr.f32.mxu0 0.0
        %2019 = vmatmul.mubr.f32.gmra.mxu0 %v1947
        %v2020 = vpop.f32.mrf.mxu0
        %v2021 = vadd.f32 0.0, %v2020
        %v2022 = vpop.f32.mrf.mxu0
        %2023 = vdwg.mxu0
        %2025 = vset.pattern.permute.xlu0 0
        %2026 = vperm.xlu0 %2025, %v474
        %v2027 = vpop.permute.xlu0 %2026
        %2030 = vset.pattern.permute.xlu0 0
        %2031 = vperm.xlu0 %2030, %v475
        %v2032 = vpop.permute.xlu0 %2031
        %2035 = vset.pattern.permute.xlu0 0
        %2036 = vperm.xlu0 %2035, %v476
        %v2037 = vpop.permute.xlu0 %2036
        %2040 = vset.pattern.permute.xlu0 0
        %2041 = vperm.xlu0 %2040, %v477
        %v2042 = vpop.permute.xlu0 %2041
        %v2045 = vsel %vm1817, %v470, 0
        %v2048 = vsel %vm1817, %v471, 0
        %v2051 = vsel %vm1817, %v472, 0
        %v2054 = vsel %vm1817, %v473, 0
        %2056 = vmatprep.subr.mxu0 0.0
        %2057 = vmatpush1.msra.mxu0 0.0
        %2058 = vmatprep.subr.mxu0 0.0
        %2059 = vmatpush1.msra.mxu0 0.0
        %2060 = vmatprep.subr.mxu0 0.0
        %2061 = vmatpush1.msra.mxu0 0.0
        %2062 = vmatprep.subr.mxu0 0.0
        %2063 = vmatpush1.msra.mxu0 0.0
        %2064 = vmatprep.subr.mxu0 0.0
        %2065 = vmatpush1.msra.mxu0 0.0
        %2066 = vmatprep.subr.mxu0 0.0
        %2067 = vmatpush1.msra.mxu0 0.0
        %2068 = vmatprep.subr.mxu0 0.0
        %2069 = vmatpush1.msra.mxu0 0.0
        %2070 = vmatprep.subr.mxu0 0.0
        %2071 = vmatpush1.msra.mxu0 0.0
        %2072 = vmatprep.subr.mxu0 0.0
        %2073 = vmatpush1.msra.mxu0 0.0
        %2074 = vmatprep.subr.mxu0 0.0
        %2075 = vmatpush1.msra.mxu0 0.0
        %2076 = vmatprep.subr.mxu0 0.0
        %2077 = vmatpush1.msra.mxu0 0.0
        %2078 = vmatprep.subr.mxu0 0.0
        %2079 = vmatpush1.msra.mxu0 0.0
        %2080 = vmatprep.subr.mxu0 0.0
        %2081 = vmatpush1.msra.mxu0 0.0
        %2082 = vmatprep.subr.mxu0 0.0
        %2083 = vmatpush1.msra.mxu0 0.0
        %2084 = vmatprep.subr.mxu0 0.0
        %2085 = vmatpush1.msra.mxu0 %v2021
        %2086 = vmatprep.subr.mxu0 0.0
        %2087 = vmatpush1.msra.mxu0 %v2016
        %2088 = vmatprep.subr.mxu0 0.0
        %2089 = vmatpush2.msra.mxu0 0.0
        %2090 = vmatprep.subr.mxu0 0.0
        %2091 = vmatpush2.msra.mxu0 0.0
        %2092 = vmatprep.subr.mxu0 0.0
        %2093 = vmatpush2.msra.mxu0 0.0
        %2094 = vmatprep.subr.mxu0 0.0
        %2095 = vmatpush2.msra.mxu0 0.0
        %2096 = vmatprep.subr.mxu0 0.0
        %2097 = vmatpush2.msra.mxu0 0.0
        %2098 = vmatprep.subr.mxu0 0.0
        %2099 = vmatpush2.msra.mxu0 0.0
        %2100 = vmatprep.subr.mxu0 0.0
        %2101 = vmatpush2.msra.mxu0 0.0
        %2102 = vmatprep.subr.mxu0 0.0
        %2103 = vmatpush2.msra.mxu0 0.0
        %2104 = vmatprep.subr.mxu0 0.0
        %2105 = vmatpush2.msra.mxu0 0.0
        %2106 = vmatprep.subr.mxu0 0.0
        %2107 = vmatpush2.msra.mxu0 0.0
        %2108 = vmatprep.subr.mxu0 0.0
        %2109 = vmatpush2.msra.mxu0 0.0
        %2110 = vmatprep.subr.mxu0 0.0
        %2111 = vmatpush2.msra.mxu0 0.0
        %2112 = vmatprep.subr.mxu0 0.0
        %2113 = vmatpush2.msra.mxu0 0.0
        %2114 = vmatprep.subr.mxu0 0.0
        %2115 = vmatpush2.msra.mxu0 0.0
        %2116 = vmatprep.subr.mxu0 0.0
        %2117 = vmatpush2.msra.mxu0 0.0
        %2118 = vmatprep.subr.mxu0 0.0
        %2119 = vmatpush2.msra.mxu0 0.0
        %2120 = vmatprep.mubr.f32.mxu0 0.0
        %2121 = vmatmul.mubr.f32.gmra.mxu0 %v2045
        %v2122 = vpop.f32.mrf.mxu0
        %v2123 = vadd.f32 %v2027, %v2122
        %v2124 = vpop.f32.mrf.mxu0
        %2125 = vmatprep.mubr.f32.mxu0 0.0
        %2126 = vmatmul.mubr.f32.gmra.mxu0 %v2048
        %v2127 = vpop.f32.mrf.mxu0
        %v2128 = vadd.f32 %v2032, %v2127
        %v2129 = vpop.f32.mrf.mxu0
        %2130 = vmatprep.mubr.f32.mxu0 0.0
        %2131 = vmatmul.mubr.f32.gmra.mxu0 %v2051
        %v2132 = vpop.f32.mrf.mxu0
        %v2133 = vadd.f32 %v2037, %v2132
        %v2134 = vpop.f32.mrf.mxu0
        %2135 = vmatprep.mubr.f32.mxu0 0.0
        %2136 = vmatmul.mubr.f32.gmra.mxu0 %v2054
        %v2137 = vpop.f32.mrf.mxu0
        %v2138 = vadd.f32 %v2042, %v2137
        %v2139 = vpop.f32.mrf.mxu0
        %2140 = vdwg.mxu0
        %v2141 = vmax.f32 %v2123, 0.0
        %v2142 = vmax.f32 %v2128, 0.0
        %v2143 = vmax.f32 %v2133, 0.0
        %v2144 = vmax.f32 %v2138, 0.0
        %v2145 = vadd.f32 %v1813, %v2141
        %v2146 = vadd.f32 %v1814, %v2142
        %v2147 = vadd.f32 %v1815, %v2143
        %v2148 = vadd.f32 %v1816, %v2144
        %2149 = vst.msk [vmem:[%s433] sm:$0xff] %vm588, %v2145
        %2150 = vst.msk [vmem:[%s433 + $0x8] sm:$0xff] %vm588, %v2146
        %2151 = vst.msk [vmem:[%s433 + $0x10] sm:$0xff] %vm588, %v2147
        %2152 = vst.msk [vmem:[%s433 + $0x18] sm:$0xff] %vm588, %v2148
        %v2153 = vld [vmem:[%s700] sm:$0xff]
        %v2154 = vld [vmem:[%s700 + $0x8] sm:$0xff]
        %v2155 = vld [vmem:[%s700 + $0x10] sm:$0xff]
        %v2156 = vld [vmem:[%s700 + $0x18] sm:$0xff]
        %v2158 = vsel %vm1817, %v1723, 0
        %2160 = vmatprep.subr.mxu0 0.0
        %2161 = vmatpush1.msra.mxu0 0.0
        %2162 = vmatprep.subr.mxu0 0.0
        %2163 = vmatpush1.msra.mxu0 0.0
        %2164 = vmatprep.subr.mxu0 0.0
        %2165 = vmatpush1.msra.mxu0 0.0
        %2166 = vmatprep.subr.mxu0 0.0
        %2167 = vmatpush1.msra.mxu0 0.0
        %2168 = vmatprep.subr.mxu0 0.0
        %2169 = vmatpush1.msra.mxu0 0.0
        %2170 = vmatprep.subr.mxu0 0.0
        %2171 = vmatpush1.msra.mxu0 0.0
        %2172 = vmatprep.subr.mxu0 0.0
        %2173 = vmatpush1.msra.mxu0 0.0
        %2174 = vmatprep.subr.mxu0 0.0
        %2175 = vmatpush1.msra.mxu0 0.0
        %2176 = vmatprep.subr.mxu0 0.0
        %2177 = vmatpush1.msra.mxu0 0.0
        %2178 = vmatprep.subr.mxu0 0.0
        %2179 = vmatpush1.msra.mxu0 0.0
        %2180 = vmatprep.subr.mxu0 0.0
        %2181 = vmatpush1.msra.mxu0 0.0
        %2182 = vmatprep.subr.mxu0 0.0
        %2183 = vmatpush1.msra.mxu0 0.0
        %2184 = vmatprep.subr.mxu0 0.0
        %2185 = vmatpush1.msra.mxu0 0.0
        %2186 = vmatprep.subr.mxu0 0.0
        %2187 = vmatpush1.msra.mxu0 0.0
        %2188 = vmatprep.subr.mxu0 0.0
        %2189 = vmatpush1.msra.mxu0 %v782
        %2190 = vmatprep.subr.mxu0 0.0
        %2191 = vmatpush1.msra.mxu0 %v777
        %2192 = vmatprep.subr.mxu0 0.0
        %2193 = vmatpush2.msra.mxu0 0.0
        %2194 = vmatprep.subr.mxu0 0.0
        %2195 = vmatpush2.msra.mxu0 0.0
        %2196 = vmatprep.subr.mxu0 0.0
        %2197 = vmatpush2.msra.mxu0 0.0
        %2198 = vmatprep.subr.mxu0 0.0
        %2199 = vmatpush2.msra.mxu0 0.0
        %2200 = vmatprep.subr.mxu0 0.0
        %2201 = vmatpush2.msra.mxu0 0.0
        %2202 = vmatprep.subr.mxu0 0.0
        %2203 = vmatpush2.msra.mxu0 0.0
        %2204 = vmatprep.subr.mxu0 0.0
        %2205 = vmatpush2.msra.mxu0 0.0
        %2206 = vmatprep.subr.mxu0 0.0
        %2207 = vmatpush2.msra.mxu0 0.0
        %2208 = vmatprep.subr.mxu0 0.0
        %2209 = vmatpush2.msra.mxu0 0.0
        %2210 = vmatprep.subr.mxu0 0.0
        %2211 = vmatpush2.msra.mxu0 0.0
        %2212 = vmatprep.subr.mxu0 0.0
        %2213 = vmatpush2.msra.mxu0 0.0
        %2214 = vmatprep.subr.mxu0 0.0
        %2215 = vmatpush2.msra.mxu0 0.0
        %2216 = vmatprep.subr.mxu0 0.0
        %2217 = vmatpush2.msra.mxu0 0.0
        %2218 = vmatprep.subr.mxu0 0.0
        %2219 = vmatpush2.msra.mxu0 0.0
        %2220 = vmatprep.subr.mxu0 0.0
        %2221 = vmatpush2.msra.mxu0 0.0
        %2222 = vmatprep.subr.mxu0 0.0
        %2223 = vmatpush2.msra.mxu0 0.0
        %2224 = vmatprep.mubr.f32.mxu0 0.0
        %2225 = vmatmul.mubr.f32.gmra.mxu0 %v2158
        %v2226 = vpop.f32.mrf.mxu0
        %v2227 = vadd.f32 0.0, %v2226
        %v2228 = vpop.f32.mrf.mxu0
        %2229 = vdwg.mxu0
        %v2230 = vsel %vm588, %v2227, -inf
        %v2231 = vrot.slane %v2230, 4
        %v2232 = vmax.f32 %v2230, %v2231
        %v2233 = vrot.slane %v2232, 2
        %v2234 = vmax.f32 %v2232, %v2233
        %v2235 = vrot.slane %v2234, 1
        %v2236 = vmax.f32 %v2234, %v2235
        %v2237 = vsub.f32 %v2227, %v2236
        %v2238 = vmul.f32 %v2237, 1.442695
        %v2239 = vpow.pop %v2238
        %v2240 = vsel %vm588, %v2239, 0.0
        %v2241 = vrot.slane %v2240, 4
        %v2242 = vadd.f32 %v2240, %v2241
        %v2243 = vrot.slane %v2242, 2
        %v2244 = vadd.f32 %v2242, %v2243
        %v2245 = vrot.slane %v2244, 1
        %v2246 = vadd.f32 %v2244, %v2245
        %v2247 = vrcp.pop %v2246
        %v2248 = vmul.f32 %v2239, %v2247
        %2249 = vmatprep.subr.mxu0 0.0
        %2250 = vmatpush1.msra.mxu0 0.0
        %2251 = vmatprep.subr.mxu0 0.0
        %2252 = vmatpush1.msra.mxu0 0.0
        %2253 = vmatprep.subr.mxu0 0.0
        %2254 = vmatpush1.msra.mxu0 0.0
        %2255 = vmatprep.subr.mxu0 0.0
        %2256 = vmatpush1.msra.mxu0 0.0
        %2257 = vmatprep.subr.mxu0 0.0
        %2258 = vmatpush1.msra.mxu0 0.0
        %2259 = vmatprep.subr.mxu0 0.0
        %2260 = vmatpush1.msra.mxu0 0.0
        %2261 = vmatprep.subr.mxu0 0.0
        %2262 = vmatpush1.msra.mxu0 0.0
        %2263 = vmatprep.subr.mxu0 0.0
        %2264 = vmatpush1.msra.mxu0 0.0
        %2265 = vmatprep.subr.mxu0 0.0
        %2266 = vmatpush1.msra.mxu0 0.0
        %2267 = vmatprep.subr.mxu0 0.0
        %2268 = vmatpush1.msra.mxu0 0.0
        %2269 = vmatprep.subr.mxu0 0.0
        %2270 = vmatpush1.msra.mxu0 0.0
        %2271 = vmatprep.subr.mxu0 0.0
        %2272 = vmatpush1.msra.mxu0 0.0
        %2273 = vmatprep.subr.mxu0 0.0
        %2274 = vmatpush1.msra.mxu0 0.0
        %2275 = vmatprep.subr.mxu0 0.0
        %2276 = vmatpush1.msra.mxu0 0.0
        %2277 = vmatprep.subr.mxu0 0.0
        %2278 = vmatpush1.msra.mxu0 0.0
        %2279 = vmatprep.subr.mxu0 0.0
        %2280 = vmatpush1.msra.mxu0 %v2248
        %2281 = vmatprep.subr.mxu0 0.0
        %2282 = vmatpush2.msra.mxu0 0.0
        %2283 = vmatprep.subr.mxu0 0.0
        %2284 = vmatpush2.msra.mxu0 0.0
        %2285 = vmatprep.subr.mxu0 0.0
        %2286 = vmatpush2.msra.mxu0 0.0
        %2287 = vmatprep.subr.mxu0 0.0
        %2288 = vmatpush2.msra.mxu0 0.0
        %2289 = vmatprep.subr.mxu0 0.0
        %2290 = vmatpush2.msra.mxu0 0.0
        %2291 = vmatprep.subr.mxu0 0.0
        %2292 = vmatpush2.msra.mxu0 0.0
        %2293 = vmatprep.subr.mxu0 0.0
        %2294 = vmatpush2.msra.mxu0 0.0
        %2295 = vmatprep.subr.mxu0 0.0
        %2296 = vmatpush2.msra.mxu0 0.0
        %2297 = vmatprep.subr.mxu0 0.0
        %2298 = vmatpush2.msra.mxu0 0.0
        %2299 = vmatprep.subr.mxu0 0.0
        %2300 = vmatpush2.msra.mxu0 0.0
        %2301 = vmatprep.subr.mxu0 0.0
        %2302 = vmatpush2.msra.mxu0 0.0
        %2303 = vmatprep.subr.mxu0 0.0
        %2304 = vmatpush2.msra.mxu0 0.0
        %2305 = vmatprep.subr.mxu0 0.0
        %2306 = vmatpush2.msra.mxu0 0.0
        %2307 = vmatprep.subr.mxu0 0.0
        %2308 = vmatpush2.msra.mxu0 0.0
        %2309 = vmatprep.subr.mxu0 0.0
        %2310 = vmatpush2.msra.mxu0 0.0
        %2311 = vmatprep.subr.mxu0 0.0
        %2312 = vmatpush2.msra.mxu0 0.0
        %2313 = vmatprep.mubr.f32.mxu0 0.0
        %2314 = vmatmul.mubr.f32.gmra.mxu0 %v1944
        %v2315 = vpop.f32.mrf.mxu0
        %v2316 = vadd.f32 0.0, %v2315
        %v2317 = vpop.f32.mrf.mxu0
        %2318 = vmatprep.mubr.f32.mxu0 0.0
        %2319 = vmatmul.mubr.f32.gmra.mxu0 %v1947
        %v2320 = vpop.f32.mrf.mxu0
        %v2321 = vadd.f32 0.0, %v2320
        %v2322 = vpop.f32.mrf.mxu0
        %2323 = vdwg.mxu0
        %2324 = vmatprep.subr.mxu0 0.0
        %2325 = vmatpush1.msra.mxu0 0.0
        %2326 = vmatprep.subr.mxu0 0.0
        %2327 = vmatpush1.msra.mxu0 0.0
        %2328 = vmatprep.subr.mxu0 0.0
        %2329 = vmatpush1.msra.mxu0 0.0
        %2330 = vmatprep.subr.mxu0 0.0
        %2331 = vmatpush1.msra.mxu0 0.0
        %2332 = vmatprep.subr.mxu0 0.0
        %2333 = vmatpush1.msra.mxu0 0.0
        %2334 = vmatprep.subr.mxu0 0.0
        %2335 = vmatpush1.msra.mxu0 0.0
        %2336 = vmatprep.subr.mxu0 0.0
        %2337 = vmatpush1.msra.mxu0 0.0
        %2338 = vmatprep.subr.mxu0 0.0
        %2339 = vmatpush1.msra.mxu0 0.0
        %2340 = vmatprep.subr.mxu0 0.0
        %2341 = vmatpush1.msra.mxu0 0.0
        %2342 = vmatprep.subr.mxu0 0.0
        %2343 = vmatpush1.msra.mxu0 0.0
        %2344 = vmatprep.subr.mxu0 0.0
        %2345 = vmatpush1.msra.mxu0 0.0
        %2346 = vmatprep.subr.mxu0 0.0
        %2347 = vmatpush1.msra.mxu0 0.0
        %2348 = vmatprep.subr.mxu0 0.0
        %2349 = vmatpush1.msra.mxu0 0.0
        %2350 = vmatprep.subr.mxu0 0.0
        %2351 = vmatpush1.msra.mxu0 0.0
        %2352 = vmatprep.subr.mxu0 0.0
        %2353 = vmatpush1.msra.mxu0 %v2321
        %2354 = vmatprep.subr.mxu0 0.0
        %2355 = vmatpush1.msra.mxu0 %v2316
        %2356 = vmatprep.subr.mxu0 0.0
        %2357 = vmatpush2.msra.mxu0 0.0
        %2358 = vmatprep.subr.mxu0 0.0
        %2359 = vmatpush2.msra.mxu0 0.0
        %2360 = vmatprep.subr.mxu0 0.0
        %2361 = vmatpush2.msra.mxu0 0.0
        %2362 = vmatprep.subr.mxu0 0.0
        %2363 = vmatpush2.msra.mxu0 0.0
        %2364 = vmatprep.subr.mxu0 0.0
        %2365 = vmatpush2.msra.mxu0 0.0
        %2366 = vmatprep.subr.mxu0 0.0
        %2367 = vmatpush2.msra.mxu0 0.0
        %2368 = vmatprep.subr.mxu0 0.0
        %2369 = vmatpush2.msra.mxu0 0.0
        %2370 = vmatprep.subr.mxu0 0.0
        %2371 = vmatpush2.msra.mxu0 0.0
        %2372 = vmatprep.subr.mxu0 0.0
        %2373 = vmatpush2.msra.mxu0 0.0
        %2374 = vmatprep.subr.mxu0 0.0
        %2375 = vmatpush2.msra.mxu0 0.0
        %2376 = vmatprep.subr.mxu0 0.0
        %2377 = vmatpush2.msra.mxu0 0.0
        %2378 = vmatprep.subr.mxu0 0.0
        %2379 = vmatpush2.msra.mxu0 0.0
        %2380 = vmatprep.subr.mxu0 0.0
        %2381 = vmatpush2.msra.mxu0 0.0
        %2382 = vmatprep.subr.mxu0 0.0
        %2383 = vmatpush2.msra.mxu0 0.0
        %2384 = vmatprep.subr.mxu0 0.0
        %2385 = vmatpush2.msra.mxu0 0.0
        %2386 = vmatprep.subr.mxu0 0.0
        %2387 = vmatpush2.msra.mxu0 0.0
        %2388 = vmatprep.mubr.f32.mxu0 0.0
        %2389 = vmatmul.mubr.f32.gmra.mxu0 %v2045
        %v2390 = vpop.f32.mrf.mxu0
        %v2391 = vadd.f32 %v2027, %v2390
        %v2392 = vpop.f32.mrf.mxu0
        %2393 = vmatprep.mubr.f32.mxu0 0.0
        %2394 = vmatmul.mubr.f32.gmra.mxu0 %v2048
        %v2395 = vpop.f32.mrf.mxu0
        %v2396 = vadd.f32 %v2032, %v2395
        %v2397 = vpop.f32.mrf.mxu0
        %2398 = vmatprep.mubr.f32.mxu0 0.0
        %2399 = vmatmul.mubr.f32.gmra.mxu0 %v2051
        %v2400 = vpop.f32.mrf.mxu0
        %v2401 = vadd.f32 %v2037, %v2400
        %v2402 = vpop.f32.mrf.mxu0
        %2403 = vmatprep.mubr.f32.mxu0 0.0
        %2404 = vmatmul.mubr.f32.gmra.mxu0 %v2054
        %v2405 = vpop.f32.mrf.mxu0
        %v2406 = vadd.f32 %v2042, %v2405
        %v2407 = vpop.f32.mrf.mxu0
        %2408 = vdwg.mxu0
        %v2409 = vmax.f32 %v2391, 0.0
        %v2410 = vmax.f32 %v2396, 0.0
        %v2411 = vmax.f32 %v2401, 0.0
        %v2412 = vmax.f32 %v2406, 0.0
        %v2413 = vadd.f32 %v2153, %v2409
        %v2414 = vadd.f32 %v2154, %v2410
        %v2415 = vadd.f32 %v2155, %v2411
        %v2416 = vadd.f32 %v2156, %v2412
        %s2417 = scalar_lea.vmem %s433, 32 [#allocation7]
        %2418 = vst.msk [vmem:[%s2417] sm:$0xff] %vm588, %v2413
        %2419 = vst.msk [vmem:[%s2417 + $0x8] sm:$0xff] %vm588, %v2414
        %2420 = vst.msk [vmem:[%s2417 + $0x10] sm:$0xff] %vm588, %v2415
        %2421 = vst.msk [vmem:[%s2417 + $0x18] sm:$0xff] %vm588, %v2416
        %v2422 = vld [vmem:[%s895] sm:$0xff]
        %v2423 = vld [vmem:[%s895 + $0x8] sm:$0xff]
        %v2424 = vld [vmem:[%s895 + $0x10] sm:$0xff]
        %v2425 = vld [vmem:[%s895 + $0x18] sm:$0xff]
        %v2427 = vsel %vm1817, %v1728, 0
        %2429 = vmatprep.subr.mxu0 0.0
        %2430 = vmatpush1.msra.mxu0 0.0
        %2431 = vmatprep.subr.mxu0 0.0
        %2432 = vmatpush1.msra.mxu0 0.0
        %2433 = vmatprep.subr.mxu0 0.0
        %2434 = vmatpush1.msra.mxu0 0.0
        %2435 = vmatprep.subr.mxu0 0.0
        %2436 = vmatpush1.msra.mxu0 0.0
        %2437 = vmatprep.subr.mxu0 0.0
        %2438 = vmatpush1.msra.mxu0 0.0
        %2439 = vmatprep.subr.mxu0 0.0
        %2440 = vmatpush1.msra.mxu0 0.0
        %2441 = vmatprep.subr.mxu0 0.0
        %2442 = vmatpush1.msra.mxu0 0.0
        %2443 = vmatprep.subr.mxu0 0.0
        %2444 = vmatpush1.msra.mxu0 0.0
        %2445 = vmatprep.subr.mxu0 0.0
        %2446 = vmatpush1.msra.mxu0 0.0
        %2447 = vmatprep.subr.mxu0 0.0
        %2448 = vmatpush1.msra.mxu0 0.0
        %2449 = vmatprep.subr.mxu0 0.0
        %2450 = vmatpush1.msra.mxu0 0.0
        %2451 = vmatprep.subr.mxu0 0.0
        %2452 = vmatpush1.msra.mxu0 0.0
        %2453 = vmatprep.subr.mxu0 0.0
        %2454 = vmatpush1.msra.mxu0 0.0
        %2455 = vmatprep.subr.mxu0 0.0
        %2456 = vmatpush1.msra.mxu0 0.0
        %2457 = vmatprep.subr.mxu0 0.0
        %2458 = vmatpush1.msra.mxu0 %v977
        %2459 = vmatprep.subr.mxu0 0.0
        %2460 = vmatpush1.msra.mxu0 %v972
        %2461 = vmatprep.subr.mxu0 0.0
        %2462 = vmatpush2.msra.mxu0 0.0
        %2463 = vmatprep.subr.mxu0 0.0
        %2464 = vmatpush2.msra.mxu0 0.0
        %2465 = vmatprep.subr.mxu0 0.0
        %2466 = vmatpush2.msra.mxu0 0.0
        %2467 = vmatprep.subr.mxu0 0.0
        %2468 = vmatpush2.msra.mxu0 0.0
        %2469 = vmatprep.subr.mxu0 0.0
        %2470 = vmatpush2.msra.mxu0 0.0
        %2471 = vmatprep.subr.mxu0 0.0
        %2472 = vmatpush2.msra.mxu0 0.0
        %2473 = vmatprep.subr.mxu0 0.0
        %2474 = vmatpush2.msra.mxu0 0.0
        %2475 = vmatprep.subr.mxu0 0.0
        %2476 = vmatpush2.msra.mxu0 0.0
        %2477 = vmatprep.subr.mxu0 0.0
        %2478 = vmatpush2.msra.mxu0 0.0
        %2479 = vmatprep.subr.mxu0 0.0
        %2480 = vmatpush2.msra.mxu0 0.0
        %2481 = vmatprep.subr.mxu0 0.0
        %2482 = vmatpush2.msra.mxu0 0.0
        %2483 = vmatprep.subr.mxu0 0.0
        %2484 = vmatpush2.msra.mxu0 0.0
        %2485 = vmatprep.subr.mxu0 0.0
        %2486 = vmatpush2.msra.mxu0 0.0
        %2487 = vmatprep.subr.mxu0 0.0
        %2488 = vmatpush2.msra.mxu0 0.0
        %2489 = vmatprep.subr.mxu0 0.0
        %2490 = vmatpush2.msra.mxu0 0.0
        %2491 = vmatprep.subr.mxu0 0.0
        %2492 = vmatpush2.msra.mxu0 0.0
        %2493 = vmatprep.mubr.f32.mxu0 0.0
        %2494 = vmatmul.mubr.f32.gmra.mxu0 %v2427
        %v2495 = vpop.f32.mrf.mxu0
        %v2496 = vadd.f32 0.0, %v2495
        %v2497 = vpop.f32.mrf.mxu0
        %2498 = vdwg.mxu0
        %v2499 = vsel %vm588, %v2496, -inf
        %v2500 = vrot.slane %v2499, 4
        %v2501 = vmax.f32 %v2499, %v2500
        %v2502 = vrot.slane %v2501, 2
        %v2503 = vmax.f32 %v2501, %v2502
        %v2504 = vrot.slane %v2503, 1
        %v2505 = vmax.f32 %v2503, %v2504
        %v2506 = vsub.f32 %v2496, %v2505
        %v2507 = vmul.f32 %v2506, 1.442695
        %v2508 = vpow.pop %v2507
        %v2509 = vsel %vm588, %v2508, 0.0
        %v2510 = vrot.slane %v2509, 4
        %v2511 = vadd.f32 %v2509, %v2510
        %v2512 = vrot.slane %v2511, 2
        %v2513 = vadd.f32 %v2511, %v2512
        %v2514 = vrot.slane %v2513, 1
        %v2515 = vadd.f32 %v2513, %v2514
        %v2516 = vrcp.pop %v2515
        %v2517 = vmul.f32 %v2508, %v2516
        %2518 = vmatprep.subr.mxu0 0.0
        %2519 = vmatpush1.msra.mxu0 0.0
        %2520 = vmatprep.subr.mxu0 0.0
        %2521 = vmatpush1.msra.mxu0 0.0
        %2522 = vmatprep.subr.mxu0 0.0
        %2523 = vmatpush1.msra.mxu0 0.0
        %2524 = vmatprep.subr.mxu0 0.0
        %2525 = vmatpush1.msra.mxu0 0.0
        %2526 = vmatprep.subr.mxu0 0.0
        %2527 = vmatpush1.msra.mxu0 0.0
        %2528 = vmatprep.subr.mxu0 0.0
        %2529 = vmatpush1.msra.mxu0 0.0
        %2530 = vmatprep.subr.mxu0 0.0
        %2531 = vmatpush1.msra.mxu0 0.0
        %2532 = vmatprep.subr.mxu0 0.0
        %2533 = vmatpush1.msra.mxu0 0.0
        %2534 = vmatprep.subr.mxu0 0.0
        %2535 = vmatpush1.msra.mxu0 0.0
        %2536 = vmatprep.subr.mxu0 0.0
        %2537 = vmatpush1.msra.mxu0 0.0
        %2538 = vmatprep.subr.mxu0 0.0
        %2539 = vmatpush1.msra.mxu0 0.0
        %2540 = vmatprep.subr.mxu0 0.0
        %2541 = vmatpush1.msra.mxu0 0.0
        %2542 = vmatprep.subr.mxu0 0.0
        %2543 = vmatpush1.msra.mxu0 0.0
        %2544 = vmatprep.subr.mxu0 0.0
        %2545 = vmatpush1.msra.mxu0 0.0
        %2546 = vmatprep.subr.mxu0 0.0
        %2547 = vmatpush1.msra.mxu0 0.0
        %2548 = vmatprep.subr.mxu0 0.0
        %2549 = vmatpush1.msra.mxu0 %v2517
        %2550 = vmatprep.subr.mxu0 0.0
        %2551 = vmatpush2.msra.mxu0 0.0
        %2552 = vmatprep.subr.mxu0 0.0
        %2553 = vmatpush2.msra.mxu0 0.0
        %2554 = vmatprep.subr.mxu0 0.0
        %2555 = vmatpush2.msra.mxu0 0.0
        %2556 = vmatprep.subr.mxu0 0.0
        %2557 = vmatpush2.msra.mxu0 0.0
        %2558 = vmatprep.subr.mxu0 0.0
        %2559 = vmatpush2.msra.mxu0 0.0
        %2560 = vmatprep.subr.mxu0 0.0
        %2561 = vmatpush2.msra.mxu0 0.0
        %2562 = vmatprep.subr.mxu0 0.0
        %2563 = vmatpush2.msra.mxu0 0.0
        %2564 = vmatprep.subr.mxu0 0.0
        %2565 = vmatpush2.msra.mxu0 0.0
        %2566 = vmatprep.subr.mxu0 0.0
        %2567 = vmatpush2.msra.mxu0 0.0
        %2568 = vmatprep.subr.mxu0 0.0
        %2569 = vmatpush2.msra.mxu0 0.0
        %2570 = vmatprep.subr.mxu0 0.0
        %2571 = vmatpush2.msra.mxu0 0.0
        %2572 = vmatprep.subr.mxu0 0.0
        %2573 = vmatpush2.msra.mxu0 0.0
        %2574 = vmatprep.subr.mxu0 0.0
        %2575 = vmatpush2.msra.mxu0 0.0
        %2576 = vmatprep.subr.mxu0 0.0
        %2577 = vmatpush2.msra.mxu0 0.0
        %2578 = vmatprep.subr.mxu0 0.0
        %2579 = vmatpush2.msra.mxu0 0.0
        %2580 = vmatprep.subr.mxu0 0.0
        %2581 = vmatpush2.msra.mxu0 0.0
        %2582 = vmatprep.mubr.f32.mxu0 0.0
        %2583 = vmatmul.mubr.f32.gmra.mxu0 %v1944
        %v2584 = vpop.f32.mrf.mxu0
        %v2585 = vadd.f32 0.0, %v2584
        %v2586 = vpop.f32.mrf.mxu0
        %2587 = vmatprep.mubr.f32.mxu0 0.0
        %2588 = vmatmul.mubr.f32.gmra.mxu0 %v1947
        %v2589 = vpop.f32.mrf.mxu0
        %v2590 = vadd.f32 0.0, %v2589
        %v2591 = vpop.f32.mrf.mxu0
        %2592 = vdwg.mxu0
        %2593 = vmatprep.subr.mxu0 0.0
        %2594 = vmatpush1.msra.mxu0 0.0
        %2595 = vmatprep.subr.mxu0 0.0
        %2596 = vmatpush1.msra.mxu0 0.0
        %2597 = vmatprep.subr.mxu0 0.0
        %2598 = vmatpush1.msra.mxu0 0.0
        %2599 = vmatprep.subr.mxu0 0.0
        %2600 = vmatpush1.msra.mxu0 0.0
        %2601 = vmatprep.subr.mxu0 0.0
        %2602 = vmatpush1.msra.mxu0 0.0
        %2603 = vmatprep.subr.mxu0 0.0
        %2604 = vmatpush1.msra.mxu0 0.0
        %2605 = vmatprep.subr.mxu0 0.0
        %2606 = vmatpush1.msra.mxu0 0.0
        %2607 = vmatprep.subr.mxu0 0.0
        %2608 = vmatpush1.msra.mxu0 0.0
        %2609 = vmatprep.subr.mxu0 0.0
        %2610 = vmatpush1.msra.mxu0 0.0
        %2611 = vmatprep.subr.mxu0 0.0
        %2612 = vmatpush1.msra.mxu0 0.0
        %2613 = vmatprep.subr.mxu0 0.0
        %2614 = vmatpush1.msra.mxu0 0.0
        %2615 = vmatprep.subr.mxu0 0.0
        %2616 = vmatpush1.msra.mxu0 0.0
        %2617 = vmatprep.subr.mxu0 0.0
        %2618 = vmatpush1.msra.mxu0 0.0
        %2619 = vmatprep.subr.mxu0 0.0
        %2620 = vmatpush1.msra.mxu0 0.0
        %2621 = vmatprep.subr.mxu0 0.0
        %2622 = vmatpush1.msra.mxu0 %v2590
        %2623 = vmatprep.subr.mxu0 0.0
        %2624 = vmatpush1.msra.mxu0 %v2585
        %2625 = vmatprep.subr.mxu0 0.0
        %2626 = vmatpush2.msra.mxu0 0.0
        %2627 = vmatprep.subr.mxu0 0.0
        %2628 = vmatpush2.msra.mxu0 0.0
        %2629 = vmatprep.subr.mxu0 0.0
        %2630 = vmatpush2.msra.mxu0 0.0
        %2631 = vmatprep.subr.mxu0 0.0
        %2632 = vmatpush2.msra.mxu0 0.0
        %2633 = vmatprep.subr.mxu0 0.0
        %2634 = vmatpush2.msra.mxu0 0.0
        %2635 = vmatprep.subr.mxu0 0.0
        %2636 = vmatpush2.msra.mxu0 0.0
        %2637 = vmatprep.subr.mxu0 0.0
        %2638 = vmatpush2.msra.mxu0 0.0
        %2639 = vmatprep.subr.mxu0 0.0
        %2640 = vmatpush2.msra.mxu0 0.0
        %2641 = vmatprep.subr.mxu0 0.0
        %2642 = vmatpush2.msra.mxu0 0.0
        %2643 = vmatprep.subr.mxu0 0.0
        %2644 = vmatpush2.msra.mxu0 0.0
        %2645 = vmatprep.subr.mxu0 0.0
        %2646 = vmatpush2.msra.mxu0 0.0
        %2647 = vmatprep.subr.mxu0 0.0
        %2648 = vmatpush2.msra.mxu0 0.0
        %2649 = vmatprep.subr.mxu0 0.0
        %2650 = vmatpush2.msra.mxu0 0.0
        %2651 = vmatprep.subr.mxu0 0.0
        %2652 = vmatpush2.msra.mxu0 0.0
        %2653 = vmatprep.subr.mxu0 0.0
        %2654 = vmatpush2.msra.mxu0 0.0
        %2655 = vmatprep.subr.mxu0 0.0
        %2656 = vmatpush2.msra.mxu0 0.0
        %2657 = vmatprep.mubr.f32.mxu0 0.0
        %2658 = vmatmul.mubr.f32.gmra.mxu0 %v2045
        %v2659 = vpop.f32.mrf.mxu0
        %v2660 = vadd.f32 %v2027, %v2659
        %v2661 = vpop.f32.mrf.mxu0
        %2662 = vmatprep.mubr.f32.mxu0 0.0
        %2663 = vmatmul.mubr.f32.gmra.mxu0 %v2048
        %v2664 = vpop.f32.mrf.mxu0
        %v2665 = vadd.f32 %v2032, %v2664
        %v2666 = vpop.f32.mrf.mxu0
        %2667 = vmatprep.mubr.f32.mxu0 0.0
        %2668 = vmatmul.mubr.f32.gmra.mxu0 %v2051
        %v2669 = vpop.f32.mrf.mxu0
        %v2670 = vadd.f32 %v2037, %v2669
        %v2671 = vpop.f32.mrf.mxu0
        %2672 = vmatprep.mubr.f32.mxu0 0.0
        %2673 = vmatmul.mubr.f32.gmra.mxu0 %v2054
        %v2674 = vpop.f32.mrf.mxu0
        %v2675 = vadd.f32 %v2042, %v2674
        %v2676 = vpop.f32.mrf.mxu0
        %2677 = vdwg.mxu0
        %v2678 = vmax.f32 %v2660, 0.0
        %v2679 = vmax.f32 %v2665, 0.0
        %v2680 = vmax.f32 %v2670, 0.0
        %v2681 = vmax.f32 %v2675, 0.0
        %v2682 = vadd.f32 %v2422, %v2678
        %v2683 = vadd.f32 %v2423, %v2679
        %v2684 = vadd.f32 %v2424, %v2680
        %v2685 = vadd.f32 %v2425, %v2681
        %s2686 = scalar_lea.vmem %s433, 64 [#allocation7]
        %2687 = vst.msk [vmem:[%s2686] sm:$0xff] %vm588, %v2682
        %2688 = vst.msk [vmem:[%s2686 + $0x8] sm:$0xff] %vm588, %v2683
        %2689 = vst.msk [vmem:[%s2686 + $0x10] sm:$0xff] %vm588, %v2684
        %2690 = vst.msk [vmem:[%s2686 + $0x18] sm:$0xff] %vm588, %v2685
        %v2691 = vld [vmem:[%s1090] sm:$0xff]
        %v2692 = vld [vmem:[%s1090 + $0x8] sm:$0xff]
        %v2693 = vld [vmem:[%s1090 + $0x10] sm:$0xff]
        %v2694 = vld [vmem:[%s1090 + $0x18] sm:$0xff]
        %v2696 = vsel %vm1817, %v1733, 0
        %2698 = vmatprep.subr.mxu0 0.0
        %2699 = vmatpush1.msra.mxu0 0.0
        %2700 = vmatprep.subr.mxu0 0.0
        %2701 = vmatpush1.msra.mxu0 0.0
        %2702 = vmatprep.subr.mxu0 0.0
        %2703 = vmatpush1.msra.mxu0 0.0
        %2704 = vmatprep.subr.mxu0 0.0
        %2705 = vmatpush1.msra.mxu0 0.0
        %2706 = vmatprep.subr.mxu0 0.0
        %2707 = vmatpush1.msra.mxu0 0.0
        %2708 = vmatprep.subr.mxu0 0.0
        %2709 = vmatpush1.msra.mxu0 0.0
        %2710 = vmatprep.subr.mxu0 0.0
        %2711 = vmatpush1.msra.mxu0 0.0
        %2712 = vmatprep.subr.mxu0 0.0
        %2713 = vmatpush1.msra.mxu0 0.0
        %2714 = vmatprep.subr.mxu0 0.0
        %2715 = vmatpush1.msra.mxu0 0.0
        %2716 = vmatprep.subr.mxu0 0.0
        %2717 = vmatpush1.msra.mxu0 0.0
        %2718 = vmatprep.subr.mxu0 0.0
        %2719 = vmatpush1.msra.mxu0 0.0
        %2720 = vmatprep.subr.mxu0 0.0
        %2721 = vmatpush1.msra.mxu0 0.0
        %2722 = vmatprep.subr.mxu0 0.0
        %2723 = vmatpush1.msra.mxu0 0.0
        %2724 = vmatprep.subr.mxu0 0.0
        %2725 = vmatpush1.msra.mxu0 0.0
        %2726 = vmatprep.subr.mxu0 0.0
        %2727 = vmatpush1.msra.mxu0 %v1172
        %2728 = vmatprep.subr.mxu0 0.0
        %2729 = vmatpush1.msra.mxu0 %v1167
        %2730 = vmatprep.subr.mxu0 0.0
        %2731 = vmatpush2.msra.mxu0 0.0
        %2732 = vmatprep.subr.mxu0 0.0
        %2733 = vmatpush2.msra.mxu0 0.0
        %2734 = vmatprep.subr.mxu0 0.0
        %2735 = vmatpush2.msra.mxu0 0.0
        %2736 = vmatprep.subr.mxu0 0.0
        %2737 = vmatpush2.msra.mxu0 0.0
        %2738 = vmatprep.subr.mxu0 0.0
        %2739 = vmatpush2.msra.mxu0 0.0
        %2740 = vmatprep.subr.mxu0 0.0
        %2741 = vmatpush2.msra.mxu0 0.0
        %2742 = vmatprep.subr.mxu0 0.0
        %2743 = vmatpush2.msra.mxu0 0.0
        %2744 = vmatprep.subr.mxu0 0.0
        %2745 = vmatpush2.msra.mxu0 0.0
        %2746 = vmatprep.subr.mxu0 0.0
        %2747 = vmatpush2.msra.mxu0 0.0
        %2748 = vmatprep.subr.mxu0 0.0
        %2749 = vmatpush2.msra.mxu0 0.0
        %2750 = vmatprep.subr.mxu0 0.0
        %2751 = vmatpush2.msra.mxu0 0.0
        %2752 = vmatprep.subr.mxu0 0.0
        %2753 = vmatpush2.msra.mxu0 0.0
        %2754 = vmatprep.subr.mxu0 0.0
        %2755 = vmatpush2.msra.mxu0 0.0
        %2756 = vmatprep.subr.mxu0 0.0
        %2757 = vmatpush2.msra.mxu0 0.0
        %2758 = vmatprep.subr.mxu0 0.0
        %2759 = vmatpush2.msra.mxu0 0.0
        %2760 = vmatprep.subr.mxu0 0.0
        %2761 = vmatpush2.msra.mxu0 0.0
        %2762 = vmatprep.mubr.f32.mxu0 0.0
        %2763 = vmatmul.mubr.f32.gmra.mxu0 %v2696
        %v2764 = vpop.f32.mrf.mxu0
        %v2765 = vadd.f32 0.0, %v2764
        %v2766 = vpop.f32.mrf.mxu0
        %2767 = vdwg.mxu0
        %v2768 = vsel %vm588, %v2765, -inf
        %v2769 = vrot.slane %v2768, 4
        %v2770 = vmax.f32 %v2768, %v2769
        %v2771 = vrot.slane %v2770, 2
        %v2772 = vmax.f32 %v2770, %v2771
        %v2773 = vrot.slane %v2772, 1
        %v2774 = vmax.f32 %v2772, %v2773
        %v2775 = vsub.f32 %v2765, %v2774
        %v2776 = vmul.f32 %v2775, 1.442695
        %v2777 = vpow.pop %v2776
        %v2778 = vsel %vm588, %v2777, 0.0
        %v2779 = vrot.slane %v2778, 4
        %v2780 = vadd.f32 %v2778, %v2779
        %v2781 = vrot.slane %v2780, 2
        %v2782 = vadd.f32 %v2780, %v2781
        %v2783 = vrot.slane %v2782, 1
        %v2784 = vadd.f32 %v2782, %v2783
        %v2785 = vrcp.pop %v2784
        %v2786 = vmul.f32 %v2777, %v2785
        %2787 = vmatprep.subr.mxu0 0.0
        %2788 = vmatpush1.msra.mxu0 0.0
        %2789 = vmatprep.subr.mxu0 0.0
        %2790 = vmatpush1.msra.mxu0 0.0
        %2791 = vmatprep.subr.mxu0 0.0
        %2792 = vmatpush1.msra.mxu0 0.0
        %2793 = vmatprep.subr.mxu0 0.0
        %2794 = vmatpush1.msra.mxu0 0.0
        %2795 = vmatprep.subr.mxu0 0.0
        %2796 = vmatpush1.msra.mxu0 0.0
        %2797 = vmatprep.subr.mxu0 0.0
        %2798 = vmatpush1.msra.mxu0 0.0
        %2799 = vmatprep.subr.mxu0 0.0
        %2800 = vmatpush1.msra.mxu0 0.0
        %2801 = vmatprep.subr.mxu0 0.0
        %2802 = vmatpush1.msra.mxu0 0.0
        %2803 = vmatprep.subr.mxu0 0.0
        %2804 = vmatpush1.msra.mxu0 0.0
        %2805 = vmatprep.subr.mxu0 0.0
        %2806 = vmatpush1.msra.mxu0 0.0
        %2807 = vmatprep.subr.mxu0 0.0
        %2808 = vmatpush1.msra.mxu0 0.0
        %2809 = vmatprep.subr.mxu0 0.0
        %2810 = vmatpush1.msra.mxu0 0.0
        %2811 = vmatprep.subr.mxu0 0.0
        %2812 = vmatpush1.msra.mxu0 0.0
        %2813 = vmatprep.subr.mxu0 0.0
        %2814 = vmatpush1.msra.mxu0 0.0
        %2815 = vmatprep.subr.mxu0 0.0
        %2816 = vmatpush1.msra.mxu0 0.0
        %2817 = vmatprep.subr.mxu0 0.0
        %2818 = vmatpush1.msra.mxu0 %v2786
        %2819 = vmatprep.subr.mxu0 0.0
        %2820 = vmatpush2.msra.mxu0 0.0
        %2821 = vmatprep.subr.mxu0 0.0
        %2822 = vmatpush2.msra.mxu0 0.0
        %2823 = vmatprep.subr.mxu0 0.0
        %2824 = vmatpush2.msra.mxu0 0.0
        %2825 = vmatprep.subr.mxu0 0.0
        %2826 = vmatpush2.msra.mxu0 0.0
        %2827 = vmatprep.subr.mxu0 0.0
        %2828 = vmatpush2.msra.mxu0 0.0
        %2829 = vmatprep.subr.mxu0 0.0
        %2830 = vmatpush2.msra.mxu0 0.0
        %2831 = vmatprep.subr.mxu0 0.0
        %2832 = vmatpush2.msra.mxu0 0.0
        %2833 = vmatprep.subr.mxu0 0.0
        %2834 = vmatpush2.msra.mxu0 0.0
        %2835 = vmatprep.subr.mxu0 0.0
        %2836 = vmatpush2.msra.mxu0 0.0
        %2837 = vmatprep.subr.mxu0 0.0
        %2838 = vmatpush2.msra.mxu0 0.0
        %2839 = vmatprep.subr.mxu0 0.0
        %2840 = vmatpush2.msra.mxu0 0.0
        %2841 = vmatprep.subr.mxu0 0.0
        %2842 = vmatpush2.msra.mxu0 0.0
        %2843 = vmatprep.subr.mxu0 0.0
        %2844 = vmatpush2.msra.mxu0 0.0
        %2845 = vmatprep.subr.mxu0 0.0
        %2846 = vmatpush2.msra.mxu0 0.0
        %2847 = vmatprep.subr.mxu0 0.0
        %2848 = vmatpush2.msra.mxu0 0.0
        %2849 = vmatprep.subr.mxu0 0.0
        %2850 = vmatpush2.msra.mxu0 0.0
        %2851 = vmatprep.mubr.f32.mxu0 0.0
        %2852 = vmatmul.mubr.f32.gmra.mxu0 %v1944
        %v2853 = vpop.f32.mrf.mxu0
        %v2854 = vadd.f32 0.0, %v2853
        %v2855 = vpop.f32.mrf.mxu0
        %2856 = vmatprep.mubr.f32.mxu0 0.0
        %2857 = vmatmul.mubr.f32.gmra.mxu0 %v1947
        %v2858 = vpop.f32.mrf.mxu0
        %v2859 = vadd.f32 0.0, %v2858
        %v2860 = vpop.f32.mrf.mxu0
        %2861 = vdwg.mxu0
        %2862 = vmatprep.subr.mxu0 0.0
        %2863 = vmatpush1.msra.mxu0 0.0
        %2864 = vmatprep.subr.mxu0 0.0
        %2865 = vmatpush1.msra.mxu0 0.0
        %2866 = vmatprep.subr.mxu0 0.0
        %2867 = vmatpush1.msra.mxu0 0.0
        %2868 = vmatprep.subr.mxu0 0.0
        %2869 = vmatpush1.msra.mxu0 0.0
        %2870 = vmatprep.subr.mxu0 0.0
        %2871 = vmatpush1.msra.mxu0 0.0
        %2872 = vmatprep.subr.mxu0 0.0
        %2873 = vmatpush1.msra.mxu0 0.0
        %2874 = vmatprep.subr.mxu0 0.0
        %2875 = vmatpush1.msra.mxu0 0.0
        %2876 = vmatprep.subr.mxu0 0.0
        %2877 = vmatpush1.msra.mxu0 0.0
        %2878 = vmatprep.subr.mxu0 0.0
        %2879 = vmatpush1.msra.mxu0 0.0
        %2880 = vmatprep.subr.mxu0 0.0
        %2881 = vmatpush1.msra.mxu0 0.0
        %2882 = vmatprep.subr.mxu0 0.0
        %2883 = vmatpush1.msra.mxu0 0.0
        %2884 = vmatprep.subr.mxu0 0.0
        %2885 = vmatpush1.msra.mxu0 0.0
        %2886 = vmatprep.subr.mxu0 0.0
        %2887 = vmatpush1.msra.mxu0 0.0
        %2888 = vmatprep.subr.mxu0 0.0
        %2889 = vmatpush1.msra.mxu0 0.0
        %2890 = vmatprep.subr.mxu0 0.0
        %2891 = vmatpush1.msra.mxu0 %v2859
        %2892 = vmatprep.subr.mxu0 0.0
        %2893 = vmatpush1.msra.mxu0 %v2854
        %2894 = vmatprep.subr.mxu0 0.0
        %2895 = vmatpush2.msra.mxu0 0.0
        %2896 = vmatprep.subr.mxu0 0.0
        %2897 = vmatpush2.msra.mxu0 0.0
        %2898 = vmatprep.subr.mxu0 0.0
        %2899 = vmatpush2.msra.mxu0 0.0
        %2900 = vmatprep.subr.mxu0 0.0
        %2901 = vmatpush2.msra.mxu0 0.0
        %2902 = vmatprep.subr.mxu0 0.0
        %2903 = vmatpush2.msra.mxu0 0.0
        %2904 = vmatprep.subr.mxu0 0.0
        %2905 = vmatpush2.msra.mxu0 0.0
        %2906 = vmatprep.subr.mxu0 0.0
        %2907 = vmatpush2.msra.mxu0 0.0
        %2908 = vmatprep.subr.mxu0 0.0
        %2909 = vmatpush2.msra.mxu0 0.0
        %2910 = vmatprep.subr.mxu0 0.0
        %2911 = vmatpush2.msra.mxu0 0.0
        %2912 = vmatprep.subr.mxu0 0.0
        %2913 = vmatpush2.msra.mxu0 0.0
        %2914 = vmatprep.subr.mxu0 0.0
        %2915 = vmatpush2.msra.mxu0 0.0
        %2916 = vmatprep.subr.mxu0 0.0
        %2917 = vmatpush2.msra.mxu0 0.0
        %2918 = vmatprep.subr.mxu0 0.0
        %2919 = vmatpush2.msra.mxu0 0.0
        %2920 = vmatprep.subr.mxu0 0.0
        %2921 = vmatpush2.msra.mxu0 0.0
        %2922 = vmatprep.subr.mxu0 0.0
        %2923 = vmatpush2.msra.mxu0 0.0
        %2924 = vmatprep.subr.mxu0 0.0
        %2925 = vmatpush2.msra.mxu0 0.0
        %2926 = vmatprep.mubr.f32.mxu0 0.0
        %2927 = vmatmul.mubr.f32.gmra.mxu0 %v2045
        %v2928 = vpop.f32.mrf.mxu0
        %v2929 = vadd.f32 %v2027, %v2928
        %v2930 = vpop.f32.mrf.mxu0
        %2931 = vmatprep.mubr.f32.mxu0 0.0
        %2932 = vmatmul.mubr.f32.gmra.mxu0 %v2048
        %v2933 = vpop.f32.mrf.mxu0
        %v2934 = vadd.f32 %v2032, %v2933
        %v2935 = vpop.f32.mrf.mxu0
        %2936 = vmatprep.mubr.f32.mxu0 0.0
        %2937 = vmatmul.mubr.f32.gmra.mxu0 %v2051
        %v2938 = vpop.f32.mrf.mxu0
        %v2939 = vadd.f32 %v2037, %v2938
        %v2940 = vpop.f32.mrf.mxu0
        %2941 = vmatprep.mubr.f32.mxu0 0.0
        %2942 = vmatmul.mubr.f32.gmra.mxu0 %v2054
        %v2943 = vpop.f32.mrf.mxu0
        %v2944 = vadd.f32 %v2042, %v2943
        %v2945 = vpop.f32.mrf.mxu0
        %2946 = vdwg.mxu0
        %v2947 = vmax.f32 %v2929, 0.0
        %v2948 = vmax.f32 %v2934, 0.0
        %v2949 = vmax.f32 %v2939, 0.0
        %v2950 = vmax.f32 %v2944, 0.0
        %v2951 = vadd.f32 %v2691, %v2947
        %v2952 = vadd.f32 %v2692, %v2948
        %v2953 = vadd.f32 %v2693, %v2949
        %v2954 = vadd.f32 %v2694, %v2950
        %s2955 = scalar_lea.vmem %s433, 96 [#allocation7]
        %2956 = vst.msk [vmem:[%s2955] sm:$0xff] %vm588, %v2951
        %2957 = vst.msk [vmem:[%s2955 + $0x8] sm:$0xff] %vm588, %v2952
        %2958 = vst.msk [vmem:[%s2955 + $0x10] sm:$0xff] %vm588, %v2953
        %2959 = vst.msk [vmem:[%s2955 + $0x18] sm:$0xff] %vm588, %v2954
        %s2960 = sand.u32 %s275, 1
        %s2961 = scalar_lea.sflag [#allocation6], %s2960
        %s2962 = sand.u32 %s275, 1
        %s2963 = smul.addr %s2962, 128
        %s2964 = scalar_lea.vmem [#allocation7], %s2963
        %p2965 = scmp.lt.s32.totalorder %s31, 1
        %s2966 = scalar_select %p2965, %s31, 1
        %s2967 = smul.addr %s2966, 8
        %s2968 = scalar_lea.vmem %s12, %s2967
        // Predicated region
        $region69: #{tpu_custom_call.1} parent=63 // pred_check
          %p2969 = pneg %p285
        $region70: #{tpu_custom_call.1} parent=63 // pred_check_branch
          %2971 = sbr.rel (%p2969) target = $region72
        $region71: #{tpu_custom_call.1} parent=63 // pred_region
          %s2973 = ssub.s32 2048, 2048
          %2974 = vsyncadd %s2961, %s2973
          %s2975 = smul.addr %s31, 16
          %s2976 = smul.addr %s2975, 128
          %s2977 = scalar_lea.hbm %s11, %s2976
          %s2978 = sshll.u32 %s2964, 4
          %s2979 = int_to_ptr.vmem [resolvable:$true] %s2978
          %2984 = dma.vmem_to_hbm [thread:$0]  %s2979, 2048, %s2977, %s2961, 128, 128, 8
        $region72: #{tpu_custom_call.1} parent=63 // pred_fallthru
          _
        // Predicated region
        $region73: #{tpu_custom_call.1} parent=63 // pred_check
          %p2985 = pneg %p311
        $region74: #{tpu_custom_call.1} parent=63 // pred_check_branch
          %2987 = sbr.rel (%p2985) target = $region76
        $region75: #{tpu_custom_call.1} parent=63 // pred_region
          _
        $region76: #{tpu_custom_call.1} parent=63 // pred_fallthru
          _
      $region64: #{tpu_custom_call.1} parent=5 // pred_fallthru
        _
      %p2988 = scmp.le.s32.totalorder 2, %s26
      // Predicated region
      $region77: #{tpu_custom_call.1} parent=5 // pred_check
        %p2989 = pneg %p2988
      $region78: #{tpu_custom_call.1} parent=5 // pred_check_branch
        %2991 = sbr.rel (%p2989) target = $region80
      $region79: #{tpu_custom_call.1} parent=5 // pred_region
        %s2992 = ssub.s32 %s26, 2
        // Predicated region
        $region81: #{tpu_custom_call.1} parent=79 // pred_check
          %p2993 = pneg %p291
        $region82: #{tpu_custom_call.1} parent=79 // pred_check_branch
          %2995 = sbr.rel (%p2993) target = $region84
        $region83: #{tpu_custom_call.1} parent=79 // pred_region
          %s2996 = sand.u32 %s276, 1
          %s2997 = scalar_lea.sflag [#allocation6], %s2996
          %s2998 = sand.u32 %s276, 1
          %s2999 = smul.addr %s2998, 128
          %s3000 = scalar_lea.vmem [#allocation7], %s2999
          %3001 = dma.done %s2997, 2048
        $region84: #{tpu_custom_call.1} parent=79 // pred_fallthru
          _
        // Predicated region
        $region85: #{tpu_custom_call.1} parent=79 // pred_check
          %p3002 = pneg %p317
        $region86: #{tpu_custom_call.1} parent=79 // pred_check_branch
          %3004 = sbr.rel (%p3002) target = $region88
        $region87: #{tpu_custom_call.1} parent=79 // pred_region
          %p3005 = scmp.lt.s32.totalorder %s32, 1
          %s3006 = scalar_select %p3005, %s32, 1
          %s3007 = smul.addr %s3006, 8
          %s3008 = scalar_lea.vmem %s12, %s3007
        $region88: #{tpu_custom_call.1} parent=79 // pred_fallthru
          _
      $region80: #{tpu_custom_call.1} parent=5 // pred_fallthru
        _
    $region6: #{tpu_custom_call.1} parent=1 // loop_footer
      %s30 = sadd.s32 1, %s26
    $region7: #{tpu_custom_call.1} parent=1 // loop_footer_branch
      %25 = sbr.rel target = $region3
    $region8: #{tpu_custom_call.1} parent=1 // loop_exit
      _
    %3009 = vsyncpa [#allocation5], 1
    %s3010 = scalar_lea.sflag [#allocation5], 1
    %3011 = vsyncpa %s3010, 1
    %3012 = vsyncpa [#allocation6], 1
    %s3013 = scalar_lea.sflag [#allocation6], 1
    %3014 = vsyncpa %s3013, 1

</llo_original>
